<compile_context>
chip_gen: v5e
topology: v5e:2x2
jax: 0.10.0
libtpu: 0.0.40
codegen_flags: <defaults>
</compile_context>

<pallas_src>
import math
from functools import partial

import numpy as np
import jax
import jax.numpy as jnp
from jax import lax
from jax.experimental import pallas as pl
from jax.experimental.pallas import tpu as pltpu

SENSING = 2.0
ANGLE_THRESHOLD = 0.8333 * 3.1415926
# acos is monotone decreasing on [-1, 1]:  acos(c) <= thr/2  <=>  c >= cos(thr/2)
COS_HALF_THRESH = math.cos(ANGLE_THRESHOLD / 2.0)   # > 0 because thr/2 < pi/2
NEG_SLOPE = 0.1       # LeakyReLU negative_slope (activation_layer default)
EPS = 1e-5

LANES = 128           # lane width of a vreg
SUB = 16              # sublane rows processed per inner-loop iteration (multiple of 8)


def _round_up(x, m):
    return ((x + m - 1) // m) * m


def _nnc_kernel(vec_ref, w1_ref, b1_ref, w2_ref, b2_ref, w3_ref, b3_ref,
                out_ref, mask_ref, *, dim, sub):
    """vec_ref: (4, ts, 128) VMEM block; weights/biases in SMEM; outputs (2, ts, 128) / (ts, 128)."""
    n_sub = vec_ref.shape[1] // sub

    def body(i, carry):
        r0 = pl.multiple_of(i * sub, sub)
        rows = pl.ds(r0, sub)
        dx = vec_ref[0, rows, :]                       # (sub, 128)
        dy = vec_ref[1, rows, :]
        vx = vec_ref[2, rows, :]
        vy = vec_ref[3, rows, :]

        # --- find_neighbors mask (divide-free rearrangement; padded zero cols -> False) ---
        d2 = dx * dx + dy * dy
        dist = jnp.sqrt(d2)
        spd = jnp.sqrt(vx * vx + vy * vy) + EPS        # |vel_i| + eps
        dot = vx * dx + vy * dy                        # vel_i . (pos_j - pos_i)
        in_range = d2 <= SENSING * SENSING
        in_cone = dot >= COS_HALF_THRESH * ((dist + EPS) * spd)
        mask_ref[rows, :] = (in_range & in_cone).astype(jnp.int32)

        # --- ResBlock: Linear(4,dim) -> LeakyReLU -> Linear(dim,4) -> LeakyReLU, + x ---
        # (Dropout is identity at inference.)  Pure VPU scalar*vector FMAs, fused per k:
        # the (dim, ...) hidden activation is never materialized.
        x = (dx, dy, vx, vy)
        z = [None, None, None, None]
        for k in range(dim):
            h = (w1_ref[0, k] * dx + w1_ref[1, k] * dy
                 + w1_ref[2, k] * vx + w1_ref[3, k] * vy) + b1_ref[k]
            h = jnp.where(h > 0, h, NEG_SLOPE * h)
            for c in range(4):
                t = w2_ref[k, c] * h
                z[c] = t if z[c] is None else z[c] + t
        y = []
        for c in range(4):
            zc = z[c] + b2_ref[c]
            zc = jnp.where(zc > 0, zc, NEG_SLOPE * zc)
            y.append(zc + x[c])

        # --- out head: Linear(4,2) -> Sigmoid ---
        for j in range(2):
            o = (w3_ref[0, j] * y[0] + w3_ref[1, j] * y[1]
                 + w3_ref[2, j] * y[2] + w3_ref[3, j] * y[3]) + b3_ref[j]
            out_ref[j, rows, :] = jax.nn.sigmoid(o)
        return carry

    lax.fori_loop(0, n_sub, body, 0)


def nnc_pairs(vecT, params, block_rows=256):
    """vecT: (4, M) f32 slab of [dx, dy, vx_i, vy_i] columns.
    Returns (out (2, M) f32, mask (M,) bool)."""
    w1, b1, w2, b2, w3, b3 = params
    dim = w1.shape[1]
    M = vecT.shape[1]

    R = pl.cdiv(M, LANES)
    # Sublane-row block size: big enough to amortize the 0.35 us/step pipeline cost,
    # small enough that the grid has >= 2 steps whenever possible (v7x megacore).
    ts = max(SUB, min(block_rows, _round_up(max(pl.cdiv(R, 2), 1), SUB)))
    Rp = _round_up(R, ts)
    Mp = Rp * LANES
    if Mp != M:
        vecT = jnp.pad(vecT, ((0, 0), (0, Mp - M)))
    vec3 = vecT.reshape(4, Rp, LANES)

    cost = pl.CostEstimate(flops=int(Mp * (20 * dim + 50)),
                           transcendentals=int(4 * Mp),
                           bytes_accessed=int(28 * Mp))

    smem_spec = pl.BlockSpec(memory_space=pltpu.MemorySpace.SMEM)
    out, mask = pl.pallas_call(
        partial(_nnc_kernel, dim=dim, sub=SUB),
        out_shape=(jax.ShapeDtypeStruct((2, Rp, LANES), jnp.float32),
                   jax.ShapeDtypeStruct((Rp, LANES), jnp.int32)),
        grid_spec=pltpu.PrefetchScalarGridSpec(
            num_scalar_prefetch=0,
            grid=(Rp // ts,),
            in_specs=[
                pl.BlockSpec((4, ts, LANES), lambda i: (0, i, 0)),
                smem_spec, smem_spec, smem_spec, smem_spec, smem_spec, smem_spec,
            ],
            out_specs=[
                pl.BlockSpec((2, ts, LANES), lambda i: (0, i, 0)),
                pl.BlockSpec((ts, LANES), lambda i: (i, 0)),
            ],
        ),
        compiler_params=pltpu.CompilerParams(
            dimension_semantics=("parallel",),        # v7x: shard grid across both TCs
            vmem_limit_bytes=32 * 1024 * 1024),
        cost_estimate=cost,
    )(vec3, w1, b1.reshape(-1), w2, b2.reshape(-1), w3, b3.reshape(-1))

    out_flat = out.reshape(2, Mp)[:, :M]
    mask_flat = mask.reshape(Mp)[:M].astype(bool)     # bool: 4x smaller D2H transfer
    return out_flat, mask_flat


@partial(jax.jit, static_argnames=("seq_start_end", "block_rows"))
def _nn_c_device(traj, speed, params, seq_start_end, block_rows=256):
    """Builds the pairwise slabs for every segment, runs ONE pallas_call,
    returns per-segment (out (n,n,L,2), mask (n,n,L) bool) device arrays."""
    L = traj.shape[1]
    slabs, sizes = [], []
    for (s, e) in seq_start_end:
        n = e - s
        pos = traj[s:e].astype(jnp.float32)                         # (n, L, 2)
        vel = speed[s:e].astype(jnp.float32)                        # (n, L, 2)
        diff = pos[None, :, :, :] - pos[:, None, :, :]              # pos_j - pos_i
        velb = jnp.broadcast_to(vel[:, None, :, :], (n, n, L, 2))   # vel_i over j
        slab = jnp.stack([diff[..., 0].reshape(-1),
                          diff[..., 1].reshape(-1),
                          velb[..., 0].reshape(-1),
                          velb[..., 1].reshape(-1)], axis=0)        # (4, n*n*L)
        slabs.append(slab)
        sizes.append(n * n * L)
    vecT = jnp.concatenate(slabs, axis=1)

    out, mask = nnc_pairs(vecT, params, block_rows=block_rows)

    results = []
    off = 0
    for (s, e), m_k in zip(seq_start_end, sizes):
        n = e - s
        o = out[:, off:off + m_k].T.reshape(n, n, L, 2)
        msk = mask[off:off + m_k].reshape(n, n, L)
        results.append((o, msk))
        off += m_k
    return tuple(results)


def nn_c_forward(traj, speed, seq_start_end, params, block_rows=256):
    """Mirrors NN_C.forward (eval mode).  Returns (indexs, vectors)."""
    sse = tuple((int(s), int(e)) for (s, e) in seq_start_end)
    results = _nn_c_device(traj, speed, params, seq_start_end=sse, block_rows=block_rows)
    # Single deferred device->host transfer of all (bool) masks, then host-side nonzero().
    masks_host = jax.device_get([m for (_, m) in results])
    indexs = [np.argwhere(np.asarray(m, dtype=bool)) for m in masks_host]
    vectors = [o for (o, _) in results]
    return indexs, vectors


def reference_segment(pos, vel, params):
    """Pure-JAX reference matching the PyTorch semantics (eval mode)."""
    n, L, _ = pos.shape
    w1, b1, w2, b2, w3, b3 = params
    vector = pos[None, :, :, :] - pos[:, None, :, :]
    dist = jnp.linalg.norm(vector, axis=3)
    directions = vector / (dist[..., None] + 1e-5)
    dot = (vel[:, None] * directions).sum(-1)
    spd = jnp.linalg.norm(jnp.broadcast_to(vel[:, None], (n, n, L, 2)), axis=-1) + 1e-5
    cos = dot / spd
    ang = jnp.arccos(jnp.clip(cos, -1.0, 1.0))
    mask = (dist <= SENSING) & (ang <= ANGLE_THRESHOLD / 2)
    vec = jnp.concatenate(
        [vector, jnp.broadcast_to(vel[:, None], (n, n, L, 2))], axis=-1)
    h = vec @ w1 + b1[0]
    h = jnp.where(h > 0, h, NEG_SLOPE * h)
    h = h @ w2 + b2[0]
    h = jnp.where(h > 0, h, NEG_SLOPE * h)
    y = h + vec
    o = jax.nn.sigmoid(y @ w3 + b3[0])
    return mask, o


def init_params(key, dim):
    ks = jax.random.split(key, 6)
    w1 = jax.random.normal(ks[0], (4, dim), jnp.float32) * 0.5
    b1 = jax.random.normal(ks[1], (1, dim), jnp.float32) * 0.1
    w2 = jax.random.normal(ks[2], (dim, 4), jnp.float32) * 0.5
    b2 = jax.random.normal(ks[3], (1, 4), jnp.float32) * 0.1
    w3 = jax.random.normal(ks[4], (4, 2), jnp.float32) * 0.5
    b3 = jax.random.normal(ks[5], (1, 2), jnp.float32) * 0.1
    return (w1, b1, w2, b2, w3, b3)


if __name__ == "__main__":
    key = jax.random.PRNGKey(0)
    k_traj, k_speed, k_params = jax.random.split(key, 3)

    N_total, L, dim = 8, 8, 32
    traj = jax.random.normal(k_traj, (N_total, L, 2), jnp.float32) * 2.0
    speed = jax.random.normal(k_speed, (N_total, L, 2), jnp.float32)
    seq_start_end = [(0, 4), (4, 8)]
    params = init_params(k_params, dim)

    indexs, vectors = nn_c_forward(traj, speed, seq_start_end, params)
    for v in vectors:
        jax.block_until_ready(v)

    # correctness check against pure-JAX reference
    for (s, e), idx, out in zip(seq_start_end, indexs, vectors):
        ref_mask, ref_out = reference_segment(traj[s:e], speed[s:e], params)
        ref_idx = np.argwhere(np.asarray(ref_mask))
        assert np.array_equal(idx, ref_idx), "neighbor index mismatch"
        np.testing.assert_allclose(np.asarray(out), np.asarray(ref_out),
                                   rtol=1e-4, atol=2e-5)

    print("KERNEL_OK")
</pallas_src>

<mosaic_0001>
module attributes {stable_mosaic.version = 11 : i64} {
  func.func @_nnc_kernel(%arg0: i32, %arg1: memref<4x16x128xf32, #tpu.memory_space<vmem>>, %arg2: memref<4x32xf32, #tpu.memory_space<smem>>, %arg3: memref<32xf32, #tpu.memory_space<smem>>, %arg4: memref<32x4xf32, #tpu.memory_space<smem>>, %arg5: memref<4xf32, #tpu.memory_space<smem>>, %arg6: memref<4x2xf32, #tpu.memory_space<smem>>, %arg7: memref<2xf32, #tpu.memory_space<smem>>, %arg8: memref<2x16x128xf32, #tpu.memory_space<vmem>>, %arg9: memref<16x128xi32, #tpu.memory_space<vmem>>) attributes {dimension_semantics = [#tpu.dimension_semantics<parallel>], iteration_bounds = array<i64: 1>, scalar_prefetch = 0 : i64, scratch_operands = 0 : i64, tpu.core_type = #tpu.core_type<tc>, window_params = [{transform_indices = @transform_0, window_bounds = array<i64: 4, 16, 128>}, {transform_indices = @transform_1, window_bounds = array<i64: 4, 32>}, {transform_indices = @transform_2, window_bounds = array<i64: 32>}, {transform_indices = @transform_3, window_bounds = array<i64: 32, 4>}, {transform_indices = @transform_4, window_bounds = array<i64: 4>}, {transform_indices = @transform_5, window_bounds = array<i64: 4, 2>}, {transform_indices = @transform_6, window_bounds = array<i64: 2>}, {transform_indices = @transform_7, window_bounds = array<i64: 2, 16, 128>}, {transform_indices = @transform_8, window_bounds = array<i64: 16, 128>}]} {
    %c0_i32 = arith.constant 0 : i32
    %c16_i32 = arith.constant 16 : i32
    %0 = arith.muli %c0_i32, %c16_i32 : i32
    %1 = tpu.assume_multiple %0, 16 : i32
    %c0 = arith.constant 0 : index
    %2 = arith.index_cast %1 : i32 to index
    %c0_0 = arith.constant 0 : index
    %3 = vector.load %arg1[%c0, %2, %c0_0] : memref<4x16x128xf32, #tpu.memory_space<vmem>>, vector<1x16x128xf32>
    %4 = vector.shape_cast %3 : vector<1x16x128xf32> to vector<16x128xf32>
    %c1 = arith.constant 1 : index
    %5 = arith.index_cast %1 : i32 to index
    %c0_1 = arith.constant 0 : index
    %6 = vector.load %arg1[%c1, %5, %c0_1] : memref<4x16x128xf32, #tpu.memory_space<vmem>>, vector<1x16x128xf32>
    %7 = vector.shape_cast %6 : vector<1x16x128xf32> to vector<16x128xf32>
    %c2 = arith.constant 2 : index
    %8 = arith.index_cast %1 : i32 to index
    %c0_2 = arith.constant 0 : index
    %9 = vector.load %arg1[%c2, %8, %c0_2] : memref<4x16x128xf32, #tpu.memory_space<vmem>>, vector<1x16x128xf32>
    %10 = vector.shape_cast %9 : vector<1x16x128xf32> to vector<16x128xf32>
    %c3 = arith.constant 3 : index
    %11 = arith.index_cast %1 : i32 to index
    %c0_3 = arith.constant 0 : index
    %12 = vector.load %arg1[%c3, %11, %c0_3] : memref<4x16x128xf32, #tpu.memory_space<vmem>>, vector<1x16x128xf32>
    %13 = vector.shape_cast %12 : vector<1x16x128xf32> to vector<16x128xf32>
    %14 = arith.mulf %4, %4 : vector<16x128xf32>
    %15 = arith.mulf %7, %7 : vector<16x128xf32>
    %16 = arith.addf %14, %15 : vector<16x128xf32>
    %17 = math.sqrt %16 : vector<16x128xf32>
    %18 = arith.mulf %10, %10 : vector<16x128xf32>
    %19 = arith.mulf %13, %13 : vector<16x128xf32>
    %20 = arith.addf %18, %19 : vector<16x128xf32>
    %21 = math.sqrt %20 : vector<16x128xf32>
    %cst = arith.constant 9.99999974E-6 : f32
    %22 = vector.broadcast %cst : f32 to vector<16x128xf32>
    %23 = arith.addf %21, %22 : vector<16x128xf32>
    %24 = arith.mulf %10, %4 : vector<16x128xf32>
    %25 = arith.mulf %13, %7 : vector<16x128xf32>
    %26 = arith.addf %24, %25 : vector<16x128xf32>
    %cst_4 = arith.constant 4.000000e+00 : f32
    %27 = vector.broadcast %cst_4 : f32 to vector<16x128xf32>
    %28 = arith.cmpf ole, %16, %27 : vector<16x128xf32>
    %cst_5 = arith.constant 9.99999974E-6 : f32
    %29 = vector.broadcast %cst_5 : f32 to vector<16x128xf32>
    %30 = arith.addf %17, %29 : vector<16x128xf32>
    %31 = arith.mulf %30, %23 : vector<16x128xf32>
    %cst_6 = arith.constant 0.258869648 : f32
    %32 = vector.broadcast %cst_6 : f32 to vector<16x128xf32>
    %33 = arith.mulf %32, %31 : vector<16x128xf32>
    %34 = arith.cmpf oge, %26, %33 : vector<16x128xf32>
    %35 = arith.andi %28, %34 : vector<16x128xi1>
    %36 = arith.extui %35 : vector<16x128xi1> to vector<16x128xi32>
    %37 = arith.index_cast %1 : i32 to index
    %c0_7 = arith.constant 0 : index
    %38 = vector.load %arg9[%37, %c0_7] : memref<16x128xi32, #tpu.memory_space<vmem>>, vector<16x128xi32>
    tpu.vector_store %arg9[%37, %c0_7], %36 {strides = array<i32>} : memref<16x128xi32, #tpu.memory_space<vmem>>, vector<16x128xi32>,
    %c0_8 = arith.constant 0 : index
    %c0_9 = arith.constant 0 : index
    %39 = memref.load %arg2[%c0_8, %c0_9] : memref<4x32xf32, #tpu.memory_space<smem>>
    %40 = vector.broadcast %39 : f32 to vector<16x128xf32>
    %41 = arith.mulf %40, %4 : vector<16x128xf32>
    %c1_10 = arith.constant 1 : index
    %c0_11 = arith.constant 0 : index
    %42 = memref.load %arg2[%c1_10, %c0_11] : memref<4x32xf32, #tpu.memory_space<smem>>
    %43 = vector.broadcast %42 : f32 to vector<16x128xf32>
    %44 = arith.mulf %43, %7 : vector<16x128xf32>
    %45 = arith.addf %41, %44 : vector<16x128xf32>
    %c2_12 = arith.constant 2 : index
    %c0_13 = arith.constant 0 : index
    %46 = memref.load %arg2[%c2_12, %c0_13] : memref<4x32xf32, #tpu.memory_space<smem>>
    %47 = vector.broadcast %46 : f32 to vector<16x128xf32>
    %48 = arith.mulf %47, %10 : vector<16x128xf32>
    %49 = arith.addf %45, %48 : vector<16x128xf32>
    %c3_14 = arith.constant 3 : index
    %c0_15 = arith.constant 0 : index
    %50 = memref.load %arg2[%c3_14, %c0_15] : memref<4x32xf32, #tpu.memory_space<smem>>
    %51 = vector.broadcast %50 : f32 to vector<16x128xf32>
    %52 = arith.mulf %51, %13 : vector<16x128xf32>
    %53 = arith.addf %49, %52 : vector<16x128xf32>
    %c0_16 = arith.constant 0 : index
    %54 = memref.load %arg3[%c0_16] : memref<32xf32, #tpu.memory_space<smem>>
    %55 = vector.broadcast %54 : f32 to vector<16x128xf32>
    %56 = arith.addf %53, %55 : vector<16x128xf32>
    %cst_17 = arith.constant 0.000000e+00 : f32
    %57 = vector.broadcast %cst_17 : f32 to vector<16x128xf32>
    %58 = arith.cmpf ogt, %56, %57 : vector<16x128xf32>
    %cst_18 = arith.constant 1.000000e-01 : f32
    %59 = vector.broadcast %cst_18 : f32 to vector<16x128xf32>
    %60 = arith.mulf %59, %56 : vector<16x128xf32>
    %61 = arith.select %58, %56, %60 : vector<16x128xi1>, vector<16x128xf32>
    %c0_19 = arith.constant 0 : index
    %c0_20 = arith.constant 0 : index
    %62 = memref.load %arg4[%c0_19, %c0_20] : memref<32x4xf32, #tpu.memory_space<smem>>
    %63 = vector.broadcast %62 : f32 to vector<16x128xf32>
    %64 = arith.mulf %63, %61 : vector<16x128xf32>
    %c0_21 = arith.constant 0 : index
    %c1_22 = arith.constant 1 : index
    %65 = memref.load %arg4[%c0_21, %c1_22] : memref<32x4xf32, #tpu.memory_space<smem>>
    %66 = vector.broadcast %65 : f32 to vector<16x128xf32>
    %67 = arith.mulf %66, %61 : vector<16x128xf32>
    %c0_23 = arith.constant 0 : index
    %c2_24 = arith.constant 2 : index
    %68 = memref.load %arg4[%c0_23, %c2_24] : memref<32x4xf32, #tpu.memory_space<smem>>
    %69 = vector.broadcast %68 : f32 to vector<16x128xf32>
    %70 = arith.mulf %69, %61 : vector<16x128xf32>
    %c0_25 = arith.constant 0 : index
    %c3_26 = arith.constant 3 : index
    %71 = memref.load %arg4[%c0_25, %c3_26] : memref<32x4xf32, #tpu.memory_space<smem>>
    %72 = vector.broadcast %71 : f32 to vector<16x128xf32>
    %73 = arith.mulf %72, %61 : vector<16x128xf32>
    %c0_27 = arith.constant 0 : index
    %c1_28 = arith.constant 1 : index
    %74 = memref.load %arg2[%c0_27, %c1_28] : memref<4x32xf32, #tpu.memory_space<smem>>
    %75 = vector.broadcast %74 : f32 to vector<16x128xf32>
    %76 = arith.mulf %75, %4 : vector<16x128xf32>
    %c1_29 = arith.constant 1 : index
    %c1_30 = arith.constant 1 : index
    %77 = memref.load %arg2[%c1_29, %c1_30] : memref<4x32xf32, #tpu.memory_space<smem>>
    %78 = vector.broadcast %77 : f32 to vector<16x128xf32>
    %79 = arith.mulf %78, %7 : vector<16x128xf32>
    %80 = arith.addf %76, %79 : vector<16x128xf32>
    %c2_31 = arith.constant 2 : index
    %c1_32 = arith.constant 1 : index
    %81 = memref.load %arg2[%c2_31, %c1_32] : memref<4x32xf32, #tpu.memory_space<smem>>
    %82 = vector.broadcast %81 : f32 to vector<16x128xf32>
    %83 = arith.mulf %82, %10 : vector<16x128xf32>
    %84 = arith.addf %80, %83 : vector<16x128xf32>
    %c3_33 = arith.constant 3 : index
    %c1_34 = arith.constant 1 : index
    %85 = memref.load %arg2[%c3_33, %c1_34] : memref<4x32xf32, #tpu.memory_space<smem>>
    %86 = vector.broadcast %85 : f32 to vector<16x128xf32>
    %87 = arith.mulf %86, %13 : vector<16x128xf32>
    %88 = arith.addf %84, %87 : vector<16x128xf32>
    %c1_35 = arith.constant 1 : index
    %89 = memref.load %arg3[%c1_35] : memref<32xf32, #tpu.memory_space<smem>>
    %90 = vector.broadcast %89 : f32 to vector<16x128xf32>
    %91 = arith.addf %88, %90 : vector<16x128xf32>
    %cst_36 = arith.constant 0.000000e+00 : f32
    %92 = vector.broadcast %cst_36 : f32 to vector<16x128xf32>
    %93 = arith.cmpf ogt, %91, %92 : vector<16x128xf32>
    %cst_37 = arith.constant 1.000000e-01 : f32
    %94 = vector.broadcast %cst_37 : f32 to vector<16x128xf32>
    %95 = arith.mulf %94, %91 : vector<16x128xf32>
    %96 = arith.select %93, %91, %95 : vector<16x128xi1>, vector<16x128xf32>
    %c1_38 = arith.constant 1 : index
    %c0_39 = arith.constant 0 : index
    %97 = memref.load %arg4[%c1_38, %c0_39] : memref<32x4xf32, #tpu.memory_space<smem>>
    %98 = vector.broadcast %97 : f32 to vector<16x128xf32>
    %99 = arith.mulf %98, %96 : vector<16x128xf32>
    %100 = arith.addf %64, %99 : vector<16x128xf32>
    %c1_40 = arith.constant 1 : index
    %c1_41 = arith.constant 1 : index
    %101 = memref.load %arg4[%c1_40, %c1_41] : memref<32x4xf32, #tpu.memory_space<smem>>
    %102 = vector.broadcast %101 : f32 to vector<16x128xf32>
    %103 = arith.mulf %102, %96 : vector<16x128xf32>
    %104 = arith.addf %67, %103 : vector<16x128xf32>
    %c1_42 = arith.constant 1 : index
    %c2_43 = arith.constant 2 : index
    %105 = memref.load %arg4[%c1_42, %c2_43] : memref<32x4xf32, #tpu.memory_space<smem>>
    %106 = vector.broadcast %105 : f32 to vector<16x128xf32>
    %107 = arith.mulf %106, %96 : vector<16x128xf32>
    %108 = arith.addf %70, %107 : vector<16x128xf32>
    %c1_44 = arith.constant 1 : index
    %c3_45 = arith.constant 3 : index
    %109 = memref.load %arg4[%c1_44, %c3_45] : memref<32x4xf32, #tpu.memory_space<smem>>
    %110 = vector.broadcast %109 : f32 to vector<16x128xf32>
    %111 = arith.mulf %110, %96 : vector<16x128xf32>
    %112 = arith.addf %73, %111 : vector<16x128xf32>
    %c0_46 = arith.constant 0 : index
    %c2_47 = arith.constant 2 : index
    %113 = memref.load %arg2[%c0_46, %c2_47] : memref<4x32xf32, #tpu.memory_space<smem>>
    %114 = vector.broadcast %113 : f32 to vector<16x128xf32>
    %115 = arith.mulf %114, %4 : vector<16x128xf32>
    %c1_48 = arith.constant 1 : index
    %c2_49 = arith.constant 2 : index
    %116 = memref.load %arg2[%c1_48, %c2_49] : memref<4x32xf32, #tpu.memory_space<smem>>
    %117 = vector.broadcast %116 : f32 to vector<16x128xf32>
    %118 = arith.mulf %117, %7 : vector<16x128xf32>
    %119 = arith.addf %115, %118 : vector<16x128xf32>
    %c2_50 = arith.constant 2 : index
    %c2_51 = arith.constant 2 : index
    %120 = memref.load %arg2[%c2_50, %c2_51] : memref<4x32xf32, #tpu.memory_space<smem>>
    %121 = vector.broadcast %120 : f32 to vector<16x128xf32>
    %122 = arith.mulf %121, %10 : vector<16x128xf32>
    %123 = arith.addf %119, %122 : vector<16x128xf32>
    %c3_52 = arith.constant 3 : index
    %c2_53 = arith.constant 2 : index
    %124 = memref.load %arg2[%c3_52, %c2_53] : memref<4x32xf32, #tpu.memory_space<smem>>
    %125 = vector.broadcast %124 : f32 to vector<16x128xf32>
    %126 = arith.mulf %125, %13 : vector<16x128xf32>
    %127 = arith.addf %123, %126 : vector<16x128xf32>
    %c2_54 = arith.constant 2 : index
    %128 = memref.load %arg3[%c2_54] : memref<32xf32, #tpu.memory_space<smem>>
    %129 = vector.broadcast %128 : f32 to vector<16x128xf32>
    %130 = arith.addf %127, %129 : vector<16x128xf32>
    %cst_55 = arith.constant 0.000000e+00 : f32
    %131 = vector.broadcast %cst_55 : f32 to vector<16x128xf32>
    %132 = arith.cmpf ogt, %130, %131 : vector<16x128xf32>
    %cst_56 = arith.constant 1.000000e-01 : f32
    %133 = vector.broadcast %cst_56 : f32 to vector<16x128xf32>
    %134 = arith.mulf %133, %130 : vector<16x128xf32>
    %135 = arith.select %132, %130, %134 : vector<16x128xi1>, vector<16x128xf32>
    %c2_57 = arith.constant 2 : index
    %c0_58 = arith.constant 0 : index
    %136 = memref.load %arg4[%c2_57, %c0_58] : memref<32x4xf32, #tpu.memory_space<smem>>
    %137 = vector.broadcast %136 : f32 to vector<16x128xf32>
    %138 = arith.mulf %137, %135 : vector<16x128xf32>
    %139 = arith.addf %100, %138 : vector<16x128xf32>
    %c2_59 = arith.constant 2 : index
    %c1_60 = arith.constant 1 : index
    %140 = memref.load %arg4[%c2_59, %c1_60] : memref<32x4xf32, #tpu.memory_space<smem>>
    %141 = vector.broadcast %140 : f32 to vector<16x128xf32>
    %142 = arith.mulf %141, %135 : vector<16x128xf32>
    %143 = arith.addf %104, %142 : vector<16x128xf32>
    %c2_61 = arith.constant 2 : index
    %c2_62 = arith.constant 2 : index
    %144 = memref.load %arg4[%c2_61, %c2_62] : memref<32x4xf32, #tpu.memory_space<smem>>
    %145 = vector.broadcast %144 : f32 to vector<16x128xf32>
    %146 = arith.mulf %145, %135 : vector<16x128xf32>
    %147 = arith.addf %108, %146 : vector<16x128xf32>
    %c2_63 = arith.constant 2 : index
    %c3_64 = arith.constant 3 : index
    %148 = memref.load %arg4[%c2_63, %c3_64] : memref<32x4xf32, #tpu.memory_space<smem>>
    %149 = vector.broadcast %148 : f32 to vector<16x128xf32>
    %150 = arith.mulf %149, %135 : vector<16x128xf32>
    %151 = arith.addf %112, %150 : vector<16x128xf32>
    %c0_65 = arith.constant 0 : index
    %c3_66 = arith.constant 3 : index
    %152 = memref.load %arg2[%c0_65, %c3_66] : memref<4x32xf32, #tpu.memory_space<smem>>
    %153 = vector.broadcast %152 : f32 to vector<16x128xf32>
    %154 = arith.mulf %153, %4 : vector<16x128xf32>
    %c1_67 = arith.constant 1 : index
    %c3_68 = arith.constant 3 : index
    %155 = memref.load %arg2[%c1_67, %c3_68] : memref<4x32xf32, #tpu.memory_space<smem>>
    %156 = vector.broadcast %155 : f32 to vector<16x128xf32>
    %157 = arith.mulf %156, %7 : vector<16x128xf32>
    %158 = arith.addf %154, %157 : vector<16x128xf32>
    %c2_69 = arith.constant 2 : index
    %c3_70 = arith.constant 3 : index
    %159 = memref.load %arg2[%c2_69, %c3_70] : memref<4x32xf32, #tpu.memory_space<smem>>
    %160 = vector.broadcast %159 : f32 to vector<16x128xf32>
    %161 = arith.mulf %160, %10 : vector<16x128xf32>
    %162 = arith.addf %158, %161 : vector<16x128xf32>
    %c3_71 = arith.constant 3 : index
    %c3_72 = arith.constant 3 : index
    %163 = memref.load %arg2[%c3_71, %c3_72] : memref<4x32xf32, #tpu.memory_space<smem>>
    %164 = vector.broadcast %163 : f32 to vector<16x128xf32>
    %165 = arith.mulf %164, %13 : vector<16x128xf32>
    %166 = arith.addf %162, %165 : vector<16x128xf32>
    %c3_73 = arith.constant 3 : index
    %167 = memref.load %arg3[%c3_73] : memref<32xf32, #tpu.memory_space<smem>>
    %168 = vector.broadcast %167 : f32 to vector<16x128xf32>
    %169 = arith.addf %166, %168 : vector<16x128xf32>
    %cst_74 = arith.constant 0.000000e+00 : f32
    %170 = vector.broadcast %cst_74 : f32 to vector<16x128xf32>
    %171 = arith.cmpf ogt, %169, %170 : vector<16x128xf32>
    %cst_75 = arith.constant 1.000000e-01 : f32
    %172 = vector.broadcast %cst_75 : f32 to vector<16x128xf32>
    %173 = arith.mulf %172, %169 : vector<16x128xf32>
    %174 = arith.select %171, %169, %173 : vector<16x128xi1>, vector<16x128xf32>
    %c3_76 = arith.constant 3 : index
    %c0_77 = arith.constant 0 : index
    %175 = memref.load %arg4[%c3_76, %c0_77] : memref<32x4xf32, #tpu.memory_space<smem>>
    %176 = vector.broadcast %175 : f32 to vector<16x128xf32>
    %177 = arith.mulf %176, %174 : vector<16x128xf32>
    %178 = arith.addf %139, %177 : vector<16x128xf32>
    %c3_78 = arith.constant 3 : index
    %c1_79 = arith.constant 1 : index
    %179 = memref.load %arg4[%c3_78, %c1_79] : memref<32x4xf32, #tpu.memory_space<smem>>
    %180 = vector.broadcast %179 : f32 to vector<16x128xf32>
    %181 = arith.mulf %180, %174 : vector<16x128xf32>
    %182 = arith.addf %143, %181 : vector<16x128xf32>
    %c3_80 = arith.constant 3 : index
    %c2_81 = arith.constant 2 : index
    %183 = memref.load %arg4[%c3_80, %c2_81] : memref<32x4xf32, #tpu.memory_space<smem>>
    %184 = vector.broadcast %183 : f32 to vector<16x128xf32>
    %185 = arith.mulf %184, %174 : vector<16x128xf32>
    %186 = arith.addf %147, %185 : vector<16x128xf32>
    %c3_82 = arith.constant 3 : index
    %c3_83 = arith.constant 3 : index
    %187 = memref.load %arg4[%c3_82, %c3_83] : memref<32x4xf32, #tpu.memory_space<smem>>
    %188 = vector.broadcast %187 : f32 to vector<16x128xf32>
    %189 = arith.mulf %188, %174 : vector<16x128xf32>
    %190 = arith.addf %151, %189 : vector<16x128xf32>
    %c0_84 = arith.constant 0 : index
    %c4 = arith.constant 4 : index
    %191 = memref.load %arg2[%c0_84, %c4] : memref<4x32xf32, #tpu.memory_space<smem>>
    %192 = vector.broadcast %191 : f32 to vector<16x128xf32>
    %193 = arith.mulf %192, %4 : vector<16x128xf32>
    %c1_85 = arith.constant 1 : index
    %c4_86 = arith.constant 4 : index
    %194 = memref.load %arg2[%c1_85, %c4_86] : memref<4x32xf32, #tpu.memory_space<smem>>
    %195 = vector.broadcast %194 : f32 to vector<16x128xf32>
    %196 = arith.mulf %195, %7 : vector<16x128xf32>
    %197 = arith.addf %193, %196 : vector<16x128xf32>
    %c2_87 = arith.constant 2 : index
    %c4_88 = arith.constant 4 : index
    %198 = memref.load %arg2[%c2_87, %c4_88] : memref<4x32xf32, #tpu.memory_space<smem>>
    %199 = vector.broadcast %198 : f32 to vector<16x128xf32>
    %200 = arith.mulf %199, %10 : vector<16x128xf32>
    %201 = arith.addf %197, %200 : vector<16x128xf32>
    %c3_89 = arith.constant 3 : index
    %c4_90 = arith.constant 4 : index
    %202 = memref.load %arg2[%c3_89, %c4_90] : memref<4x32xf32, #tpu.memory_space<smem>>
    %203 = vector.broadcast %202 : f32 to vector<16x128xf32>
    %204 = arith.mulf %203, %13 : vector<16x128xf32>
    %205 = arith.addf %201, %204 : vector<16x128xf32>
    %c4_91 = arith.constant 4 : index
    %206 = memref.load %arg3[%c4_91] : memref<32xf32, #tpu.memory_space<smem>>
    %207 = vector.broadcast %206 : f32 to vector<16x128xf32>
    %208 = arith.addf %205, %207 : vector<16x128xf32>
    %cst_92 = arith.constant 0.000000e+00 : f32
    %209 = vector.broadcast %cst_92 : f32 to vector<16x128xf32>
    %210 = arith.cmpf ogt, %208, %209 : vector<16x128xf32>
    %cst_93 = arith.constant 1.000000e-01 : f32
    %211 = vector.broadcast %cst_93 : f32 to vector<16x128xf32>
    %212 = arith.mulf %211, %208 : vector<16x128xf32>
    %213 = arith.select %210, %208, %212 : vector<16x128xi1>, vector<16x128xf32>
    %c4_94 = arith.constant 4 : index
    %c0_95 = arith.constant 0 : index
    %214 = memref.load %arg4[%c4_94, %c0_95] : memref<32x4xf32, #tpu.memory_space<smem>>
    %215 = vector.broadcast %214 : f32 to vector<16x128xf32>
    %216 = arith.mulf %215, %213 : vector<16x128xf32>
    %217 = arith.addf %178, %216 : vector<16x128xf32>
    %c4_96 = arith.constant 4 : index
    %c1_97 = arith.constant 1 : index
    %218 = memref.load %arg4[%c4_96, %c1_97] : memref<32x4xf32, #tpu.memory_space<smem>>
    %219 = vector.broadcast %218 : f32 to vector<16x128xf32>
    %220 = arith.mulf %219, %213 : vector<16x128xf32>
    %221 = arith.addf %182, %220 : vector<16x128xf32>
    %c4_98 = arith.constant 4 : index
    %c2_99 = arith.constant 2 : index
    %222 = memref.load %arg4[%c4_98, %c2_99] : memref<32x4xf32, #tpu.memory_space<smem>>
    %223 = vector.broadcast %222 : f32 to vector<16x128xf32>
    %224 = arith.mulf %223, %213 : vector<16x128xf32>
    %225 = arith.addf %186, %224 : vector<16x128xf32>
    %c4_100 = arith.constant 4 : index
    %c3_101 = arith.constant 3 : index
    %226 = memref.load %arg4[%c4_100, %c3_101] : memref<32x4xf32, #tpu.memory_space<smem>>
    %227 = vector.broadcast %226 : f32 to vector<16x128xf32>
    %228 = arith.mulf %227, %213 : vector<16x128xf32>
    %229 = arith.addf %190, %228 : vector<16x128xf32>
    %c0_102 = arith.constant 0 : index
    %c5 = arith.constant 5 : index
    %230 = memref.load %arg2[%c0_102, %c5] : memref<4x32xf32, #tpu.memory_space<smem>>
    %231 = vector.broadcast %230 : f32 to vector<16x128xf32>
    %232 = arith.mulf %231, %4 : vector<16x128xf32>
    %c1_103 = arith.constant 1 : index
    %c5_104 = arith.constant 5 : index
    %233 = memref.load %arg2[%c1_103, %c5_104] : memref<4x32xf32, #tpu.memory_space<smem>>
    %234 = vector.broadcast %233 : f32 to vector<16x128xf32>
    %235 = arith.mulf %234, %7 : vector<16x128xf32>
    %236 = arith.addf %232, %235 : vector<16x128xf32>
    %c2_105 = arith.constant 2 : index
    %c5_106 = arith.constant 5 : index
    %237 = memref.load %arg2[%c2_105, %c5_106] : memref<4x32xf32, #tpu.memory_space<smem>>
    %238 = vector.broadcast %237 : f32 to vector<16x128xf32>
    %239 = arith.mulf %238, %10 : vector<16x128xf32>
    %240 = arith.addf %236, %239 : vector<16x128xf32>
    %c3_107 = arith.constant 3 : index
    %c5_108 = arith.constant 5 : index
    %241 = memref.load %arg2[%c3_107, %c5_108] : memref<4x32xf32, #tpu.memory_space<smem>>
    %242 = vector.broadcast %241 : f32 to vector<16x128xf32>
    %243 = arith.mulf %242, %13 : vector<16x128xf32>
    %244 = arith.addf %240, %243 : vector<16x128xf32>
    %c5_109 = arith.constant 5 : index
    %245 = memref.load %arg3[%c5_109] : memref<32xf32, #tpu.memory_space<smem>>
    %246 = vector.broadcast %245 : f32 to vector<16x128xf32>
    %247 = arith.addf %244, %246 : vector<16x128xf32>
    %cst_110 = arith.constant 0.000000e+00 : f32
    %248 = vector.broadcast %cst_110 : f32 to vector<16x128xf32>
    %249 = arith.cmpf ogt, %247, %248 : vector<16x128xf32>
    %cst_111 = arith.constant 1.000000e-01 : f32
    %250 = vector.broadcast %cst_111 : f32 to vector<16x128xf32>
    %251 = arith.mulf %250, %247 : vector<16x128xf32>
    %252 = arith.select %249, %247, %251 : vector<16x128xi1>, vector<16x128xf32>
    %c5_112 = arith.constant 5 : index
    %c0_113 = arith.constant 0 : index
    %253 = memref.load %arg4[%c5_112, %c0_113] : memref<32x4xf32, #tpu.memory_space<smem>>
    %254 = vector.broadcast %253 : f32 to vector<16x128xf32>
    %255 = arith.mulf %254, %252 : vector<16x128xf32>
    %256 = arith.addf %217, %255 : vector<16x128xf32>
    %c5_114 = arith.constant 5 : index
    %c1_115 = arith.constant 1 : index
    %257 = memref.load %arg4[%c5_114, %c1_115] : memref<32x4xf32, #tpu.memory_space<smem>>
    %258 = vector.broadcast %257 : f32 to vector<16x128xf32>
    %259 = arith.mulf %258, %252 : vector<16x128xf32>
    %260 = arith.addf %221, %259 : vector<16x128xf32>
    %c5_116 = arith.constant 5 : index
    %c2_117 = arith.constant 2 : index
    %261 = memref.load %arg4[%c5_116, %c2_117] : memref<32x4xf32, #tpu.memory_space<smem>>
    %262 = vector.broadcast %261 : f32 to vector<16x128xf32>
    %263 = arith.mulf %262, %252 : vector<16x128xf32>
    %264 = arith.addf %225, %263 : vector<16x128xf32>
    %c5_118 = arith.constant 5 : index
    %c3_119 = arith.constant 3 : index
    %265 = memref.load %arg4[%c5_118, %c3_119] : memref<32x4xf32, #tpu.memory_space<smem>>
    %266 = vector.broadcast %265 : f32 to vector<16x128xf32>
    %267 = arith.mulf %266, %252 : vector<16x128xf32>
    %268 = arith.addf %229, %267 : vector<16x128xf32>
    %c0_120 = arith.constant 0 : index
    %c6 = arith.constant 6 : index
    %269 = memref.load %arg2[%c0_120, %c6] : memref<4x32xf32, #tpu.memory_space<smem>>
    %270 = vector.broadcast %269 : f32 to vector<16x128xf32>
    %271 = arith.mulf %270, %4 : vector<16x128xf32>
    %c1_121 = arith.constant 1 : index
    %c6_122 = arith.constant 6 : index
    %272 = memref.load %arg2[%c1_121, %c6_122] : memref<4x32xf32, #tpu.memory_space<smem>>
    %273 = vector.broadcast %272 : f32 to vector<16x128xf32>
    %274 = arith.mulf %273, %7 : vector<16x128xf32>
    %275 = arith.addf %271, %274 : vector<16x128xf32>
    %c2_123 = arith.constant 2 : index
    %c6_124 = arith.constant 6 : index
    %276 = memref.load %arg2[%c2_123, %c6_124] : memref<4x32xf32, #tpu.memory_space<smem>>
    %277 = vector.broadcast %276 : f32 to vector<16x128xf32>
    %278 = arith.mulf %277, %10 : vector<16x128xf32>
    %279 = arith.addf %275, %278 : vector<16x128xf32>
    %c3_125 = arith.constant 3 : index
    %c6_126 = arith.constant 6 : index
    %280 = memref.load %arg2[%c3_125, %c6_126] : memref<4x32xf32, #tpu.memory_space<smem>>
    %281 = vector.broadcast %280 : f32 to vector<16x128xf32>
    %282 = arith.mulf %281, %13 : vector<16x128xf32>
    %283 = arith.addf %279, %282 : vector<16x128xf32>
    %c6_127 = arith.constant 6 : index
    %284 = memref.load %arg3[%c6_127] : memref<32xf32, #tpu.memory_space<smem>>
    %285 = vector.broadcast %284 : f32 to vector<16x128xf32>
    %286 = arith.addf %283, %285 : vector<16x128xf32>
    %cst_128 = arith.constant 0.000000e+00 : f32
    %287 = vector.broadcast %cst_128 : f32 to vector<16x128xf32>
    %288 = arith.cmpf ogt, %286, %287 : vector<16x128xf32>
    %cst_129 = arith.constant 1.000000e-01 : f32
    %289 = vector.broadcast %cst_129 : f32 to vector<16x128xf32>
    %290 = arith.mulf %289, %286 : vector<16x128xf32>
    %291 = arith.select %288, %286, %290 : vector<16x128xi1>, vector<16x128xf32>
    %c6_130 = arith.constant 6 : index
    %c0_131 = arith.constant 0 : index
    %292 = memref.load %arg4[%c6_130, %c0_131] : memref<32x4xf32, #tpu.memory_space<smem>>
    %293 = vector.broadcast %292 : f32 to vector<16x128xf32>
    %294 = arith.mulf %293, %291 : vector<16x128xf32>
    %295 = arith.addf %256, %294 : vector<16x128xf32>
    %c6_132 = arith.constant 6 : index
    %c1_133 = arith.constant 1 : index
    %296 = memref.load %arg4[%c6_132, %c1_133] : memref<32x4xf32, #tpu.memory_space<smem>>
    %297 = vector.broadcast %296 : f32 to vector<16x128xf32>
    %298 = arith.mulf %297, %291 : vector<16x128xf32>
    %299 = arith.addf %260, %298 : vector<16x128xf32>
    %c6_134 = arith.constant 6 : index
    %c2_135 = arith.constant 2 : index
    %300 = memref.load %arg4[%c6_134, %c2_135] : memref<32x4xf32, #tpu.memory_space<smem>>
    %301 = vector.broadcast %300 : f32 to vector<16x128xf32>
    %302 = arith.mulf %301, %291 : vector<16x128xf32>
    %303 = arith.addf %264, %302 : vector<16x128xf32>
    %c6_136 = arith.constant 6 : index
    %c3_137 = arith.constant 3 : index
    %304 = memref.load %arg4[%c6_136, %c3_137] : memref<32x4xf32, #tpu.memory_space<smem>>
    %305 = vector.broadcast %304 : f32 to vector<16x128xf32>
    %306 = arith.mulf %305, %291 : vector<16x128xf32>
    %307 = arith.addf %268, %306 : vector<16x128xf32>
    %c0_138 = arith.constant 0 : index
    %c7 = arith.constant 7 : index
    %308 = memref.load %arg2[%c0_138, %c7] : memref<4x32xf32, #tpu.memory_space<smem>>
    %309 = vector.broadcast %308 : f32 to vector<16x128xf32>
    %310 = arith.mulf %309, %4 : vector<16x128xf32>
    %c1_139 = arith.constant 1 : index
    %c7_140 = arith.constant 7 : index
    %311 = memref.load %arg2[%c1_139, %c7_140] : memref<4x32xf32, #tpu.memory_space<smem>>
    %312 = vector.broadcast %311 : f32 to vector<16x128xf32>
    %313 = arith.mulf %312, %7 : vector<16x128xf32>
    %314 = arith.addf %310, %313 : vector<16x128xf32>
    %c2_141 = arith.constant 2 : index
    %c7_142 = arith.constant 7 : index
    %315 = memref.load %arg2[%c2_141, %c7_142] : memref<4x32xf32, #tpu.memory_space<smem>>
    %316 = vector.broadcast %315 : f32 to vector<16x128xf32>
    %317 = arith.mulf %316, %10 : vector<16x128xf32>
    %318 = arith.addf %314, %317 : vector<16x128xf32>
    %c3_143 = arith.constant 3 : index
    %c7_144 = arith.constant 7 : index
    %319 = memref.load %arg2[%c3_143, %c7_144] : memref<4x32xf32, #tpu.memory_space<smem>>
    %320 = vector.broadcast %319 : f32 to vector<16x128xf32>
    %321 = arith.mulf %320, %13 : vector<16x128xf32>
    %322 = arith.addf %318, %321 : vector<16x128xf32>
    %c7_145 = arith.constant 7 : index
    %323 = memref.load %arg3[%c7_145] : memref<32xf32, #tpu.memory_space<smem>>
    %324 = vector.broadcast %323 : f32 to vector<16x128xf32>
    %325 = arith.addf %322, %324 : vector<16x128xf32>
    %cst_146 = arith.constant 0.000000e+00 : f32
    %326 = vector.broadcast %cst_146 : f32 to vector<16x128xf32>
    %327 = arith.cmpf ogt, %325, %326 : vector<16x128xf32>
    %cst_147 = arith.constant 1.000000e-01 : f32
    %328 = vector.broadcast %cst_147 : f32 to vector<16x128xf32>
    %329 = arith.mulf %328, %325 : vector<16x128xf32>
    %330 = arith.select %327, %325, %329 : vector<16x128xi1>, vector<16x128xf32>
    %c7_148 = arith.constant 7 : index
    %c0_149 = arith.constant 0 : index
    %331 = memref.load %arg4[%c7_148, %c0_149] : memref<32x4xf32, #tpu.memory_space<smem>>
    %332 = vector.broadcast %331 : f32 to vector<16x128xf32>
    %333 = arith.mulf %332, %330 : vector<16x128xf32>
    %334 = arith.addf %295, %333 : vector<16x128xf32>
    %c7_150 = arith.constant 7 : index
    %c1_151 = arith.constant 1 : index
    %335 = memref.load %arg4[%c7_150, %c1_151] : memref<32x4xf32, #tpu.memory_space<smem>>
    %336 = vector.broadcast %335 : f32 to vector<16x128xf32>
    %337 = arith.mulf %336, %330 : vector<16x128xf32>
    %338 = arith.addf %299, %337 : vector<16x128xf32>
    %c7_152 = arith.constant 7 : index
    %c2_153 = arith.constant 2 : index
    %339 = memref.load %arg4[%c7_152, %c2_153] : memref<32x4xf32, #tpu.memory_space<smem>>
    %340 = vector.broadcast %339 : f32 to vector<16x128xf32>
    %341 = arith.mulf %340, %330 : vector<16x128xf32>
    %342 = arith.addf %303, %341 : vector<16x128xf32>
    %c7_154 = arith.constant 7 : index
    %c3_155 = arith.constant 3 : index
    %343 = memref.load %arg4[%c7_154, %c3_155] : memref<32x4xf32, #tpu.memory_space<smem>>
    %344 = vector.broadcast %343 : f32 to vector<16x128xf32>
    %345 = arith.mulf %344, %330 : vector<16x128xf32>
    %346 = arith.addf %307, %345 : vector<16x128xf32>
    %c0_156 = arith.constant 0 : index
    %c8 = arith.constant 8 : index
    %347 = memref.load %arg2[%c0_156, %c8] : memref<4x32xf32, #tpu.memory_space<smem>>
    %348 = vector.broadcast %347 : f32 to vector<16x128xf32>
    %349 = arith.mulf %348, %4 : vector<16x128xf32>
    %c1_157 = arith.constant 1 : index
    %c8_158 = arith.constant 8 : index
    %350 = memref.load %arg2[%c1_157, %c8_158] : memref<4x32xf32, #tpu.memory_space<smem>>
    %351 = vector.broadcast %350 : f32 to vector<16x128xf32>
    %352 = arith.mulf %351, %7 : vector<16x128xf32>
    %353 = arith.addf %349, %352 : vector<16x128xf32>
    %c2_159 = arith.constant 2 : index
    %c8_160 = arith.constant 8 : index
    %354 = memref.load %arg2[%c2_159, %c8_160] : memref<4x32xf32, #tpu.memory_space<smem>>
    %355 = vector.broadcast %354 : f32 to vector<16x128xf32>
    %356 = arith.mulf %355, %10 : vector<16x128xf32>
    %357 = arith.addf %353, %356 : vector<16x128xf32>
    %c3_161 = arith.constant 3 : index
    %c8_162 = arith.constant 8 : index
    %358 = memref.load %arg2[%c3_161, %c8_162] : memref<4x32xf32, #tpu.memory_space<smem>>
    %359 = vector.broadcast %358 : f32 to vector<16x128xf32>
    %360 = arith.mulf %359, %13 : vector<16x128xf32>
    %361 = arith.addf %357, %360 : vector<16x128xf32>
    %c8_163 = arith.constant 8 : index
    %362 = memref.load %arg3[%c8_163] : memref<32xf32, #tpu.memory_space<smem>>
    %363 = vector.broadcast %362 : f32 to vector<16x128xf32>
    %364 = arith.addf %361, %363 : vector<16x128xf32>
    %cst_164 = arith.constant 0.000000e+00 : f32
    %365 = vector.broadcast %cst_164 : f32 to vector<16x128xf32>
    %366 = arith.cmpf ogt, %364, %365 : vector<16x128xf32>
    %cst_165 = arith.constant 1.000000e-01 : f32
    %367 = vector.broadcast %cst_165 : f32 to vector<16x128xf32>
    %368 = arith.mulf %367, %364 : vector<16x128xf32>
    %369 = arith.select %366, %364, %368 : vector<16x128xi1>, vector<16x128xf32>
    %c8_166 = arith.constant 8 : index
    %c0_167 = arith.constant 0 : index
    %370 = memref.load %arg4[%c8_166, %c0_167] : memref<32x4xf32, #tpu.memory_space<smem>>
    %371 = vector.broadcast %370 : f32 to vector<16x128xf32>
    %372 = arith.mulf %371, %369 : vector<16x128xf32>
    %373 = arith.addf %334, %372 : vector<16x128xf32>
    %c8_168 = arith.constant 8 : index
    %c1_169 = arith.constant 1 : index
    %374 = memref.load %arg4[%c8_168, %c1_169] : memref<32x4xf32, #tpu.memory_space<smem>>
    %375 = vector.broadcast %374 : f32 to vector<16x128xf32>
    %376 = arith.mulf %375, %369 : vector<16x128xf32>
    %377 = arith.addf %338, %376 : vector<16x128xf32>
    %c8_170 = arith.constant 8 : index
    %c2_171 = arith.constant 2 : index
    %378 = memref.load %arg4[%c8_170, %c2_171] : memref<32x4xf32, #tpu.memory_space<smem>>
    %379 = vector.broadcast %378 : f32 to vector<16x128xf32>
    %380 = arith.mulf %379, %369 : vector<16x128xf32>
    %381 = arith.addf %342, %380 : vector<16x128xf32>
    %c8_172 = arith.constant 8 : index
    %c3_173 = arith.constant 3 : index
    %382 = memref.load %arg4[%c8_172, %c3_173] : memref<32x4xf32, #tpu.memory_space<smem>>
    %383 = vector.broadcast %382 : f32 to vector<16x128xf32>
    %384 = arith.mulf %383, %369 : vector<16x128xf32>
    %385 = arith.addf %346, %384 : vector<16x128xf32>
    %c0_174 = arith.constant 0 : index
    %c9 = arith.constant 9 : index
    %386 = memref.load %arg2[%c0_174, %c9] : memref<4x32xf32, #tpu.memory_space<smem>>
    %387 = vector.broadcast %386 : f32 to vector<16x128xf32>
    %388 = arith.mulf %387, %4 : vector<16x128xf32>
    %c1_175 = arith.constant 1 : index
    %c9_176 = arith.constant 9 : index
    %389 = memref.load %arg2[%c1_175, %c9_176] : memref<4x32xf32, #tpu.memory_space<smem>>
    %390 = vector.broadcast %389 : f32 to vector<16x128xf32>
    %391 = arith.mulf %390, %7 : vector<16x128xf32>
    %392 = arith.addf %388, %391 : vector<16x128xf32>
    %c2_177 = arith.constant 2 : index
    %c9_178 = arith.constant 9 : index
    %393 = memref.load %arg2[%c2_177, %c9_178] : memref<4x32xf32, #tpu.memory_space<smem>>
    %394 = vector.broadcast %393 : f32 to vector<16x128xf32>
    %395 = arith.mulf %394, %10 : vector<16x128xf32>
    %396 = arith.addf %392, %395 : vector<16x128xf32>
    %c3_179 = arith.constant 3 : index
    %c9_180 = arith.constant 9 : index
    %397 = memref.load %arg2[%c3_179, %c9_180] : memref<4x32xf32, #tpu.memory_space<smem>>
    %398 = vector.broadcast %397 : f32 to vector<16x128xf32>
    %399 = arith.mulf %398, %13 : vector<16x128xf32>
    %400 = arith.addf %396, %399 : vector<16x128xf32>
    %c9_181 = arith.constant 9 : index
    %401 = memref.load %arg3[%c9_181] : memref<32xf32, #tpu.memory_space<smem>>
    %402 = vector.broadcast %401 : f32 to vector<16x128xf32>
    %403 = arith.addf %400, %402 : vector<16x128xf32>
    %cst_182 = arith.constant 0.000000e+00 : f32
    %404 = vector.broadcast %cst_182 : f32 to vector<16x128xf32>
    %405 = arith.cmpf ogt, %403, %404 : vector<16x128xf32>
    %cst_183 = arith.constant 1.000000e-01 : f32
    %406 = vector.broadcast %cst_183 : f32 to vector<16x128xf32>
    %407 = arith.mulf %406, %403 : vector<16x128xf32>
    %408 = arith.select %405, %403, %407 : vector<16x128xi1>, vector<16x128xf32>
    %c9_184 = arith.constant 9 : index
    %c0_185 = arith.constant 0 : index
    %409 = memref.load %arg4[%c9_184, %c0_185] : memref<32x4xf32, #tpu.memory_space<smem>>
    %410 = vector.broadcast %409 : f32 to vector<16x128xf32>
    %411 = arith.mulf %410, %408 : vector<16x128xf32>
    %412 = arith.addf %373, %411 : vector<16x128xf32>
    %c9_186 = arith.constant 9 : index
    %c1_187 = arith.constant 1 : index
    %413 = memref.load %arg4[%c9_186, %c1_187] : memref<32x4xf32, #tpu.memory_space<smem>>
    %414 = vector.broadcast %413 : f32 to vector<16x128xf32>
    %415 = arith.mulf %414, %408 : vector<16x128xf32>
    %416 = arith.addf %377, %415 : vector<16x128xf32>
    %c9_188 = arith.constant 9 : index
    %c2_189 = arith.constant 2 : index
    %417 = memref.load %arg4[%c9_188, %c2_189] : memref<32x4xf32, #tpu.memory_space<smem>>
    %418 = vector.broadcast %417 : f32 to vector<16x128xf32>
    %419 = arith.mulf %418, %408 : vector<16x128xf32>
    %420 = arith.addf %381, %419 : vector<16x128xf32>
    %c9_190 = arith.constant 9 : index
    %c3_191 = arith.constant 3 : index
    %421 = memref.load %arg4[%c9_190, %c3_191] : memref<32x4xf32, #tpu.memory_space<smem>>
    %422 = vector.broadcast %421 : f32 to vector<16x128xf32>
    %423 = arith.mulf %422, %408 : vector<16x128xf32>
    %424 = arith.addf %385, %423 : vector<16x128xf32>
    %c0_192 = arith.constant 0 : index
    %c10 = arith.constant 10 : index
    %425 = memref.load %arg2[%c0_192, %c10] : memref<4x32xf32, #tpu.memory_space<smem>>
    %426 = vector.broadcast %425 : f32 to vector<16x128xf32>
    %427 = arith.mulf %426, %4 : vector<16x128xf32>
    %c1_193 = arith.constant 1 : index
    %c10_194 = arith.constant 10 : index
    %428 = memref.load %arg2[%c1_193, %c10_194] : memref<4x32xf32, #tpu.memory_space<smem>>
    %429 = vector.broadcast %428 : f32 to vector<16x128xf32>
    %430 = arith.mulf %429, %7 : vector<16x128xf32>
    %431 = arith.addf %427, %430 : vector<16x128xf32>
    %c2_195 = arith.constant 2 : index
    %c10_196 = arith.constant 10 : index
    %432 = memref.load %arg2[%c2_195, %c10_196] : memref<4x32xf32, #tpu.memory_space<smem>>
    %433 = vector.broadcast %432 : f32 to vector<16x128xf32>
    %434 = arith.mulf %433, %10 : vector<16x128xf32>
    %435 = arith.addf %431, %434 : vector<16x128xf32>
    %c3_197 = arith.constant 3 : index
    %c10_198 = arith.constant 10 : index
    %436 = memref.load %arg2[%c3_197, %c10_198] : memref<4x32xf32, #tpu.memory_space<smem>>
    %437 = vector.broadcast %436 : f32 to vector<16x128xf32>
    %438 = arith.mulf %437, %13 : vector<16x128xf32>
    %439 = arith.addf %435, %438 : vector<16x128xf32>
    %c10_199 = arith.constant 10 : index
    %440 = memref.load %arg3[%c10_199] : memref<32xf32, #tpu.memory_space<smem>>
    %441 = vector.broadcast %440 : f32 to vector<16x128xf32>
    %442 = arith.addf %439, %441 : vector<16x128xf32>
    %cst_200 = arith.constant 0.000000e+00 : f32
    %443 = vector.broadcast %cst_200 : f32 to vector<16x128xf32>
    %444 = arith.cmpf ogt, %442, %443 : vector<16x128xf32>
    %cst_201 = arith.constant 1.000000e-01 : f32
    %445 = vector.broadcast %cst_201 : f32 to vector<16x128xf32>
    %446 = arith.mulf %445, %442 : vector<16x128xf32>
    %447 = arith.select %444, %442, %446 : vector<16x128xi1>, vector<16x128xf32>
    %c10_202 = arith.constant 10 : index
    %c0_203 = arith.constant 0 : index
    %448 = memref.load %arg4[%c10_202, %c0_203] : memref<32x4xf32, #tpu.memory_space<smem>>
    %449 = vector.broadcast %448 : f32 to vector<16x128xf32>
    %450 = arith.mulf %449, %447 : vector<16x128xf32>
    %451 = arith.addf %412, %450 : vector<16x128xf32>
    %c10_204 = arith.constant 10 : index
    %c1_205 = arith.constant 1 : index
    %452 = memref.load %arg4[%c10_204, %c1_205] : memref<32x4xf32, #tpu.memory_space<smem>>
    %453 = vector.broadcast %452 : f32 to vector<16x128xf32>
    %454 = arith.mulf %453, %447 : vector<16x128xf32>
    %455 = arith.addf %416, %454 : vector<16x128xf32>
    %c10_206 = arith.constant 10 : index
    %c2_207 = arith.constant 2 : index
    %456 = memref.load %arg4[%c10_206, %c2_207] : memref<32x4xf32, #tpu.memory_space<smem>>
    %457 = vector.broadcast %456 : f32 to vector<16x128xf32>
    %458 = arith.mulf %457, %447 : vector<16x128xf32>
    %459 = arith.addf %420, %458 : vector<16x128xf32>
    %c10_208 = arith.constant 10 : index
    %c3_209 = arith.constant 3 : index
    %460 = memref.load %arg4[%c10_208, %c3_209] : memref<32x4xf32, #tpu.memory_space<smem>>
    %461 = vector.broadcast %460 : f32 to vector<16x128xf32>
    %462 = arith.mulf %461, %447 : vector<16x128xf32>
    %463 = arith.addf %424, %462 : vector<16x128xf32>
    %c0_210 = arith.constant 0 : index
    %c11 = arith.constant 11 : index
    %464 = memref.load %arg2[%c0_210, %c11] : memref<4x32xf32, #tpu.memory_space<smem>>
    %465 = vector.broadcast %464 : f32 to vector<16x128xf32>
    %466 = arith.mulf %465, %4 : vector<16x128xf32>
    %c1_211 = arith.constant 1 : index
    %c11_212 = arith.constant 11 : index
    %467 = memref.load %arg2[%c1_211, %c11_212] : memref<4x32xf32, #tpu.memory_space<smem>>
    %468 = vector.broadcast %467 : f32 to vector<16x128xf32>
    %469 = arith.mulf %468, %7 : vector<16x128xf32>
    %470 = arith.addf %466, %469 : vector<16x128xf32>
    %c2_213 = arith.constant 2 : index
    %c11_214 = arith.constant 11 : index
    %471 = memref.load %arg2[%c2_213, %c11_214] : memref<4x32xf32, #tpu.memory_space<smem>>
    %472 = vector.broadcast %471 : f32 to vector<16x128xf32>
    %473 = arith.mulf %472, %10 : vector<16x128xf32>
    %474 = arith.addf %470, %473 : vector<16x128xf32>
    %c3_215 = arith.constant 3 : index
    %c11_216 = arith.constant 11 : index
    %475 = memref.load %arg2[%c3_215, %c11_216] : memref<4x32xf32, #tpu.memory_space<smem>>
    %476 = vector.broadcast %475 : f32 to vector<16x128xf32>
    %477 = arith.mulf %476, %13 : vector<16x128xf32>
    %478 = arith.addf %474, %477 : vector<16x128xf32>
    %c11_217 = arith.constant 11 : index
    %479 = memref.load %arg3[%c11_217] : memref<32xf32, #tpu.memory_space<smem>>
    %480 = vector.broadcast %479 : f32 to vector<16x128xf32>
    %481 = arith.addf %478, %480 : vector<16x128xf32>
    %cst_218 = arith.constant 0.000000e+00 : f32
    %482 = vector.broadcast %cst_218 : f32 to vector<16x128xf32>
    %483 = arith.cmpf ogt, %481, %482 : vector<16x128xf32>
    %cst_219 = arith.constant 1.000000e-01 : f32
    %484 = vector.broadcast %cst_219 : f32 to vector<16x128xf32>
    %485 = arith.mulf %484, %481 : vector<16x128xf32>
    %486 = arith.select %483, %481, %485 : vector<16x128xi1>, vector<16x128xf32>
    %c11_220 = arith.constant 11 : index
    %c0_221 = arith.constant 0 : index
    %487 = memref.load %arg4[%c11_220, %c0_221] : memref<32x4xf32, #tpu.memory_space<smem>>
    %488 = vector.broadcast %487 : f32 to vector<16x128xf32>
    %489 = arith.mulf %488, %486 : vector<16x128xf32>
    %490 = arith.addf %451, %489 : vector<16x128xf32>
    %c11_222 = arith.constant 11 : index
    %c1_223 = arith.constant 1 : index
    %491 = memref.load %arg4[%c11_222, %c1_223] : memref<32x4xf32, #tpu.memory_space<smem>>
    %492 = vector.broadcast %491 : f32 to vector<16x128xf32>
    %493 = arith.mulf %492, %486 : vector<16x128xf32>
    %494 = arith.addf %455, %493 : vector<16x128xf32>
    %c11_224 = arith.constant 11 : index
    %c2_225 = arith.constant 2 : index
    %495 = memref.load %arg4[%c11_224, %c2_225] : memref<32x4xf32, #tpu.memory_space<smem>>
    %496 = vector.broadcast %495 : f32 to vector<16x128xf32>
    %497 = arith.mulf %496, %486 : vector<16x128xf32>
    %498 = arith.addf %459, %497 : vector<16x128xf32>
    %c11_226 = arith.constant 11 : index
    %c3_227 = arith.constant 3 : index
    %499 = memref.load %arg4[%c11_226, %c3_227] : memref<32x4xf32, #tpu.memory_space<smem>>
    %500 = vector.broadcast %499 : f32 to vector<16x128xf32>
    %501 = arith.mulf %500, %486 : vector<16x128xf32>
    %502 = arith.addf %463, %501 : vector<16x128xf32>
    %c0_228 = arith.constant 0 : index
    %c12 = arith.constant 12 : index
    %503 = memref.load %arg2[%c0_228, %c12] : memref<4x32xf32, #tpu.memory_space<smem>>
    %504 = vector.broadcast %503 : f32 to vector<16x128xf32>
    %505 = arith.mulf %504, %4 : vector<16x128xf32>
    %c1_229 = arith.constant 1 : index
    %c12_230 = arith.constant 12 : index
    %506 = memref.load %arg2[%c1_229, %c12_230] : memref<4x32xf32, #tpu.memory_space<smem>>
    %507 = vector.broadcast %506 : f32 to vector<16x128xf32>
    %508 = arith.mulf %507, %7 : vector<16x128xf32>
    %509 = arith.addf %505, %508 : vector<16x128xf32>
    %c2_231 = arith.constant 2 : index
    %c12_232 = arith.constant 12 : index
    %510 = memref.load %arg2[%c2_231, %c12_232] : memref<4x32xf32, #tpu.memory_space<smem>>
    %511 = vector.broadcast %510 : f32 to vector<16x128xf32>
    %512 = arith.mulf %511, %10 : vector<16x128xf32>
    %513 = arith.addf %509, %512 : vector<16x128xf32>
    %c3_233 = arith.constant 3 : index
    %c12_234 = arith.constant 12 : index
    %514 = memref.load %arg2[%c3_233, %c12_234] : memref<4x32xf32, #tpu.memory_space<smem>>
    %515 = vector.broadcast %514 : f32 to vector<16x128xf32>
    %516 = arith.mulf %515, %13 : vector<16x128xf32>
    %517 = arith.addf %513, %516 : vector<16x128xf32>
    %c12_235 = arith.constant 12 : index
    %518 = memref.load %arg3[%c12_235] : memref<32xf32, #tpu.memory_space<smem>>
    %519 = vector.broadcast %518 : f32 to vector<16x128xf32>
    %520 = arith.addf %517, %519 : vector<16x128xf32>
    %cst_236 = arith.constant 0.000000e+00 : f32
    %521 = vector.broadcast %cst_236 : f32 to vector<16x128xf32>
    %522 = arith.cmpf ogt, %520, %521 : vector<16x128xf32>
    %cst_237 = arith.constant 1.000000e-01 : f32
    %523 = vector.broadcast %cst_237 : f32 to vector<16x128xf32>
    %524 = arith.mulf %523, %520 : vector<16x128xf32>
    %525 = arith.select %522, %520, %524 : vector<16x128xi1>, vector<16x128xf32>
    %c12_238 = arith.constant 12 : index
    %c0_239 = arith.constant 0 : index
    %526 = memref.load %arg4[%c12_238, %c0_239] : memref<32x4xf32, #tpu.memory_space<smem>>
    %527 = vector.broadcast %526 : f32 to vector<16x128xf32>
    %528 = arith.mulf %527, %525 : vector<16x128xf32>
    %529 = arith.addf %490, %528 : vector<16x128xf32>
    %c12_240 = arith.constant 12 : index
    %c1_241 = arith.constant 1 : index
    %530 = memref.load %arg4[%c12_240, %c1_241] : memref<32x4xf32, #tpu.memory_space<smem>>
    %531 = vector.broadcast %530 : f32 to vector<16x128xf32>
    %532 = arith.mulf %531, %525 : vector<16x128xf32>
    %533 = arith.addf %494, %532 : vector<16x128xf32>
    %c12_242 = arith.constant 12 : index
    %c2_243 = arith.constant 2 : index
    %534 = memref.load %arg4[%c12_242, %c2_243] : memref<32x4xf32, #tpu.memory_space<smem>>
    %535 = vector.broadcast %534 : f32 to vector<16x128xf32>
    %536 = arith.mulf %535, %525 : vector<16x128xf32>
    %537 = arith.addf %498, %536 : vector<16x128xf32>
    %c12_244 = arith.constant 12 : index
    %c3_245 = arith.constant 3 : index
    %538 = memref.load %arg4[%c12_244, %c3_245] : memref<32x4xf32, #tpu.memory_space<smem>>
    %539 = vector.broadcast %538 : f32 to vector<16x128xf32>
    %540 = arith.mulf %539, %525 : vector<16x128xf32>
    %541 = arith.addf %502, %540 : vector<16x128xf32>
    %c0_246 = arith.constant 0 : index
    %c13 = arith.constant 13 : index
    %542 = memref.load %arg2[%c0_246, %c13] : memref<4x32xf32, #tpu.memory_space<smem>>
    %543 = vector.broadcast %542 : f32 to vector<16x128xf32>
    %544 = arith.mulf %543, %4 : vector<16x128xf32>
    %c1_247 = arith.constant 1 : index
    %c13_248 = arith.constant 13 : index
    %545 = memref.load %arg2[%c1_247, %c13_248] : memref<4x32xf32, #tpu.memory_space<smem>>
    %546 = vector.broadcast %545 : f32 to vector<16x128xf32>
    %547 = arith.mulf %546, %7 : vector<16x128xf32>
    %548 = arith.addf %544, %547 : vector<16x128xf32>
    %c2_249 = arith.constant 2 : index
    %c13_250 = arith.constant 13 : index
    %549 = memref.load %arg2[%c2_249, %c13_250] : memref<4x32xf32, #tpu.memory_space<smem>>
    %550 = vector.broadcast %549 : f32 to vector<16x128xf32>
    %551 = arith.mulf %550, %10 : vector<16x128xf32>
    %552 = arith.addf %548, %551 : vector<16x128xf32>
    %c3_251 = arith.constant 3 : index
    %c13_252 = arith.constant 13 : index
    %553 = memref.load %arg2[%c3_251, %c13_252] : memref<4x32xf32, #tpu.memory_space<smem>>
    %554 = vector.broadcast %553 : f32 to vector<16x128xf32>
    %555 = arith.mulf %554, %13 : vector<16x128xf32>
    %556 = arith.addf %552, %555 : vector<16x128xf32>
    %c13_253 = arith.constant 13 : index
    %557 = memref.load %arg3[%c13_253] : memref<32xf32, #tpu.memory_space<smem>>
    %558 = vector.broadcast %557 : f32 to vector<16x128xf32>
    %559 = arith.addf %556, %558 : vector<16x128xf32>
    %cst_254 = arith.constant 0.000000e+00 : f32
    %560 = vector.broadcast %cst_254 : f32 to vector<16x128xf32>
    %561 = arith.cmpf ogt, %559, %560 : vector<16x128xf32>
    %cst_255 = arith.constant 1.000000e-01 : f32
    %562 = vector.broadcast %cst_255 : f32 to vector<16x128xf32>
    %563 = arith.mulf %562, %559 : vector<16x128xf32>
    %564 = arith.select %561, %559, %563 : vector<16x128xi1>, vector<16x128xf32>
    %c13_256 = arith.constant 13 : index
    %c0_257 = arith.constant 0 : index
    %565 = memref.load %arg4[%c13_256, %c0_257] : memref<32x4xf32, #tpu.memory_space<smem>>
    %566 = vector.broadcast %565 : f32 to vector<16x128xf32>
    %567 = arith.mulf %566, %564 : vector<16x128xf32>
    %568 = arith.addf %529, %567 : vector<16x128xf32>
    %c13_258 = arith.constant 13 : index
    %c1_259 = arith.constant 1 : index
    %569 = memref.load %arg4[%c13_258, %c1_259] : memref<32x4xf32, #tpu.memory_space<smem>>
    %570 = vector.broadcast %569 : f32 to vector<16x128xf32>
    %571 = arith.mulf %570, %564 : vector<16x128xf32>
    %572 = arith.addf %533, %571 : vector<16x128xf32>
    %c13_260 = arith.constant 13 : index
    %c2_261 = arith.constant 2 : index
    %573 = memref.load %arg4[%c13_260, %c2_261] : memref<32x4xf32, #tpu.memory_space<smem>>
    %574 = vector.broadcast %573 : f32 to vector<16x128xf32>
    %575 = arith.mulf %574, %564 : vector<16x128xf32>
    %576 = arith.addf %537, %575 : vector<16x128xf32>
    %c13_262 = arith.constant 13 : index
    %c3_263 = arith.constant 3 : index
    %577 = memref.load %arg4[%c13_262, %c3_263] : memref<32x4xf32, #tpu.memory_space<smem>>
    %578 = vector.broadcast %577 : f32 to vector<16x128xf32>
    %579 = arith.mulf %578, %564 : vector<16x128xf32>
    %580 = arith.addf %541, %579 : vector<16x128xf32>
    %c0_264 = arith.constant 0 : index
    %c14 = arith.constant 14 : index
    %581 = memref.load %arg2[%c0_264, %c14] : memref<4x32xf32, #tpu.memory_space<smem>>
    %582 = vector.broadcast %581 : f32 to vector<16x128xf32>
    %583 = arith.mulf %582, %4 : vector<16x128xf32>
    %c1_265 = arith.constant 1 : index
    %c14_266 = arith.constant 14 : index
    %584 = memref.load %arg2[%c1_265, %c14_266] : memref<4x32xf32, #tpu.memory_space<smem>>
    %585 = vector.broadcast %584 : f32 to vector<16x128xf32>
    %586 = arith.mulf %585, %7 : vector<16x128xf32>
    %587 = arith.addf %583, %586 : vector<16x128xf32>
    %c2_267 = arith.constant 2 : index
    %c14_268 = arith.constant 14 : index
    %588 = memref.load %arg2[%c2_267, %c14_268] : memref<4x32xf32, #tpu.memory_space<smem>>
    %589 = vector.broadcast %588 : f32 to vector<16x128xf32>
    %590 = arith.mulf %589, %10 : vector<16x128xf32>
    %591 = arith.addf %587, %590 : vector<16x128xf32>
    %c3_269 = arith.constant 3 : index
    %c14_270 = arith.constant 14 : index
    %592 = memref.load %arg2[%c3_269, %c14_270] : memref<4x32xf32, #tpu.memory_space<smem>>
    %593 = vector.broadcast %592 : f32 to vector<16x128xf32>
    %594 = arith.mulf %593, %13 : vector<16x128xf32>
    %595 = arith.addf %591, %594 : vector<16x128xf32>
    %c14_271 = arith.constant 14 : index
    %596 = memref.load %arg3[%c14_271] : memref<32xf32, #tpu.memory_space<smem>>
    %597 = vector.broadcast %596 : f32 to vector<16x128xf32>
    %598 = arith.addf %595, %597 : vector<16x128xf32>
    %cst_272 = arith.constant 0.000000e+00 : f32
    %599 = vector.broadcast %cst_272 : f32 to vector<16x128xf32>
    %600 = arith.cmpf ogt, %598, %599 : vector<16x128xf32>
    %cst_273 = arith.constant 1.000000e-01 : f32
    %601 = vector.broadcast %cst_273 : f32 to vector<16x128xf32>
    %602 = arith.mulf %601, %598 : vector<16x128xf32>
    %603 = arith.select %600, %598, %602 : vector<16x128xi1>, vector<16x128xf32>
    %c14_274 = arith.constant 14 : index
    %c0_275 = arith.constant 0 : index
    %604 = memref.load %arg4[%c14_274, %c0_275] : memref<32x4xf32, #tpu.memory_space<smem>>
    %605 = vector.broadcast %604 : f32 to vector<16x128xf32>
    %606 = arith.mulf %605, %603 : vector<16x128xf32>
    %607 = arith.addf %568, %606 : vector<16x128xf32>
    %c14_276 = arith.constant 14 : index
    %c1_277 = arith.constant 1 : index
    %608 = memref.load %arg4[%c14_276, %c1_277] : memref<32x4xf32, #tpu.memory_space<smem>>
    %609 = vector.broadcast %608 : f32 to vector<16x128xf32>
    %610 = arith.mulf %609, %603 : vector<16x128xf32>
    %611 = arith.addf %572, %610 : vector<16x128xf32>
    %c14_278 = arith.constant 14 : index
    %c2_279 = arith.constant 2 : index
    %612 = memref.load %arg4[%c14_278, %c2_279] : memref<32x4xf32, #tpu.memory_space<smem>>
    %613 = vector.broadcast %612 : f32 to vector<16x128xf32>
    %614 = arith.mulf %613, %603 : vector<16x128xf32>
    %615 = arith.addf %576, %614 : vector<16x128xf32>
    %c14_280 = arith.constant 14 : index
    %c3_281 = arith.constant 3 : index
    %616 = memref.load %arg4[%c14_280, %c3_281] : memref<32x4xf32, #tpu.memory_space<smem>>
    %617 = vector.broadcast %616 : f32 to vector<16x128xf32>
    %618 = arith.mulf %617, %603 : vector<16x128xf32>
    %619 = arith.addf %580, %618 : vector<16x128xf32>
    %c0_282 = arith.constant 0 : index
    %c15 = arith.constant 15 : index
    %620 = memref.load %arg2[%c0_282, %c15] : memref<4x32xf32, #tpu.memory_space<smem>>
    %621 = vector.broadcast %620 : f32 to vector<16x128xf32>
    %622 = arith.mulf %621, %4 : vector<16x128xf32>
    %c1_283 = arith.constant 1 : index
    %c15_284 = arith.constant 15 : index
    %623 = memref.load %arg2[%c1_283, %c15_284] : memref<4x32xf32, #tpu.memory_space<smem>>
    %624 = vector.broadcast %623 : f32 to vector<16x128xf32>
    %625 = arith.mulf %624, %7 : vector<16x128xf32>
    %626 = arith.addf %622, %625 : vector<16x128xf32>
    %c2_285 = arith.constant 2 : index
    %c15_286 = arith.constant 15 : index
    %627 = memref.load %arg2[%c2_285, %c15_286] : memref<4x32xf32, #tpu.memory_space<smem>>
    %628 = vector.broadcast %627 : f32 to vector<16x128xf32>
    %629 = arith.mulf %628, %10 : vector<16x128xf32>
    %630 = arith.addf %626, %629 : vector<16x128xf32>
    %c3_287 = arith.constant 3 : index
    %c15_288 = arith.constant 15 : index
    %631 = memref.load %arg2[%c3_287, %c15_288] : memref<4x32xf32, #tpu.memory_space<smem>>
    %632 = vector.broadcast %631 : f32 to vector<16x128xf32>
    %633 = arith.mulf %632, %13 : vector<16x128xf32>
    %634 = arith.addf %630, %633 : vector<16x128xf32>
    %c15_289 = arith.constant 15 : index
    %635 = memref.load %arg3[%c15_289] : memref<32xf32, #tpu.memory_space<smem>>
    %636 = vector.broadcast %635 : f32 to vector<16x128xf32>
    %637 = arith.addf %634, %636 : vector<16x128xf32>
    %cst_290 = arith.constant 0.000000e+00 : f32
    %638 = vector.broadcast %cst_290 : f32 to vector<16x128xf32>
    %639 = arith.cmpf ogt, %637, %638 : vector<16x128xf32>
    %cst_291 = arith.constant 1.000000e-01 : f32
    %640 = vector.broadcast %cst_291 : f32 to vector<16x128xf32>
    %641 = arith.mulf %640, %637 : vector<16x128xf32>
    %642 = arith.select %639, %637, %641 : vector<16x128xi1>, vector<16x128xf32>
    %c15_292 = arith.constant 15 : index
    %c0_293 = arith.constant 0 : index
    %643 = memref.load %arg4[%c15_292, %c0_293] : memref<32x4xf32, #tpu.memory_space<smem>>
    %644 = vector.broadcast %643 : f32 to vector<16x128xf32>
    %645 = arith.mulf %644, %642 : vector<16x128xf32>
    %646 = arith.addf %607, %645 : vector<16x128xf32>
    %c15_294 = arith.constant 15 : index
    %c1_295 = arith.constant 1 : index
    %647 = memref.load %arg4[%c15_294, %c1_295] : memref<32x4xf32, #tpu.memory_space<smem>>
    %648 = vector.broadcast %647 : f32 to vector<16x128xf32>
    %649 = arith.mulf %648, %642 : vector<16x128xf32>
    %650 = arith.addf %611, %649 : vector<16x128xf32>
    %c15_296 = arith.constant 15 : index
    %c2_297 = arith.constant 2 : index
    %651 = memref.load %arg4[%c15_296, %c2_297] : memref<32x4xf32, #tpu.memory_space<smem>>
    %652 = vector.broadcast %651 : f32 to vector<16x128xf32>
    %653 = arith.mulf %652, %642 : vector<16x128xf32>
    %654 = arith.addf %615, %653 : vector<16x128xf32>
    %c15_298 = arith.constant 15 : index
    %c3_299 = arith.constant 3 : index
    %655 = memref.load %arg4[%c15_298, %c3_299] : memref<32x4xf32, #tpu.memory_space<smem>>
    %656 = vector.broadcast %655 : f32 to vector<16x128xf32>
    %657 = arith.mulf %656, %642 : vector<16x128xf32>
    %658 = arith.addf %619, %657 : vector<16x128xf32>
    %c0_300 = arith.constant 0 : index
    %c16 = arith.constant 16 : index
    %659 = memref.load %arg2[%c0_300, %c16] : memref<4x32xf32, #tpu.memory_space<smem>>
    %660 = vector.broadcast %659 : f32 to vector<16x128xf32>
    %661 = arith.mulf %660, %4 : vector<16x128xf32>
    %c1_301 = arith.constant 1 : index
    %c16_302 = arith.constant 16 : index
    %662 = memref.load %arg2[%c1_301, %c16_302] : memref<4x32xf32, #tpu.memory_space<smem>>
    %663 = vector.broadcast %662 : f32 to vector<16x128xf32>
    %664 = arith.mulf %663, %7 : vector<16x128xf32>
    %665 = arith.addf %661, %664 : vector<16x128xf32>
    %c2_303 = arith.constant 2 : index
    %c16_304 = arith.constant 16 : index
    %666 = memref.load %arg2[%c2_303, %c16_304] : memref<4x32xf32, #tpu.memory_space<smem>>
    %667 = vector.broadcast %666 : f32 to vector<16x128xf32>
    %668 = arith.mulf %667, %10 : vector<16x128xf32>
    %669 = arith.addf %665, %668 : vector<16x128xf32>
    %c3_305 = arith.constant 3 : index
    %c16_306 = arith.constant 16 : index
    %670 = memref.load %arg2[%c3_305, %c16_306] : memref<4x32xf32, #tpu.memory_space<smem>>
    %671 = vector.broadcast %670 : f32 to vector<16x128xf32>
    %672 = arith.mulf %671, %13 : vector<16x128xf32>
    %673 = arith.addf %669, %672 : vector<16x128xf32>
    %c16_307 = arith.constant 16 : index
    %674 = memref.load %arg3[%c16_307] : memref<32xf32, #tpu.memory_space<smem>>
    %675 = vector.broadcast %674 : f32 to vector<16x128xf32>
    %676 = arith.addf %673, %675 : vector<16x128xf32>
    %cst_308 = arith.constant 0.000000e+00 : f32
    %677 = vector.broadcast %cst_308 : f32 to vector<16x128xf32>
    %678 = arith.cmpf ogt, %676, %677 : vector<16x128xf32>
    %cst_309 = arith.constant 1.000000e-01 : f32
    %679 = vector.broadcast %cst_309 : f32 to vector<16x128xf32>
    %680 = arith.mulf %679, %676 : vector<16x128xf32>
    %681 = arith.select %678, %676, %680 : vector<16x128xi1>, vector<16x128xf32>
    %c16_310 = arith.constant 16 : index
    %c0_311 = arith.constant 0 : index
    %682 = memref.load %arg4[%c16_310, %c0_311] : memref<32x4xf32, #tpu.memory_space<smem>>
    %683 = vector.broadcast %682 : f32 to vector<16x128xf32>
    %684 = arith.mulf %683, %681 : vector<16x128xf32>
    %685 = arith.addf %646, %684 : vector<16x128xf32>
    %c16_312 = arith.constant 16 : index
    %c1_313 = arith.constant 1 : index
    %686 = memref.load %arg4[%c16_312, %c1_313] : memref<32x4xf32, #tpu.memory_space<smem>>
    %687 = vector.broadcast %686 : f32 to vector<16x128xf32>
    %688 = arith.mulf %687, %681 : vector<16x128xf32>
    %689 = arith.addf %650, %688 : vector<16x128xf32>
    %c16_314 = arith.constant 16 : index
    %c2_315 = arith.constant 2 : index
    %690 = memref.load %arg4[%c16_314, %c2_315] : memref<32x4xf32, #tpu.memory_space<smem>>
    %691 = vector.broadcast %690 : f32 to vector<16x128xf32>
    %692 = arith.mulf %691, %681 : vector<16x128xf32>
    %693 = arith.addf %654, %692 : vector<16x128xf32>
    %c16_316 = arith.constant 16 : index
    %c3_317 = arith.constant 3 : index
    %694 = memref.load %arg4[%c16_316, %c3_317] : memref<32x4xf32, #tpu.memory_space<smem>>
    %695 = vector.broadcast %694 : f32 to vector<16x128xf32>
    %696 = arith.mulf %695, %681 : vector<16x128xf32>
    %697 = arith.addf %658, %696 : vector<16x128xf32>
    %c0_318 = arith.constant 0 : index
    %c17 = arith.constant 17 : index
    %698 = memref.load %arg2[%c0_318, %c17] : memref<4x32xf32, #tpu.memory_space<smem>>
    %699 = vector.broadcast %698 : f32 to vector<16x128xf32>
    %700 = arith.mulf %699, %4 : vector<16x128xf32>
    %c1_319 = arith.constant 1 : index
    %c17_320 = arith.constant 17 : index
    %701 = memref.load %arg2[%c1_319, %c17_320] : memref<4x32xf32, #tpu.memory_space<smem>>
    %702 = vector.broadcast %701 : f32 to vector<16x128xf32>
    %703 = arith.mulf %702, %7 : vector<16x128xf32>
    %704 = arith.addf %700, %703 : vector<16x128xf32>
    %c2_321 = arith.constant 2 : index
    %c17_322 = arith.constant 17 : index
    %705 = memref.load %arg2[%c2_321, %c17_322] : memref<4x32xf32, #tpu.memory_space<smem>>
    %706 = vector.broadcast %705 : f32 to vector<16x128xf32>
    %707 = arith.mulf %706, %10 : vector<16x128xf32>
    %708 = arith.addf %704, %707 : vector<16x128xf32>
    %c3_323 = arith.constant 3 : index
    %c17_324 = arith.constant 17 : index
    %709 = memref.load %arg2[%c3_323, %c17_324] : memref<4x32xf32, #tpu.memory_space<smem>>
    %710 = vector.broadcast %709 : f32 to vector<16x128xf32>
    %711 = arith.mulf %710, %13 : vector<16x128xf32>
    %712 = arith.addf %708, %711 : vector<16x128xf32>
    %c17_325 = arith.constant 17 : index
    %713 = memref.load %arg3[%c17_325] : memref<32xf32, #tpu.memory_space<smem>>
    %714 = vector.broadcast %713 : f32 to vector<16x128xf32>
    %715 = arith.addf %712, %714 : vector<16x128xf32>
    %cst_326 = arith.constant 0.000000e+00 : f32
    %716 = vector.broadcast %cst_326 : f32 to vector<16x128xf32>
    %717 = arith.cmpf ogt, %715, %716 : vector<16x128xf32>
    %cst_327 = arith.constant 1.000000e-01 : f32
    %718 = vector.broadcast %cst_327 : f32 to vector<16x128xf32>
    %719 = arith.mulf %718, %715 : vector<16x128xf32>
    %720 = arith.select %717, %715, %719 : vector<16x128xi1>, vector<16x128xf32>
    %c17_328 = arith.constant 17 : index
    %c0_329 = arith.constant 0 : index
    %721 = memref.load %arg4[%c17_328, %c0_329] : memref<32x4xf32, #tpu.memory_space<smem>>
    %722 = vector.broadcast %721 : f32 to vector<16x128xf32>
    %723 = arith.mulf %722, %720 : vector<16x128xf32>
    %724 = arith.addf %685, %723 : vector<16x128xf32>
    %c17_330 = arith.constant 17 : index
    %c1_331 = arith.constant 1 : index
    %725 = memref.load %arg4[%c17_330, %c1_331] : memref<32x4xf32, #tpu.memory_space<smem>>
    %726 = vector.broadcast %725 : f32 to vector<16x128xf32>
    %727 = arith.mulf %726, %720 : vector<16x128xf32>
    %728 = arith.addf %689, %727 : vector<16x128xf32>
    %c17_332 = arith.constant 17 : index
    %c2_333 = arith.constant 2 : index
    %729 = memref.load %arg4[%c17_332, %c2_333] : memref<32x4xf32, #tpu.memory_space<smem>>
    %730 = vector.broadcast %729 : f32 to vector<16x128xf32>
    %731 = arith.mulf %730, %720 : vector<16x128xf32>
    %732 = arith.addf %693, %731 : vector<16x128xf32>
    %c17_334 = arith.constant 17 : index
    %c3_335 = arith.constant 3 : index
    %733 = memref.load %arg4[%c17_334, %c3_335] : memref<32x4xf32, #tpu.memory_space<smem>>
    %734 = vector.broadcast %733 : f32 to vector<16x128xf32>
    %735 = arith.mulf %734, %720 : vector<16x128xf32>
    %736 = arith.addf %697, %735 : vector<16x128xf32>
    %c0_336 = arith.constant 0 : index
    %c18 = arith.constant 18 : index
    %737 = memref.load %arg2[%c0_336, %c18] : memref<4x32xf32, #tpu.memory_space<smem>>
    %738 = vector.broadcast %737 : f32 to vector<16x128xf32>
    %739 = arith.mulf %738, %4 : vector<16x128xf32>
    %c1_337 = arith.constant 1 : index
    %c18_338 = arith.constant 18 : index
    %740 = memref.load %arg2[%c1_337, %c18_338] : memref<4x32xf32, #tpu.memory_space<smem>>
    %741 = vector.broadcast %740 : f32 to vector<16x128xf32>
    %742 = arith.mulf %741, %7 : vector<16x128xf32>
    %743 = arith.addf %739, %742 : vector<16x128xf32>
    %c2_339 = arith.constant 2 : index
    %c18_340 = arith.constant 18 : index
    %744 = memref.load %arg2[%c2_339, %c18_340] : memref<4x32xf32, #tpu.memory_space<smem>>
    %745 = vector.broadcast %744 : f32 to vector<16x128xf32>
    %746 = arith.mulf %745, %10 : vector<16x128xf32>
    %747 = arith.addf %743, %746 : vector<16x128xf32>
    %c3_341 = arith.constant 3 : index
    %c18_342 = arith.constant 18 : index
    %748 = memref.load %arg2[%c3_341, %c18_342] : memref<4x32xf32, #tpu.memory_space<smem>>
    %749 = vector.broadcast %748 : f32 to vector<16x128xf32>
    %750 = arith.mulf %749, %13 : vector<16x128xf32>
    %751 = arith.addf %747, %750 : vector<16x128xf32>
    %c18_343 = arith.constant 18 : index
    %752 = memref.load %arg3[%c18_343] : memref<32xf32, #tpu.memory_space<smem>>
    %753 = vector.broadcast %752 : f32 to vector<16x128xf32>
    %754 = arith.addf %751, %753 : vector<16x128xf32>
    %cst_344 = arith.constant 0.000000e+00 : f32
    %755 = vector.broadcast %cst_344 : f32 to vector<16x128xf32>
    %756 = arith.cmpf ogt, %754, %755 : vector<16x128xf32>
    %cst_345 = arith.constant 1.000000e-01 : f32
    %757 = vector.broadcast %cst_345 : f32 to vector<16x128xf32>
    %758 = arith.mulf %757, %754 : vector<16x128xf32>
    %759 = arith.select %756, %754, %758 : vector<16x128xi1>, vector<16x128xf32>
    %c18_346 = arith.constant 18 : index
    %c0_347 = arith.constant 0 : index
    %760 = memref.load %arg4[%c18_346, %c0_347] : memref<32x4xf32, #tpu.memory_space<smem>>
    %761 = vector.broadcast %760 : f32 to vector<16x128xf32>
    %762 = arith.mulf %761, %759 : vector<16x128xf32>
    %763 = arith.addf %724, %762 : vector<16x128xf32>
    %c18_348 = arith.constant 18 : index
    %c1_349 = arith.constant 1 : index
    %764 = memref.load %arg4[%c18_348, %c1_349] : memref<32x4xf32, #tpu.memory_space<smem>>
    %765 = vector.broadcast %764 : f32 to vector<16x128xf32>
    %766 = arith.mulf %765, %759 : vector<16x128xf32>
    %767 = arith.addf %728, %766 : vector<16x128xf32>
    %c18_350 = arith.constant 18 : index
    %c2_351 = arith.constant 2 : index
    %768 = memref.load %arg4[%c18_350, %c2_351] : memref<32x4xf32, #tpu.memory_space<smem>>
    %769 = vector.broadcast %768 : f32 to vector<16x128xf32>
    %770 = arith.mulf %769, %759 : vector<16x128xf32>
    %771 = arith.addf %732, %770 : vector<16x128xf32>
    %c18_352 = arith.constant 18 : index
    %c3_353 = arith.constant 3 : index
    %772 = memref.load %arg4[%c18_352, %c3_353] : memref<32x4xf32, #tpu.memory_space<smem>>
    %773 = vector.broadcast %772 : f32 to vector<16x128xf32>
    %774 = arith.mulf %773, %759 : vector<16x128xf32>
    %775 = arith.addf %736, %774 : vector<16x128xf32>
    %c0_354 = arith.constant 0 : index
    %c19 = arith.constant 19 : index
    %776 = memref.load %arg2[%c0_354, %c19] : memref<4x32xf32, #tpu.memory_space<smem>>
    %777 = vector.broadcast %776 : f32 to vector<16x128xf32>
    %778 = arith.mulf %777, %4 : vector<16x128xf32>
    %c1_355 = arith.constant 1 : index
    %c19_356 = arith.constant 19 : index
    %779 = memref.load %arg2[%c1_355, %c19_356] : memref<4x32xf32, #tpu.memory_space<smem>>
    %780 = vector.broadcast %779 : f32 to vector<16x128xf32>
    %781 = arith.mulf %780, %7 : vector<16x128xf32>
    %782 = arith.addf %778, %781 : vector<16x128xf32>
    %c2_357 = arith.constant 2 : index
    %c19_358 = arith.constant 19 : index
    %783 = memref.load %arg2[%c2_357, %c19_358] : memref<4x32xf32, #tpu.memory_space<smem>>
    %784 = vector.broadcast %783 : f32 to vector<16x128xf32>
    %785 = arith.mulf %784, %10 : vector<16x128xf32>
    %786 = arith.addf %782, %785 : vector<16x128xf32>
    %c3_359 = arith.constant 3 : index
    %c19_360 = arith.constant 19 : index
    %787 = memref.load %arg2[%c3_359, %c19_360] : memref<4x32xf32, #tpu.memory_space<smem>>
    %788 = vector.broadcast %787 : f32 to vector<16x128xf32>
    %789 = arith.mulf %788, %13 : vector<16x128xf32>
    %790 = arith.addf %786, %789 : vector<16x128xf32>
    %c19_361 = arith.constant 19 : index
    %791 = memref.load %arg3[%c19_361] : memref<32xf32, #tpu.memory_space<smem>>
    %792 = vector.broadcast %791 : f32 to vector<16x128xf32>
    %793 = arith.addf %790, %792 : vector<16x128xf32>
    %cst_362 = arith.constant 0.000000e+00 : f32
    %794 = vector.broadcast %cst_362 : f32 to vector<16x128xf32>
    %795 = arith.cmpf ogt, %793, %794 : vector<16x128xf32>
    %cst_363 = arith.constant 1.000000e-01 : f32
    %796 = vector.broadcast %cst_363 : f32 to vector<16x128xf32>
    %797 = arith.mulf %796, %793 : vector<16x128xf32>
    %798 = arith.select %795, %793, %797 : vector<16x128xi1>, vector<16x128xf32>
    %c19_364 = arith.constant 19 : index
    %c0_365 = arith.constant 0 : index
    %799 = memref.load %arg4[%c19_364, %c0_365] : memref<32x4xf32, #tpu.memory_space<smem>>
    %800 = vector.broadcast %799 : f32 to vector<16x128xf32>
    %801 = arith.mulf %800, %798 : vector<16x128xf32>
    %802 = arith.addf %763, %801 : vector<16x128xf32>
    %c19_366 = arith.constant 19 : index
    %c1_367 = arith.constant 1 : index
    %803 = memref.load %arg4[%c19_366, %c1_367] : memref<32x4xf32, #tpu.memory_space<smem>>
    %804 = vector.broadcast %803 : f32 to vector<16x128xf32>
    %805 = arith.mulf %804, %798 : vector<16x128xf32>
    %806 = arith.addf %767, %805 : vector<16x128xf32>
    %c19_368 = arith.constant 19 : index
    %c2_369 = arith.constant 2 : index
    %807 = memref.load %arg4[%c19_368, %c2_369] : memref<32x4xf32, #tpu.memory_space<smem>>
    %808 = vector.broadcast %807 : f32 to vector<16x128xf32>
    %809 = arith.mulf %808, %798 : vector<16x128xf32>
    %810 = arith.addf %771, %809 : vector<16x128xf32>
    %c19_370 = arith.constant 19 : index
    %c3_371 = arith.constant 3 : index
    %811 = memref.load %arg4[%c19_370, %c3_371] : memref<32x4xf32, #tpu.memory_space<smem>>
    %812 = vector.broadcast %811 : f32 to vector<16x128xf32>
    %813 = arith.mulf %812, %798 : vector<16x128xf32>
    %814 = arith.addf %775, %813 : vector<16x128xf32>
    %c0_372 = arith.constant 0 : index
    %c20 = arith.constant 20 : index
    %815 = memref.load %arg2[%c0_372, %c20] : memref<4x32xf32, #tpu.memory_space<smem>>
    %816 = vector.broadcast %815 : f32 to vector<16x128xf32>
    %817 = arith.mulf %816, %4 : vector<16x128xf32>
    %c1_373 = arith.constant 1 : index
    %c20_374 = arith.constant 20 : index
    %818 = memref.load %arg2[%c1_373, %c20_374] : memref<4x32xf32, #tpu.memory_space<smem>>
    %819 = vector.broadcast %818 : f32 to vector<16x128xf32>
    %820 = arith.mulf %819, %7 : vector<16x128xf32>
    %821 = arith.addf %817, %820 : vector<16x128xf32>
    %c2_375 = arith.constant 2 : index
    %c20_376 = arith.constant 20 : index
    %822 = memref.load %arg2[%c2_375, %c20_376] : memref<4x32xf32, #tpu.memory_space<smem>>
    %823 = vector.broadcast %822 : f32 to vector<16x128xf32>
    %824 = arith.mulf %823, %10 : vector<16x128xf32>
    %825 = arith.addf %821, %824 : vector<16x128xf32>
    %c3_377 = arith.constant 3 : index
    %c20_378 = arith.constant 20 : index
    %826 = memref.load %arg2[%c3_377, %c20_378] : memref<4x32xf32, #tpu.memory_space<smem>>
    %827 = vector.broadcast %826 : f32 to vector<16x128xf32>
    %828 = arith.mulf %827, %13 : vector<16x128xf32>
    %829 = arith.addf %825, %828 : vector<16x128xf32>
    %c20_379 = arith.constant 20 : index
    %830 = memref.load %arg3[%c20_379] : memref<32xf32, #tpu.memory_space<smem>>
    %831 = vector.broadcast %830 : f32 to vector<16x128xf32>
    %832 = arith.addf %829, %831 : vector<16x128xf32>
    %cst_380 = arith.constant 0.000000e+00 : f32
    %833 = vector.broadcast %cst_380 : f32 to vector<16x128xf32>
    %834 = arith.cmpf ogt, %832, %833 : vector<16x128xf32>
    %cst_381 = arith.constant 1.000000e-01 : f32
    %835 = vector.broadcast %cst_381 : f32 to vector<16x128xf32>
    %836 = arith.mulf %835, %832 : vector<16x128xf32>
    %837 = arith.select %834, %832, %836 : vector<16x128xi1>, vector<16x128xf32>
    %c20_382 = arith.constant 20 : index
    %c0_383 = arith.constant 0 : index
    %838 = memref.load %arg4[%c20_382, %c0_383] : memref<32x4xf32, #tpu.memory_space<smem>>
    %839 = vector.broadcast %838 : f32 to vector<16x128xf32>
    %840 = arith.mulf %839, %837 : vector<16x128xf32>
    %841 = arith.addf %802, %840 : vector<16x128xf32>
    %c20_384 = arith.constant 20 : index
    %c1_385 = arith.constant 1 : index
    %842 = memref.load %arg4[%c20_384, %c1_385] : memref<32x4xf32, #tpu.memory_space<smem>>
    %843 = vector.broadcast %842 : f32 to vector<16x128xf32>
    %844 = arith.mulf %843, %837 : vector<16x128xf32>
    %845 = arith.addf %806, %844 : vector<16x128xf32>
    %c20_386 = arith.constant 20 : index
    %c2_387 = arith.constant 2 : index
    %846 = memref.load %arg4[%c20_386, %c2_387] : memref<32x4xf32, #tpu.memory_space<smem>>
    %847 = vector.broadcast %846 : f32 to vector<16x128xf32>
    %848 = arith.mulf %847, %837 : vector<16x128xf32>
    %849 = arith.addf %810, %848 : vector<16x128xf32>
    %c20_388 = arith.constant 20 : index
    %c3_389 = arith.constant 3 : index
    %850 = memref.load %arg4[%c20_388, %c3_389] : memref<32x4xf32, #tpu.memory_space<smem>>
    %851 = vector.broadcast %850 : f32 to vector<16x128xf32>
    %852 = arith.mulf %851, %837 : vector<16x128xf32>
    %853 = arith.addf %814, %852 : vector<16x128xf32>
    %c0_390 = arith.constant 0 : index
    %c21 = arith.constant 21 : index
    %854 = memref.load %arg2[%c0_390, %c21] : memref<4x32xf32, #tpu.memory_space<smem>>
    %855 = vector.broadcast %854 : f32 to vector<16x128xf32>
    %856 = arith.mulf %855, %4 : vector<16x128xf32>
    %c1_391 = arith.constant 1 : index
    %c21_392 = arith.constant 21 : index
    %857 = memref.load %arg2[%c1_391, %c21_392] : memref<4x32xf32, #tpu.memory_space<smem>>
    %858 = vector.broadcast %857 : f32 to vector<16x128xf32>
    %859 = arith.mulf %858, %7 : vector<16x128xf32>
    %860 = arith.addf %856, %859 : vector<16x128xf32>
    %c2_393 = arith.constant 2 : index
    %c21_394 = arith.constant 21 : index
    %861 = memref.load %arg2[%c2_393, %c21_394] : memref<4x32xf32, #tpu.memory_space<smem>>
    %862 = vector.broadcast %861 : f32 to vector<16x128xf32>
    %863 = arith.mulf %862, %10 : vector<16x128xf32>
    %864 = arith.addf %860, %863 : vector<16x128xf32>
    %c3_395 = arith.constant 3 : index
    %c21_396 = arith.constant 21 : index
    %865 = memref.load %arg2[%c3_395, %c21_396] : memref<4x32xf32, #tpu.memory_space<smem>>
    %866 = vector.broadcast %865 : f32 to vector<16x128xf32>
    %867 = arith.mulf %866, %13 : vector<16x128xf32>
    %868 = arith.addf %864, %867 : vector<16x128xf32>
    %c21_397 = arith.constant 21 : index
    %869 = memref.load %arg3[%c21_397] : memref<32xf32, #tpu.memory_space<smem>>
    %870 = vector.broadcast %869 : f32 to vector<16x128xf32>
    %871 = arith.addf %868, %870 : vector<16x128xf32>
    %cst_398 = arith.constant 0.000000e+00 : f32
    %872 = vector.broadcast %cst_398 : f32 to vector<16x128xf32>
    %873 = arith.cmpf ogt, %871, %872 : vector<16x128xf32>
    %cst_399 = arith.constant 1.000000e-01 : f32
    %874 = vector.broadcast %cst_399 : f32 to vector<16x128xf32>
    %875 = arith.mulf %874, %871 : vector<16x128xf32>
    %876 = arith.select %873, %871, %875 : vector<16x128xi1>, vector<16x128xf32>
    %c21_400 = arith.constant 21 : index
    %c0_401 = arith.constant 0 : index
    %877 = memref.load %arg4[%c21_400, %c0_401] : memref<32x4xf32, #tpu.memory_space<smem>>
    %878 = vector.broadcast %877 : f32 to vector<16x128xf32>
    %879 = arith.mulf %878, %876 : vector<16x128xf32>
    %880 = arith.addf %841, %879 : vector<16x128xf32>
    %c21_402 = arith.constant 21 : index
    %c1_403 = arith.constant 1 : index
    %881 = memref.load %arg4[%c21_402, %c1_403] : memref<32x4xf32, #tpu.memory_space<smem>>
    %882 = vector.broadcast %881 : f32 to vector<16x128xf32>
    %883 = arith.mulf %882, %876 : vector<16x128xf32>
    %884 = arith.addf %845, %883 : vector<16x128xf32>
    %c21_404 = arith.constant 21 : index
    %c2_405 = arith.constant 2 : index
    %885 = memref.load %arg4[%c21_404, %c2_405] : memref<32x4xf32, #tpu.memory_space<smem>>
    %886 = vector.broadcast %885 : f32 to vector<16x128xf32>
    %887 = arith.mulf %886, %876 : vector<16x128xf32>
    %888 = arith.addf %849, %887 : vector<16x128xf32>
    %c21_406 = arith.constant 21 : index
    %c3_407 = arith.constant 3 : index
    %889 = memref.load %arg4[%c21_406, %c3_407] : memref<32x4xf32, #tpu.memory_space<smem>>
    %890 = vector.broadcast %889 : f32 to vector<16x128xf32>
    %891 = arith.mulf %890, %876 : vector<16x128xf32>
    %892 = arith.addf %853, %891 : vector<16x128xf32>
    %c0_408 = arith.constant 0 : index
    %c22 = arith.constant 22 : index
    %893 = memref.load %arg2[%c0_408, %c22] : memref<4x32xf32, #tpu.memory_space<smem>>
    %894 = vector.broadcast %893 : f32 to vector<16x128xf32>
    %895 = arith.mulf %894, %4 : vector<16x128xf32>
    %c1_409 = arith.constant 1 : index
    %c22_410 = arith.constant 22 : index
    %896 = memref.load %arg2[%c1_409, %c22_410] : memref<4x32xf32, #tpu.memory_space<smem>>
    %897 = vector.broadcast %896 : f32 to vector<16x128xf32>
    %898 = arith.mulf %897, %7 : vector<16x128xf32>
    %899 = arith.addf %895, %898 : vector<16x128xf32>
    %c2_411 = arith.constant 2 : index
    %c22_412 = arith.constant 22 : index
    %900 = memref.load %arg2[%c2_411, %c22_412] : memref<4x32xf32, #tpu.memory_space<smem>>
    %901 = vector.broadcast %900 : f32 to vector<16x128xf32>
    %902 = arith.mulf %901, %10 : vector<16x128xf32>
    %903 = arith.addf %899, %902 : vector<16x128xf32>
    %c3_413 = arith.constant 3 : index
    %c22_414 = arith.constant 22 : index
    %904 = memref.load %arg2[%c3_413, %c22_414] : memref<4x32xf32, #tpu.memory_space<smem>>
    %905 = vector.broadcast %904 : f32 to vector<16x128xf32>
    %906 = arith.mulf %905, %13 : vector<16x128xf32>
    %907 = arith.addf %903, %906 : vector<16x128xf32>
    %c22_415 = arith.constant 22 : index
    %908 = memref.load %arg3[%c22_415] : memref<32xf32, #tpu.memory_space<smem>>
    %909 = vector.broadcast %908 : f32 to vector<16x128xf32>
    %910 = arith.addf %907, %909 : vector<16x128xf32>
    %cst_416 = arith.constant 0.000000e+00 : f32
    %911 = vector.broadcast %cst_416 : f32 to vector<16x128xf32>
    %912 = arith.cmpf ogt, %910, %911 : vector<16x128xf32>
    %cst_417 = arith.constant 1.000000e-01 : f32
    %913 = vector.broadcast %cst_417 : f32 to vector<16x128xf32>
    %914 = arith.mulf %913, %910 : vector<16x128xf32>
    %915 = arith.select %912, %910, %914 : vector<16x128xi1>, vector<16x128xf32>
    %c22_418 = arith.constant 22 : index
    %c0_419 = arith.constant 0 : index
    %916 = memref.load %arg4[%c22_418, %c0_419] : memref<32x4xf32, #tpu.memory_space<smem>>
    %917 = vector.broadcast %916 : f32 to vector<16x128xf32>
    %918 = arith.mulf %917, %915 : vector<16x128xf32>
    %919 = arith.addf %880, %918 : vector<16x128xf32>
    %c22_420 = arith.constant 22 : index
    %c1_421 = arith.constant 1 : index
    %920 = memref.load %arg4[%c22_420, %c1_421] : memref<32x4xf32, #tpu.memory_space<smem>>
    %921 = vector.broadcast %920 : f32 to vector<16x128xf32>
    %922 = arith.mulf %921, %915 : vector<16x128xf32>
    %923 = arith.addf %884, %922 : vector<16x128xf32>
    %c22_422 = arith.constant 22 : index
    %c2_423 = arith.constant 2 : index
    %924 = memref.load %arg4[%c22_422, %c2_423] : memref<32x4xf32, #tpu.memory_space<smem>>
    %925 = vector.broadcast %924 : f32 to vector<16x128xf32>
    %926 = arith.mulf %925, %915 : vector<16x128xf32>
    %927 = arith.addf %888, %926 : vector<16x128xf32>
    %c22_424 = arith.constant 22 : index
    %c3_425 = arith.constant 3 : index
    %928 = memref.load %arg4[%c22_424, %c3_425] : memref<32x4xf32, #tpu.memory_space<smem>>
    %929 = vector.broadcast %928 : f32 to vector<16x128xf32>
    %930 = arith.mulf %929, %915 : vector<16x128xf32>
    %931 = arith.addf %892, %930 : vector<16x128xf32>
    %c0_426 = arith.constant 0 : index
    %c23 = arith.constant 23 : index
    %932 = memref.load %arg2[%c0_426, %c23] : memref<4x32xf32, #tpu.memory_space<smem>>
    %933 = vector.broadcast %932 : f32 to vector<16x128xf32>
    %934 = arith.mulf %933, %4 : vector<16x128xf32>
    %c1_427 = arith.constant 1 : index
    %c23_428 = arith.constant 23 : index
    %935 = memref.load %arg2[%c1_427, %c23_428] : memref<4x32xf32, #tpu.memory_space<smem>>
    %936 = vector.broadcast %935 : f32 to vector<16x128xf32>
    %937 = arith.mulf %936, %7 : vector<16x128xf32>
    %938 = arith.addf %934, %937 : vector<16x128xf32>
    %c2_429 = arith.constant 2 : index
    %c23_430 = arith.constant 23 : index
    %939 = memref.load %arg2[%c2_429, %c23_430] : memref<4x32xf32, #tpu.memory_space<smem>>
    %940 = vector.broadcast %939 : f32 to vector<16x128xf32>
    %941 = arith.mulf %940, %10 : vector<16x128xf32>
    %942 = arith.addf %938, %941 : vector<16x128xf32>
    %c3_431 = arith.constant 3 : index
    %c23_432 = arith.constant 23 : index
    %943 = memref.load %arg2[%c3_431, %c23_432] : memref<4x32xf32, #tpu.memory_space<smem>>
    %944 = vector.broadcast %943 : f32 to vector<16x128xf32>
    %945 = arith.mulf %944, %13 : vector<16x128xf32>
    %946 = arith.addf %942, %945 : vector<16x128xf32>
    %c23_433 = arith.constant 23 : index
    %947 = memref.load %arg3[%c23_433] : memref<32xf32, #tpu.memory_space<smem>>
    %948 = vector.broadcast %947 : f32 to vector<16x128xf32>
    %949 = arith.addf %946, %948 : vector<16x128xf32>
    %cst_434 = arith.constant 0.000000e+00 : f32
    %950 = vector.broadcast %cst_434 : f32 to vector<16x128xf32>
    %951 = arith.cmpf ogt, %949, %950 : vector<16x128xf32>
    %cst_435 = arith.constant 1.000000e-01 : f32
    %952 = vector.broadcast %cst_435 : f32 to vector<16x128xf32>
    %953 = arith.mulf %952, %949 : vector<16x128xf32>
    %954 = arith.select %951, %949, %953 : vector<16x128xi1>, vector<16x128xf32>
    %c23_436 = arith.constant 23 : index
    %c0_437 = arith.constant 0 : index
    %955 = memref.load %arg4[%c23_436, %c0_437] : memref<32x4xf32, #tpu.memory_space<smem>>
    %956 = vector.broadcast %955 : f32 to vector<16x128xf32>
    %957 = arith.mulf %956, %954 : vector<16x128xf32>
    %958 = arith.addf %919, %957 : vector<16x128xf32>
    %c23_438 = arith.constant 23 : index
    %c1_439 = arith.constant 1 : index
    %959 = memref.load %arg4[%c23_438, %c1_439] : memref<32x4xf32, #tpu.memory_space<smem>>
    %960 = vector.broadcast %959 : f32 to vector<16x128xf32>
    %961 = arith.mulf %960, %954 : vector<16x128xf32>
    %962 = arith.addf %923, %961 : vector<16x128xf32>
    %c23_440 = arith.constant 23 : index
    %c2_441 = arith.constant 2 : index
    %963 = memref.load %arg4[%c23_440, %c2_441] : memref<32x4xf32, #tpu.memory_space<smem>>
    %964 = vector.broadcast %963 : f32 to vector<16x128xf32>
    %965 = arith.mulf %964, %954 : vector<16x128xf32>
    %966 = arith.addf %927, %965 : vector<16x128xf32>
    %c23_442 = arith.constant 23 : index
    %c3_443 = arith.constant 3 : index
    %967 = memref.load %arg4[%c23_442, %c3_443] : memref<32x4xf32, #tpu.memory_space<smem>>
    %968 = vector.broadcast %967 : f32 to vector<16x128xf32>
    %969 = arith.mulf %968, %954 : vector<16x128xf32>
    %970 = arith.addf %931, %969 : vector<16x128xf32>
    %c0_444 = arith.constant 0 : index
    %c24 = arith.constant 24 : index
    %971 = memref.load %arg2[%c0_444, %c24] : memref<4x32xf32, #tpu.memory_space<smem>>
    %972 = vector.broadcast %971 : f32 to vector<16x128xf32>
    %973 = arith.mulf %972, %4 : vector<16x128xf32>
    %c1_445 = arith.constant 1 : index
    %c24_446 = arith.constant 24 : index
    %974 = memref.load %arg2[%c1_445, %c24_446] : memref<4x32xf32, #tpu.memory_space<smem>>
    %975 = vector.broadcast %974 : f32 to vector<16x128xf32>
    %976 = arith.mulf %975, %7 : vector<16x128xf32>
    %977 = arith.addf %973, %976 : vector<16x128xf32>
    %c2_447 = arith.constant 2 : index
    %c24_448 = arith.constant 24 : index
    %978 = memref.load %arg2[%c2_447, %c24_448] : memref<4x32xf32, #tpu.memory_space<smem>>
    %979 = vector.broadcast %978 : f32 to vector<16x128xf32>
    %980 = arith.mulf %979, %10 : vector<16x128xf32>
    %981 = arith.addf %977, %980 : vector<16x128xf32>
    %c3_449 = arith.constant 3 : index
    %c24_450 = arith.constant 24 : index
    %982 = memref.load %arg2[%c3_449, %c24_450] : memref<4x32xf32, #tpu.memory_space<smem>>
    %983 = vector.broadcast %982 : f32 to vector<16x128xf32>
    %984 = arith.mulf %983, %13 : vector<16x128xf32>
    %985 = arith.addf %981, %984 : vector<16x128xf32>
    %c24_451 = arith.constant 24 : index
    %986 = memref.load %arg3[%c24_451] : memref<32xf32, #tpu.memory_space<smem>>
    %987 = vector.broadcast %986 : f32 to vector<16x128xf32>
    %988 = arith.addf %985, %987 : vector<16x128xf32>
    %cst_452 = arith.constant 0.000000e+00 : f32
    %989 = vector.broadcast %cst_452 : f32 to vector<16x128xf32>
    %990 = arith.cmpf ogt, %988, %989 : vector<16x128xf32>
    %cst_453 = arith.constant 1.000000e-01 : f32
    %991 = vector.broadcast %cst_453 : f32 to vector<16x128xf32>
    %992 = arith.mulf %991, %988 : vector<16x128xf32>
    %993 = arith.select %990, %988, %992 : vector<16x128xi1>, vector<16x128xf32>
    %c24_454 = arith.constant 24 : index
    %c0_455 = arith.constant 0 : index
    %994 = memref.load %arg4[%c24_454, %c0_455] : memref<32x4xf32, #tpu.memory_space<smem>>
    %995 = vector.broadcast %994 : f32 to vector<16x128xf32>
    %996 = arith.mulf %995, %993 : vector<16x128xf32>
    %997 = arith.addf %958, %996 : vector<16x128xf32>
    %c24_456 = arith.constant 24 : index
    %c1_457 = arith.constant 1 : index
    %998 = memref.load %arg4[%c24_456, %c1_457] : memref<32x4xf32, #tpu.memory_space<smem>>
    %999 = vector.broadcast %998 : f32 to vector<16x128xf32>
    %1000 = arith.mulf %999, %993 : vector<16x128xf32>
    %1001 = arith.addf %962, %1000 : vector<16x128xf32>
    %c24_458 = arith.constant 24 : index
    %c2_459 = arith.constant 2 : index
    %1002 = memref.load %arg4[%c24_458, %c2_459] : memref<32x4xf32, #tpu.memory_space<smem>>
    %1003 = vector.broadcast %1002 : f32 to vector<16x128xf32>
    %1004 = arith.mulf %1003, %993 : vector<16x128xf32>
    %1005 = arith.addf %966, %1004 : vector<16x128xf32>
    %c24_460 = arith.constant 24 : index
    %c3_461 = arith.constant 3 : index
    %1006 = memref.load %arg4[%c24_460, %c3_461] : memref<32x4xf32, #tpu.memory_space<smem>>
    %1007 = vector.broadcast %1006 : f32 to vector<16x128xf32>
    %1008 = arith.mulf %1007, %993 : vector<16x128xf32>
    %1009 = arith.addf %970, %1008 : vector<16x128xf32>
    %c0_462 = arith.constant 0 : index
    %c25 = arith.constant 25 : index
    %1010 = memref.load %arg2[%c0_462, %c25] : memref<4x32xf32, #tpu.memory_space<smem>>
    %1011 = vector.broadcast %1010 : f32 to vector<16x128xf32>
    %1012 = arith.mulf %1011, %4 : vector<16x128xf32>
    %c1_463 = arith.constant 1 : index
    %c25_464 = arith.constant 25 : index
    %1013 = memref.load %arg2[%c1_463, %c25_464] : memref<4x32xf32, #tpu.memory_space<smem>>
    %1014 = vector.broadcast %1013 : f32 to vector<16x128xf32>
    %1015 = arith.mulf %1014, %7 : vector<16x128xf32>
    %1016 = arith.addf %1012, %1015 : vector<16x128xf32>
    %c2_465 = arith.constant 2 : index
    %c25_466 = arith.constant 25 : index
    %1017 = memref.load %arg2[%c2_465, %c25_466] : memref<4x32xf32, #tpu.memory_space<smem>>
    %1018 = vector.broadcast %1017 : f32 to vector<16x128xf32>
    %1019 = arith.mulf %1018, %10 : vector<16x128xf32>
    %1020 = arith.addf %1016, %1019 : vector<16x128xf32>
    %c3_467 = arith.constant 3 : index
    %c25_468 = arith.constant 25 : index
    %1021 = memref.load %arg2[%c3_467, %c25_468] : memref<4x32xf32, #tpu.memory_space<smem>>
    %1022 = vector.broadcast %1021 : f32 to vector<16x128xf32>
    %1023 = arith.mulf %1022, %13 : vector<16x128xf32>
    %1024 = arith.addf %1020, %1023 : vector<16x128xf32>
    %c25_469 = arith.constant 25 : index
    %1025 = memref.load %arg3[%c25_469] : memref<32xf32, #tpu.memory_space<smem>>
    %1026 = vector.broadcast %1025 : f32 to vector<16x128xf32>
    %1027 = arith.addf %1024, %1026 : vector<16x128xf32>
    %cst_470 = arith.constant 0.000000e+00 : f32
    %1028 = vector.broadcast %cst_470 : f32 to vector<16x128xf32>
    %1029 = arith.cmpf ogt, %1027, %1028 : vector<16x128xf32>
    %cst_471 = arith.constant 1.000000e-01 : f32
    %1030 = vector.broadcast %cst_471 : f32 to vector<16x128xf32>
    %1031 = arith.mulf %1030, %1027 : vector<16x128xf32>
    %1032 = arith.select %1029, %1027, %1031 : vector<16x128xi1>, vector<16x128xf32>
    %c25_472 = arith.constant 25 : index
    %c0_473 = arith.constant 0 : index
    %1033 = memref.load %arg4[%c25_472, %c0_473] : memref<32x4xf32, #tpu.memory_space<smem>>
    %1034 = vector.broadcast %1033 : f32 to vector<16x128xf32>
    %1035 = arith.mulf %1034, %1032 : vector<16x128xf32>
    %1036 = arith.addf %997, %1035 : vector<16x128xf32>
    %c25_474 = arith.constant 25 : index
    %c1_475 = arith.constant 1 : index
    %1037 = memref.load %arg4[%c25_474, %c1_475] : memref<32x4xf32, #tpu.memory_space<smem>>
    %1038 = vector.broadcast %1037 : f32 to vector<16x128xf32>
    %1039 = arith.mulf %1038, %1032 : vector<16x128xf32>
    %1040 = arith.addf %1001, %1039 : vector<16x128xf32>
    %c25_476 = arith.constant 25 : index
    %c2_477 = arith.constant 2 : index
    %1041 = memref.load %arg4[%c25_476, %c2_477] : memref<32x4xf32, #tpu.memory_space<smem>>
    %1042 = vector.broadcast %1041 : f32 to vector<16x128xf32>
    %1043 = arith.mulf %1042, %1032 : vector<16x128xf32>
    %1044 = arith.addf %1005, %1043 : vector<16x128xf32>
    %c25_478 = arith.constant 25 : index
    %c3_479 = arith.constant 3 : index
    %1045 = memref.load %arg4[%c25_478, %c3_479] : memref<32x4xf32, #tpu.memory_space<smem>>
    %1046 = vector.broadcast %1045 : f32 to vector<16x128xf32>
    %1047 = arith.mulf %1046, %1032 : vector<16x128xf32>
    %1048 = arith.addf %1009, %1047 : vector<16x128xf32>
    %c0_480 = arith.constant 0 : index
    %c26 = arith.constant 26 : index
    %1049 = memref.load %arg2[%c0_480, %c26] : memref<4x32xf32, #tpu.memory_space<smem>>
    %1050 = vector.broadcast %1049 : f32 to vector<16x128xf32>
    %1051 = arith.mulf %1050, %4 : vector<16x128xf32>
    %c1_481 = arith.constant 1 : index
    %c26_482 = arith.constant 26 : index
    %1052 = memref.load %arg2[%c1_481, %c26_482] : memref<4x32xf32, #tpu.memory_space<smem>>
    %1053 = vector.broadcast %1052 : f32 to vector<16x128xf32>
    %1054 = arith.mulf %1053, %7 : vector<16x128xf32>
    %1055 = arith.addf %1051, %1054 : vector<16x128xf32>
    %c2_483 = arith.constant 2 : index
    %c26_484 = arith.constant 26 : index
    %1056 = memref.load %arg2[%c2_483, %c26_484] : memref<4x32xf32, #tpu.memory_space<smem>>
    %1057 = vector.broadcast %1056 : f32 to vector<16x128xf32>
    %1058 = arith.mulf %1057, %10 : vector<16x128xf32>
    %1059 = arith.addf %1055, %1058 : vector<16x128xf32>
    %c3_485 = arith.constant 3 : index
    %c26_486 = arith.constant 26 : index
    %1060 = memref.load %arg2[%c3_485, %c26_486] : memref<4x32xf32, #tpu.memory_space<smem>>
    %1061 = vector.broadcast %1060 : f32 to vector<16x128xf32>
    %1062 = arith.mulf %1061, %13 : vector<16x128xf32>
    %1063 = arith.addf %1059, %1062 : vector<16x128xf32>
    %c26_487 = arith.constant 26 : index
    %1064 = memref.load %arg3[%c26_487] : memref<32xf32, #tpu.memory_space<smem>>
    %1065 = vector.broadcast %1064 : f32 to vector<16x128xf32>
    %1066 = arith.addf %1063, %1065 : vector<16x128xf32>
    %cst_488 = arith.constant 0.000000e+00 : f32
    %1067 = vector.broadcast %cst_488 : f32 to vector<16x128xf32>
    %1068 = arith.cmpf ogt, %1066, %1067 : vector<16x128xf32>
    %cst_489 = arith.constant 1.000000e-01 : f32
    %1069 = vector.broadcast %cst_489 : f32 to vector<16x128xf32>
    %1070 = arith.mulf %1069, %1066 : vector<16x128xf32>
    %1071 = arith.select %1068, %1066, %1070 : vector<16x128xi1>, vector<16x128xf32>
    %c26_490 = arith.constant 26 : index
    %c0_491 = arith.constant 0 : index
    %1072 = memref.load %arg4[%c26_490, %c0_491] : memref<32x4xf32, #tpu.memory_space<smem>>
    %1073 = vector.broadcast %1072 : f32 to vector<16x128xf32>
    %1074 = arith.mulf %1073, %1071 : vector<16x128xf32>
    %1075 = arith.addf %1036, %1074 : vector<16x128xf32>
    %c26_492 = arith.constant 26 : index
    %c1_493 = arith.constant 1 : index
    %1076 = memref.load %arg4[%c26_492, %c1_493] : memref<32x4xf32, #tpu.memory_space<smem>>
    %1077 = vector.broadcast %1076 : f32 to vector<16x128xf32>
    %1078 = arith.mulf %1077, %1071 : vector<16x128xf32>
    %1079 = arith.addf %1040, %1078 : vector<16x128xf32>
    %c26_494 = arith.constant 26 : index
    %c2_495 = arith.constant 2 : index
    %1080 = memref.load %arg4[%c26_494, %c2_495] : memref<32x4xf32, #tpu.memory_space<smem>>
    %1081 = vector.broadcast %1080 : f32 to vector<16x128xf32>
    %1082 = arith.mulf %1081, %1071 : vector<16x128xf32>
    %1083 = arith.addf %1044, %1082 : vector<16x128xf32>
    %c26_496 = arith.constant 26 : index
    %c3_497 = arith.constant 3 : index
    %1084 = memref.load %arg4[%c26_496, %c3_497] : memref<32x4xf32, #tpu.memory_space<smem>>
    %1085 = vector.broadcast %1084 : f32 to vector<16x128xf32>
    %1086 = arith.mulf %1085, %1071 : vector<16x128xf32>
    %1087 = arith.addf %1048, %1086 : vector<16x128xf32>
    %c0_498 = arith.constant 0 : index
    %c27 = arith.constant 27 : index
    %1088 = memref.load %arg2[%c0_498, %c27] : memref<4x32xf32, #tpu.memory_space<smem>>
    %1089 = vector.broadcast %1088 : f32 to vector<16x128xf32>
    %1090 = arith.mulf %1089, %4 : vector<16x128xf32>
    %c1_499 = arith.constant 1 : index
    %c27_500 = arith.constant 27 : index
    %1091 = memref.load %arg2[%c1_499, %c27_500] : memref<4x32xf32, #tpu.memory_space<smem>>
    %1092 = vector.broadcast %1091 : f32 to vector<16x128xf32>
    %1093 = arith.mulf %1092, %7 : vector<16x128xf32>
    %1094 = arith.addf %1090, %1093 : vector<16x128xf32>
    %c2_501 = arith.constant 2 : index
    %c27_502 = arith.constant 27 : index
    %1095 = memref.load %arg2[%c2_501, %c27_502] : memref<4x32xf32, #tpu.memory_space<smem>>
    %1096 = vector.broadcast %1095 : f32 to vector<16x128xf32>
    %1097 = arith.mulf %1096, %10 : vector<16x128xf32>
    %1098 = arith.addf %1094, %1097 : vector<16x128xf32>
    %c3_503 = arith.constant 3 : index
    %c27_504 = arith.constant 27 : index
    %1099 = memref.load %arg2[%c3_503, %c27_504] : memref<4x32xf32, #tpu.memory_space<smem>>
    %1100 = vector.broadcast %1099 : f32 to vector<16x128xf32>
    %1101 = arith.mulf %1100, %13 : vector<16x128xf32>
    %1102 = arith.addf %1098, %1101 : vector<16x128xf32>
    %c27_505 = arith.constant 27 : index
    %1103 = memref.load %arg3[%c27_505] : memref<32xf32, #tpu.memory_space<smem>>
    %1104 = vector.broadcast %1103 : f32 to vector<16x128xf32>
    %1105 = arith.addf %1102, %1104 : vector<16x128xf32>
    %cst_506 = arith.constant 0.000000e+00 : f32
    %1106 = vector.broadcast %cst_506 : f32 to vector<16x128xf32>
    %1107 = arith.cmpf ogt, %1105, %1106 : vector<16x128xf32>
    %cst_507 = arith.constant 1.000000e-01 : f32
    %1108 = vector.broadcast %cst_507 : f32 to vector<16x128xf32>
    %1109 = arith.mulf %1108, %1105 : vector<16x128xf32>
    %1110 = arith.select %1107, %1105, %1109 : vector<16x128xi1>, vector<16x128xf32>
    %c27_508 = arith.constant 27 : index
    %c0_509 = arith.constant 0 : index
    %1111 = memref.load %arg4[%c27_508, %c0_509] : memref<32x4xf32, #tpu.memory_space<smem>>
    %1112 = vector.broadcast %1111 : f32 to vector<16x128xf32>
    %1113 = arith.mulf %1112, %1110 : vector<16x128xf32>
    %1114 = arith.addf %1075, %1113 : vector<16x128xf32>
    %c27_510 = arith.constant 27 : index
    %c1_511 = arith.constant 1 : index
    %1115 = memref.load %arg4[%c27_510, %c1_511] : memref<32x4xf32, #tpu.memory_space<smem>>
    %1116 = vector.broadcast %1115 : f32 to vector<16x128xf32>
    %1117 = arith.mulf %1116, %1110 : vector<16x128xf32>
    %1118 = arith.addf %1079, %1117 : vector<16x128xf32>
    %c27_512 = arith.constant 27 : index
    %c2_513 = arith.constant 2 : index
    %1119 = memref.load %arg4[%c27_512, %c2_513] : memref<32x4xf32, #tpu.memory_space<smem>>
    %1120 = vector.broadcast %1119 : f32 to vector<16x128xf32>
    %1121 = arith.mulf %1120, %1110 : vector<16x128xf32>
    %1122 = arith.addf %1083, %1121 : vector<16x128xf32>
    %c27_514 = arith.constant 27 : index
    %c3_515 = arith.constant 3 : index
    %1123 = memref.load %arg4[%c27_514, %c3_515] : memref<32x4xf32, #tpu.memory_space<smem>>
    %1124 = vector.broadcast %1123 : f32 to vector<16x128xf32>
    %1125 = arith.mulf %1124, %1110 : vector<16x128xf32>
    %1126 = arith.addf %1087, %1125 : vector<16x128xf32>
    %c0_516 = arith.constant 0 : index
    %c28 = arith.constant 28 : index
    %1127 = memref.load %arg2[%c0_516, %c28] : memref<4x32xf32, #tpu.memory_space<smem>>
    %1128 = vector.broadcast %1127 : f32 to vector<16x128xf32>
    %1129 = arith.mulf %1128, %4 : vector<16x128xf32>
    %c1_517 = arith.constant 1 : index
    %c28_518 = arith.constant 28 : index
    %1130 = memref.load %arg2[%c1_517, %c28_518] : memref<4x32xf32, #tpu.memory_space<smem>>
    %1131 = vector.broadcast %1130 : f32 to vector<16x128xf32>
    %1132 = arith.mulf %1131, %7 : vector<16x128xf32>
    %1133 = arith.addf %1129, %1132 : vector<16x128xf32>
    %c2_519 = arith.constant 2 : index
    %c28_520 = arith.constant 28 : index
    %1134 = memref.load %arg2[%c2_519, %c28_520] : memref<4x32xf32, #tpu.memory_space<smem>>
    %1135 = vector.broadcast %1134 : f32 to vector<16x128xf32>
    %1136 = arith.mulf %1135, %10 : vector<16x128xf32>
    %1137 = arith.addf %1133, %1136 : vector<16x128xf32>
    %c3_521 = arith.constant 3 : index
    %c28_522 = arith.constant 28 : index
    %1138 = memref.load %arg2[%c3_521, %c28_522] : memref<4x32xf32, #tpu.memory_space<smem>>
    %1139 = vector.broadcast %1138 : f32 to vector<16x128xf32>
    %1140 = arith.mulf %1139, %13 : vector<16x128xf32>
    %1141 = arith.addf %1137, %1140 : vector<16x128xf32>
    %c28_523 = arith.constant 28 : index
    %1142 = memref.load %arg3[%c28_523] : memref<32xf32, #tpu.memory_space<smem>>
    %1143 = vector.broadcast %1142 : f32 to vector<16x128xf32>
    %1144 = arith.addf %1141, %1143 : vector<16x128xf32>
    %cst_524 = arith.constant 0.000000e+00 : f32
    %1145 = vector.broadcast %cst_524 : f32 to vector<16x128xf32>
    %1146 = arith.cmpf ogt, %1144, %1145 : vector<16x128xf32>
    %cst_525 = arith.constant 1.000000e-01 : f32
    %1147 = vector.broadcast %cst_525 : f32 to vector<16x128xf32>
    %1148 = arith.mulf %1147, %1144 : vector<16x128xf32>
    %1149 = arith.select %1146, %1144, %1148 : vector<16x128xi1>, vector<16x128xf32>
    %c28_526 = arith.constant 28 : index
    %c0_527 = arith.constant 0 : index
    %1150 = memref.load %arg4[%c28_526, %c0_527] : memref<32x4xf32, #tpu.memory_space<smem>>
    %1151 = vector.broadcast %1150 : f32 to vector<16x128xf32>
    %1152 = arith.mulf %1151, %1149 : vector<16x128xf32>
    %1153 = arith.addf %1114, %1152 : vector<16x128xf32>
    %c28_528 = arith.constant 28 : index
    %c1_529 = arith.constant 1 : index
    %1154 = memref.load %arg4[%c28_528, %c1_529] : memref<32x4xf32, #tpu.memory_space<smem>>
    %1155 = vector.broadcast %1154 : f32 to vector<16x128xf32>
    %1156 = arith.mulf %1155, %1149 : vector<16x128xf32>
    %1157 = arith.addf %1118, %1156 : vector<16x128xf32>
    %c28_530 = arith.constant 28 : index
    %c2_531 = arith.constant 2 : index
    %1158 = memref.load %arg4[%c28_530, %c2_531] : memref<32x4xf32, #tpu.memory_space<smem>>
    %1159 = vector.broadcast %1158 : f32 to vector<16x128xf32>
    %1160 = arith.mulf %1159, %1149 : vector<16x128xf32>
    %1161 = arith.addf %1122, %1160 : vector<16x128xf32>
    %c28_532 = arith.constant 28 : index
    %c3_533 = arith.constant 3 : index
    %1162 = memref.load %arg4[%c28_532, %c3_533] : memref<32x4xf32, #tpu.memory_space<smem>>
    %1163 = vector.broadcast %1162 : f32 to vector<16x128xf32>
    %1164 = arith.mulf %1163, %1149 : vector<16x128xf32>
    %1165 = arith.addf %1126, %1164 : vector<16x128xf32>
    %c0_534 = arith.constant 0 : index
    %c29 = arith.constant 29 : index
    %1166 = memref.load %arg2[%c0_534, %c29] : memref<4x32xf32, #tpu.memory_space<smem>>
    %1167 = vector.broadcast %1166 : f32 to vector<16x128xf32>
    %1168 = arith.mulf %1167, %4 : vector<16x128xf32>
    %c1_535 = arith.constant 1 : index
    %c29_536 = arith.constant 29 : index
    %1169 = memref.load %arg2[%c1_535, %c29_536] : memref<4x32xf32, #tpu.memory_space<smem>>
    %1170 = vector.broadcast %1169 : f32 to vector<16x128xf32>
    %1171 = arith.mulf %1170, %7 : vector<16x128xf32>
    %1172 = arith.addf %1168, %1171 : vector<16x128xf32>
    %c2_537 = arith.constant 2 : index
    %c29_538 = arith.constant 29 : index
    %1173 = memref.load %arg2[%c2_537, %c29_538] : memref<4x32xf32, #tpu.memory_space<smem>>
    %1174 = vector.broadcast %1173 : f32 to vector<16x128xf32>
    %1175 = arith.mulf %1174, %10 : vector<16x128xf32>
    %1176 = arith.addf %1172, %1175 : vector<16x128xf32>
    %c3_539 = arith.constant 3 : index
    %c29_540 = arith.constant 29 : index
    %1177 = memref.load %arg2[%c3_539, %c29_540] : memref<4x32xf32, #tpu.memory_space<smem>>
    %1178 = vector.broadcast %1177 : f32 to vector<16x128xf32>
    %1179 = arith.mulf %1178, %13 : vector<16x128xf32>
    %1180 = arith.addf %1176, %1179 : vector<16x128xf32>
    %c29_541 = arith.constant 29 : index
    %1181 = memref.load %arg3[%c29_541] : memref<32xf32, #tpu.memory_space<smem>>
    %1182 = vector.broadcast %1181 : f32 to vector<16x128xf32>
    %1183 = arith.addf %1180, %1182 : vector<16x128xf32>
    %cst_542 = arith.constant 0.000000e+00 : f32
    %1184 = vector.broadcast %cst_542 : f32 to vector<16x128xf32>
    %1185 = arith.cmpf ogt, %1183, %1184 : vector<16x128xf32>
    %cst_543 = arith.constant 1.000000e-01 : f32
    %1186 = vector.broadcast %cst_543 : f32 to vector<16x128xf32>
    %1187 = arith.mulf %1186, %1183 : vector<16x128xf32>
    %1188 = arith.select %1185, %1183, %1187 : vector<16x128xi1>, vector<16x128xf32>
    %c29_544 = arith.constant 29 : index
    %c0_545 = arith.constant 0 : index
    %1189 = memref.load %arg4[%c29_544, %c0_545] : memref<32x4xf32, #tpu.memory_space<smem>>
    %1190 = vector.broadcast %1189 : f32 to vector<16x128xf32>
    %1191 = arith.mulf %1190, %1188 : vector<16x128xf32>
    %1192 = arith.addf %1153, %1191 : vector<16x128xf32>
    %c29_546 = arith.constant 29 : index
    %c1_547 = arith.constant 1 : index
    %1193 = memref.load %arg4[%c29_546, %c1_547] : memref<32x4xf32, #tpu.memory_space<smem>>
    %1194 = vector.broadcast %1193 : f32 to vector<16x128xf32>
    %1195 = arith.mulf %1194, %1188 : vector<16x128xf32>
    %1196 = arith.addf %1157, %1195 : vector<16x128xf32>
    %c29_548 = arith.constant 29 : index
    %c2_549 = arith.constant 2 : index
    %1197 = memref.load %arg4[%c29_548, %c2_549] : memref<32x4xf32, #tpu.memory_space<smem>>
    %1198 = vector.broadcast %1197 : f32 to vector<16x128xf32>
    %1199 = arith.mulf %1198, %1188 : vector<16x128xf32>
    %1200 = arith.addf %1161, %1199 : vector<16x128xf32>
    %c29_550 = arith.constant 29 : index
    %c3_551 = arith.constant 3 : index
    %1201 = memref.load %arg4[%c29_550, %c3_551] : memref<32x4xf32, #tpu.memory_space<smem>>
    %1202 = vector.broadcast %1201 : f32 to vector<16x128xf32>
    %1203 = arith.mulf %1202, %1188 : vector<16x128xf32>
    %1204 = arith.addf %1165, %1203 : vector<16x128xf32>
    %c0_552 = arith.constant 0 : index
    %c30 = arith.constant 30 : index
    %1205 = memref.load %arg2[%c0_552, %c30] : memref<4x32xf32, #tpu.memory_space<smem>>
    %1206 = vector.broadcast %1205 : f32 to vector<16x128xf32>
    %1207 = arith.mulf %1206, %4 : vector<16x128xf32>
    %c1_553 = arith.constant 1 : index
    %c30_554 = arith.constant 30 : index
    %1208 = memref.load %arg2[%c1_553, %c30_554] : memref<4x32xf32, #tpu.memory_space<smem>>
    %1209 = vector.broadcast %1208 : f32 to vector<16x128xf32>
    %1210 = arith.mulf %1209, %7 : vector<16x128xf32>
    %1211 = arith.addf %1207, %1210 : vector<16x128xf32>
    %c2_555 = arith.constant 2 : index
    %c30_556 = arith.constant 30 : index
    %1212 = memref.load %arg2[%c2_555, %c30_556] : memref<4x32xf32, #tpu.memory_space<smem>>
    %1213 = vector.broadcast %1212 : f32 to vector<16x128xf32>
    %1214 = arith.mulf %1213, %10 : vector<16x128xf32>
    %1215 = arith.addf %1211, %1214 : vector<16x128xf32>
    %c3_557 = arith.constant 3 : index
    %c30_558 = arith.constant 30 : index
    %1216 = memref.load %arg2[%c3_557, %c30_558] : memref<4x32xf32, #tpu.memory_space<smem>>
    %1217 = vector.broadcast %1216 : f32 to vector<16x128xf32>
    %1218 = arith.mulf %1217, %13 : vector<16x128xf32>
    %1219 = arith.addf %1215, %1218 : vector<16x128xf32>
    %c30_559 = arith.constant 30 : index
    %1220 = memref.load %arg3[%c30_559] : memref<32xf32, #tpu.memory_space<smem>>
    %1221 = vector.broadcast %1220 : f32 to vector<16x128xf32>
    %1222 = arith.addf %1219, %1221 : vector<16x128xf32>
    %cst_560 = arith.constant 0.000000e+00 : f32
    %1223 = vector.broadcast %cst_560 : f32 to vector<16x128xf32>
    %1224 = arith.cmpf ogt, %1222, %1223 : vector<16x128xf32>
    %cst_561 = arith.constant 1.000000e-01 : f32
    %1225 = vector.broadcast %cst_561 : f32 to vector<16x128xf32>
    %1226 = arith.mulf %1225, %1222 : vector<16x128xf32>
    %1227 = arith.select %1224, %1222, %1226 : vector<16x128xi1>, vector<16x128xf32>
    %c30_562 = arith.constant 30 : index
    %c0_563 = arith.constant 0 : index
    %1228 = memref.load %arg4[%c30_562, %c0_563] : memref<32x4xf32, #tpu.memory_space<smem>>
    %1229 = vector.broadcast %1228 : f32 to vector<16x128xf32>
    %1230 = arith.mulf %1229, %1227 : vector<16x128xf32>
    %1231 = arith.addf %1192, %1230 : vector<16x128xf32>
    %c30_564 = arith.constant 30 : index
    %c1_565 = arith.constant 1 : index
    %1232 = memref.load %arg4[%c30_564, %c1_565] : memref<32x4xf32, #tpu.memory_space<smem>>
    %1233 = vector.broadcast %1232 : f32 to vector<16x128xf32>
    %1234 = arith.mulf %1233, %1227 : vector<16x128xf32>
    %1235 = arith.addf %1196, %1234 : vector<16x128xf32>
    %c30_566 = arith.constant 30 : index
    %c2_567 = arith.constant 2 : index
    %1236 = memref.load %arg4[%c30_566, %c2_567] : memref<32x4xf32, #tpu.memory_space<smem>>
    %1237 = vector.broadcast %1236 : f32 to vector<16x128xf32>
    %1238 = arith.mulf %1237, %1227 : vector<16x128xf32>
    %1239 = arith.addf %1200, %1238 : vector<16x128xf32>
    %c30_568 = arith.constant 30 : index
    %c3_569 = arith.constant 3 : index
    %1240 = memref.load %arg4[%c30_568, %c3_569] : memref<32x4xf32, #tpu.memory_space<smem>>
    %1241 = vector.broadcast %1240 : f32 to vector<16x128xf32>
    %1242 = arith.mulf %1241, %1227 : vector<16x128xf32>
    %1243 = arith.addf %1204, %1242 : vector<16x128xf32>
    %c0_570 = arith.constant 0 : index
    %c31 = arith.constant 31 : index
    %1244 = memref.load %arg2[%c0_570, %c31] : memref<4x32xf32, #tpu.memory_space<smem>>
    %1245 = vector.broadcast %1244 : f32 to vector<16x128xf32>
    %1246 = arith.mulf %1245, %4 : vector<16x128xf32>
    %c1_571 = arith.constant 1 : index
    %c31_572 = arith.constant 31 : index
    %1247 = memref.load %arg2[%c1_571, %c31_572] : memref<4x32xf32, #tpu.memory_space<smem>>
    %1248 = vector.broadcast %1247 : f32 to vector<16x128xf32>
    %1249 = arith.mulf %1248, %7 : vector<16x128xf32>
    %1250 = arith.addf %1246, %1249 : vector<16x128xf32>
    %c2_573 = arith.constant 2 : index
    %c31_574 = arith.constant 31 : index
    %1251 = memref.load %arg2[%c2_573, %c31_574] : memref<4x32xf32, #tpu.memory_space<smem>>
    %1252 = vector.broadcast %1251 : f32 to vector<16x128xf32>
    %1253 = arith.mulf %1252, %10 : vector<16x128xf32>
    %1254 = arith.addf %1250, %1253 : vector<16x128xf32>
    %c3_575 = arith.constant 3 : index
    %c31_576 = arith.constant 31 : index
    %1255 = memref.load %arg2[%c3_575, %c31_576] : memref<4x32xf32, #tpu.memory_space<smem>>
    %1256 = vector.broadcast %1255 : f32 to vector<16x128xf32>
    %1257 = arith.mulf %1256, %13 : vector<16x128xf32>
    %1258 = arith.addf %1254, %1257 : vector<16x128xf32>
    %c31_577 = arith.constant 31 : index
    %1259 = memref.load %arg3[%c31_577] : memref<32xf32, #tpu.memory_space<smem>>
    %1260 = vector.broadcast %1259 : f32 to vector<16x128xf32>
    %1261 = arith.addf %1258, %1260 : vector<16x128xf32>
    %cst_578 = arith.constant 0.000000e+00 : f32
    %1262 = vector.broadcast %cst_578 : f32 to vector<16x128xf32>
    %1263 = arith.cmpf ogt, %1261, %1262 : vector<16x128xf32>
    %cst_579 = arith.constant 1.000000e-01 : f32
    %1264 = vector.broadcast %cst_579 : f32 to vector<16x128xf32>
    %1265 = arith.mulf %1264, %1261 : vector<16x128xf32>
    %1266 = arith.select %1263, %1261, %1265 : vector<16x128xi1>, vector<16x128xf32>
    %c31_580 = arith.constant 31 : index
    %c0_581 = arith.constant 0 : index
    %1267 = memref.load %arg4[%c31_580, %c0_581] : memref<32x4xf32, #tpu.memory_space<smem>>
    %1268 = vector.broadcast %1267 : f32 to vector<16x128xf32>
    %1269 = arith.mulf %1268, %1266 : vector<16x128xf32>
    %1270 = arith.addf %1231, %1269 : vector<16x128xf32>
    %c31_582 = arith.constant 31 : index
    %c1_583 = arith.constant 1 : index
    %1271 = memref.load %arg4[%c31_582, %c1_583] : memref<32x4xf32, #tpu.memory_space<smem>>
    %1272 = vector.broadcast %1271 : f32 to vector<16x128xf32>
    %1273 = arith.mulf %1272, %1266 : vector<16x128xf32>
    %1274 = arith.addf %1235, %1273 : vector<16x128xf32>
    %c31_584 = arith.constant 31 : index
    %c2_585 = arith.constant 2 : index
    %1275 = memref.load %arg4[%c31_584, %c2_585] : memref<32x4xf32, #tpu.memory_space<smem>>
    %1276 = vector.broadcast %1275 : f32 to vector<16x128xf32>
    %1277 = arith.mulf %1276, %1266 : vector<16x128xf32>
    %1278 = arith.addf %1239, %1277 : vector<16x128xf32>
    %c31_586 = arith.constant 31 : index
    %c3_587 = arith.constant 3 : index
    %1279 = memref.load %arg4[%c31_586, %c3_587] : memref<32x4xf32, #tpu.memory_space<smem>>
    %1280 = vector.broadcast %1279 : f32 to vector<16x128xf32>
    %1281 = arith.mulf %1280, %1266 : vector<16x128xf32>
    %1282 = arith.addf %1243, %1281 : vector<16x128xf32>
    %c0_588 = arith.constant 0 : index
    %1283 = memref.load %arg5[%c0_588] : memref<4xf32, #tpu.memory_space<smem>>
    %1284 = vector.broadcast %1283 : f32 to vector<16x128xf32>
    %1285 = arith.addf %1270, %1284 : vector<16x128xf32>
    %cst_589 = arith.constant 0.000000e+00 : f32
    %1286 = vector.broadcast %cst_589 : f32 to vector<16x128xf32>
    %1287 = arith.cmpf ogt, %1285, %1286 : vector<16x128xf32>
    %cst_590 = arith.constant 1.000000e-01 : f32
    %1288 = vector.broadcast %cst_590 : f32 to vector<16x128xf32>
    %1289 = arith.mulf %1288, %1285 : vector<16x128xf32>
    %1290 = arith.select %1287, %1285, %1289 : vector<16x128xi1>, vector<16x128xf32>
    %1291 = arith.addf %1290, %4 : vector<16x128xf32>
    %c1_591 = arith.constant 1 : index
    %1292 = memref.load %arg5[%c1_591] : memref<4xf32, #tpu.memory_space<smem>>
    %1293 = vector.broadcast %1292 : f32 to vector<16x128xf32>
    %1294 = arith.addf %1274, %1293 : vector<16x128xf32>
    %cst_592 = arith.constant 0.000000e+00 : f32
    %1295 = vector.broadcast %cst_592 : f32 to vector<16x128xf32>
    %1296 = arith.cmpf ogt, %1294, %1295 : vector<16x128xf32>
    %cst_593 = arith.constant 1.000000e-01 : f32
    %1297 = vector.broadcast %cst_593 : f32 to vector<16x128xf32>
    %1298 = arith.mulf %1297, %1294 : vector<16x128xf32>
    %1299 = arith.select %1296, %1294, %1298 : vector<16x128xi1>, vector<16x128xf32>
    %1300 = arith.addf %1299, %7 : vector<16x128xf32>
    %c2_594 = arith.constant 2 : index
    %1301 = memref.load %arg5[%c2_594] : memref<4xf32, #tpu.memory_space<smem>>
    %1302 = vector.broadcast %1301 : f32 to vector<16x128xf32>
    %1303 = arith.addf %1278, %1302 : vector<16x128xf32>
    %cst_595 = arith.constant 0.000000e+00 : f32
    %1304 = vector.broadcast %cst_595 : f32 to vector<16x128xf32>
    %1305 = arith.cmpf ogt, %1303, %1304 : vector<16x128xf32>
    %cst_596 = arith.constant 1.000000e-01 : f32
    %1306 = vector.broadcast %cst_596 : f32 to vector<16x128xf32>
    %1307 = arith.mulf %1306, %1303 : vector<16x128xf32>
    %1308 = arith.select %1305, %1303, %1307 : vector<16x128xi1>, vector<16x128xf32>
    %1309 = arith.addf %1308, %10 : vector<16x128xf32>
    %c3_597 = arith.constant 3 : index
    %1310 = memref.load %arg5[%c3_597] : memref<4xf32, #tpu.memory_space<smem>>
    %1311 = vector.broadcast %1310 : f32 to vector<16x128xf32>
    %1312 = arith.addf %1282, %1311 : vector<16x128xf32>
    %cst_598 = arith.constant 0.000000e+00 : f32
    %1313 = vector.broadcast %cst_598 : f32 to vector<16x128xf32>
    %1314 = arith.cmpf ogt, %1312, %1313 : vector<16x128xf32>
    %cst_599 = arith.constant 1.000000e-01 : f32
    %1315 = vector.broadcast %cst_599 : f32 to vector<16x128xf32>
    %1316 = arith.mulf %1315, %1312 : vector<16x128xf32>
    %1317 = arith.select %1314, %1312, %1316 : vector<16x128xi1>, vector<16x128xf32>
    %1318 = arith.addf %1317, %13 : vector<16x128xf32>
    %c0_600 = arith.constant 0 : index
    %c0_601 = arith.constant 0 : index
    %1319 = memref.load %arg6[%c0_600, %c0_601] : memref<4x2xf32, #tpu.memory_space<smem>>
    %1320 = vector.broadcast %1319 : f32 to vector<16x128xf32>
    %1321 = arith.mulf %1320, %1291 : vector<16x128xf32>
    %c1_602 = arith.constant 1 : index
    %c0_603 = arith.constant 0 : index
    %1322 = memref.load %arg6[%c1_602, %c0_603] : memref<4x2xf32, #tpu.memory_space<smem>>
    %1323 = vector.broadcast %1322 : f32 to vector<16x128xf32>
    %1324 = arith.mulf %1323, %1300 : vector<16x128xf32>
    %1325 = arith.addf %1321, %1324 : vector<16x128xf32>
    %c2_604 = arith.constant 2 : index
    %c0_605 = arith.constant 0 : index
    %1326 = memref.load %arg6[%c2_604, %c0_605] : memref<4x2xf32, #tpu.memory_space<smem>>
    %1327 = vector.broadcast %1326 : f32 to vector<16x128xf32>
    %1328 = arith.mulf %1327, %1309 : vector<16x128xf32>
    %1329 = arith.addf %1325, %1328 : vector<16x128xf32>
    %c3_606 = arith.constant 3 : index
    %c0_607 = arith.constant 0 : index
    %1330 = memref.load %arg6[%c3_606, %c0_607] : memref<4x2xf32, #tpu.memory_space<smem>>
    %1331 = vector.broadcast %1330 : f32 to vector<16x128xf32>
    %1332 = arith.mulf %1331, %1318 : vector<16x128xf32>
    %1333 = arith.addf %1329, %1332 : vector<16x128xf32>
    %c0_608 = arith.constant 0 : index
    %1334 = memref.load %arg7[%c0_608] : memref<2xf32, #tpu.memory_space<smem>>
    %1335 = vector.broadcast %1334 : f32 to vector<16x128xf32>
    %1336 = arith.addf %1333, %1335 : vector<16x128xf32>
    %1337 = arith.negf %1336 : vector<16x128xf32>
    %1338 = math.exp %1337 : vector<16x128xf32>
    %cst_609 = arith.constant 1.000000e+00 : f32
    %1339 = vector.broadcast %cst_609 : f32 to vector<16x128xf32>
    %1340 = arith.addf %1339, %1338 : vector<16x128xf32>
    %1341 = arith.divf %1339, %1340 : vector<16x128xf32>
    %c0_610 = arith.constant 0 : index
    %1342 = arith.index_cast %1 : i32 to index
    %c0_611 = arith.constant 0 : index
    %1343 = vector.load %arg8[%c0_610, %1342, %c0_611] : memref<2x16x128xf32, #tpu.memory_space<vmem>>, vector<1x16x128xf32>
    %1344 = vector.shape_cast %1343 : vector<1x16x128xf32> to vector<16x128xf32>
    %1345 = vector.shape_cast %1341 : vector<16x128xf32> to vector<1x16x128xf32>
    tpu.vector_store %arg8[%c0_610, %1342, %c0_611], %1345 {strides = array<i32>} : memref<2x16x128xf32, #tpu.memory_space<vmem>>, vector<1x16x128xf32>,
    %c0_612 = arith.constant 0 : index
    %c1_613 = arith.constant 1 : index
    %1346 = memref.load %arg6[%c0_612, %c1_613] : memref<4x2xf32, #tpu.memory_space<smem>>
    %1347 = vector.broadcast %1346 : f32 to vector<16x128xf32>
    %1348 = arith.mulf %1347, %1291 : vector<16x128xf32>
    %c1_614 = arith.constant 1 : index
    %c1_615 = arith.constant 1 : index
    %1349 = memref.load %arg6[%c1_614, %c1_615] : memref<4x2xf32, #tpu.memory_space<smem>>
    %1350 = vector.broadcast %1349 : f32 to vector<16x128xf32>
    %1351 = arith.mulf %1350, %1300 : vector<16x128xf32>
    %1352 = arith.addf %1348, %1351 : vector<16x128xf32>
    %c2_616 = arith.constant 2 : index
    %c1_617 = arith.constant 1 : index
    %1353 = memref.load %arg6[%c2_616, %c1_617] : memref<4x2xf32, #tpu.memory_space<smem>>
    %1354 = vector.broadcast %1353 : f32 to vector<16x128xf32>
    %1355 = arith.mulf %1354, %1309 : vector<16x128xf32>
    %1356 = arith.addf %1352, %1355 : vector<16x128xf32>
    %c3_618 = arith.constant 3 : index
    %c1_619 = arith.constant 1 : index
    %1357 = memref.load %arg6[%c3_618, %c1_619] : memref<4x2xf32, #tpu.memory_space<smem>>
    %1358 = vector.broadcast %1357 : f32 to vector<16x128xf32>
    %1359 = arith.mulf %1358, %1318 : vector<16x128xf32>
    %1360 = arith.addf %1356, %1359 : vector<16x128xf32>
    %c1_620 = arith.constant 1 : index
    %1361 = memref.load %arg7[%c1_620] : memref<2xf32, #tpu.memory_space<smem>>
    %1362 = vector.broadcast %1361 : f32 to vector<16x128xf32>
    %1363 = arith.addf %1360, %1362 : vector<16x128xf32>
    %1364 = arith.negf %1363 : vector<16x128xf32>
    %1365 = math.exp %1364 : vector<16x128xf32>
    %cst_621 = arith.constant 1.000000e+00 : f32
    %1366 = vector.broadcast %cst_621 : f32 to vector<16x128xf32>
    %1367 = arith.addf %1366, %1365 : vector<16x128xf32>
    %1368 = arith.divf %1366, %1367 : vector<16x128xf32>
    %c1_622 = arith.constant 1 : index
    %1369 = arith.index_cast %1 : i32 to index
    %c0_623 = arith.constant 0 : index
    %1370 = vector.load %arg8[%c1_622, %1369, %c0_623] : memref<2x16x128xf32, #tpu.memory_space<vmem>>, vector<1x16x128xf32>
    %1371 = vector.shape_cast %1370 : vector<1x16x128xf32> to vector<16x128xf32>
    %1372 = vector.shape_cast %1368 : vector<16x128xf32> to vector<1x16x128xf32>
    tpu.vector_store %arg8[%c1_622, %1369, %c0_623], %1372 {strides = array<i32>} : memref<2x16x128xf32, #tpu.memory_space<vmem>>, vector<1x16x128xf32>,
    %c1_i32 = arith.constant 1 : i32
    return
  }
  func.func @transform_0(%arg0: i32) -> (i32, i32, i32) {
    %c0_i32 = arith.constant 0 : i32
    %c0_i32_0 = arith.constant 0 : i32
    %c0_i32_1 = arith.constant 0 : i32
    return %c0_i32, %arg0, %c0_i32_0 : i32, i32, i32
  }
  func.func @transform_1(%arg0: i32) -> (i32, i32) {
    %c0_i32 = arith.constant 0 : i32
    %c0_i32_0 = arith.constant 0 : i32
    %c0_i32_1 = arith.constant 0 : i32
    return %c0_i32, %c0_i32_0 : i32, i32
  }
  func.func @transform_2(%arg0: i32) -> i32 {
    %c0_i32 = arith.constant 0 : i32
    %c0_i32_0 = arith.constant 0 : i32
    return %c0_i32 : i32
  }
  func.func @transform_3(%arg0: i32) -> (i32, i32) {
    %c0_i32 = arith.constant 0 : i32
    %c0_i32_0 = arith.constant 0 : i32
    %c0_i32_1 = arith.constant 0 : i32
    return %c0_i32, %c0_i32_0 : i32, i32
  }
  func.func @transform_4(%arg0: i32) -> i32 {
    %c0_i32 = arith.constant 0 : i32
    %c0_i32_0 = arith.constant 0 : i32
    return %c0_i32 : i32
  }
  func.func @transform_5(%arg0: i32) -> (i32, i32) {
    %c0_i32 = arith.constant 0 : i32
    %c0_i32_0 = arith.constant 0 : i32
    %c0_i32_1 = arith.constant 0 : i32
    return %c0_i32, %c0_i32_0 : i32, i32
  }
  func.func @transform_6(%arg0: i32) -> i32 {
    %c0_i32 = arith.constant 0 : i32
    %c0_i32_0 = arith.constant 0 : i32
    return %c0_i32 : i32
  }
  func.func @transform_7(%arg0: i32) -> (i32, i32, i32) {
    %c0_i32 = arith.constant 0 : i32
    %c0_i32_0 = arith.constant 0 : i32
    %c0_i32_1 = arith.constant 0 : i32
    return %c0_i32, %arg0, %c0_i32_0 : i32, i32, i32
  }
  func.func @transform_8(%arg0: i32) -> (i32, i32) {
    %c0_i32 = arith.constant 0 : i32
    %c0_i32_0 = arith.constant 0 : i32
    return %arg0, %c0_i32 : i32, i32
  }
}

</mosaic_0001>

<llo_original>
// kernel: squeeze.12
$region0: #{squeeze.12}
  %s0 = inlined_call_operand.vmem [shape: f32[4,4,8,1], index: 0, kind: input, shape index: {}]
  %s1 = inlined_call_operand.vmem [shape: f32[1,128], index: 1, kind: output, shape index: {}]
  $region1: #{squeeze.12} parent=0
    #allocation0 [shape = 'u8[4096]{0}', space=vmem, size = 0x1000, scoped, tag = 'scoped mem for output reshape']
    #allocation1 [shape = 'u8[16384]{0}', space=vmem, size = 0x4000, scoped, tag = 'scoped mem for input reshape']
    %s3 = ssub.s32 16, 1
    %s4 = scalar_lea.vmem %s0, 12
    %v5 = vld [vmem:[%s4] sm:%s3]
    %s6 = scalar_lea.vmem [#allocation1], 24
    %7 = vst [vmem:[%s6] sm:%s3] %v5
    %s8 = scalar_lea.vmem %s0, 8
    %v9 = vld [vmem:[%s8] sm:%s3]
    %s10 = scalar_lea.vmem [#allocation1], 16
    %11 = vst [vmem:[%s10] sm:%s3] %v9
    %s12 = scalar_lea.vmem %s0, 4
    %v13 = vld [vmem:[%s12] sm:%s3]
    %s14 = scalar_lea.vmem [#allocation1], 8
    %15 = vst [vmem:[%s14] sm:%s3] %v13
    %v16 = vld [vmem:[%s0] sm:%s3]
    %17 = vst [vmem:[#allocation1] sm:%s3] %v16
    %v18 = vld [vmem:[#allocation1] sm:$0x1]
    %vm19 = vcmask 64512
    %20 = vst.msk [vmem:[#allocation0] sm:$0x1] %vm19, %v18
    %s21 = scalar_lea.vmem [#allocation1], 27
    %v22 = vld [vmem:[%s21] sm:$0x1]
    %23 = vrot.lane.b32.xlu0 %v22, 120
    %v24 = vpop.permute.xlu0 %23
    %vm25 = vcmask 1048512
    %26 = vst.msk [vmem:[#allocation0] sm:$0x1] %vm25, %v24
    %s27 = scalar_lea.vmem [#allocation1], 26
    %v28 = vld [vmem:[%s27] sm:$0x1]
    %29 = vrot.lane.b32.xlu0 %v28, 112
    %v30 = vpop.permute.xlu0 %29
    %vm31 = vcmask 982912
    %32 = vst.msk [vmem:[#allocation0] sm:$0x1] %vm31, %v30
    %s33 = scalar_lea.vmem [#allocation1], 25
    %v34 = vld [vmem:[%s33] sm:$0x1]
    %35 = vrot.lane.b32.xlu0 %v34, 104
    %v36 = vpop.permute.xlu0 %35
    %vm37 = vcmask 917312
    %38 = vst.msk [vmem:[#allocation0] sm:$0x1] %vm37, %v36
    %s39 = scalar_lea.vmem [#allocation1], 24
    %v40 = vld [vmem:[%s39] sm:$0x1]
    %41 = vrot.lane.b32.xlu0 %v40, 96
    %v42 = vpop.permute.xlu0 %41
    %vm43 = vcmask 851712
    %44 = vst.msk [vmem:[#allocation0] sm:$0x1] %vm43, %v42
    %s45 = scalar_lea.vmem [#allocation1], 19
    %v46 = vld [vmem:[%s45] sm:$0x1]
    %47 = vrot.lane.b32.xlu0 %v46, 88
    %v48 = vpop.permute.xlu0 %47
    %vm49 = vcmask 786112
    %50 = vst.msk [vmem:[#allocation0] sm:$0x1] %vm49, %v48
    %s51 = scalar_lea.vmem [#allocation1], 18
    %v52 = vld [vmem:[%s51] sm:$0x1]
    %53 = vrot.lane.b32.xlu0 %v52, 80
    %v54 = vpop.permute.xlu0 %53
    %vm55 = vcmask 720512
    %56 = vst.msk [vmem:[#allocation0] sm:$0x1] %vm55, %v54
    %s57 = scalar_lea.vmem [#allocation1], 17
    %v58 = vld [vmem:[%s57] sm:$0x1]
    %59 = vrot.lane.b32.xlu0 %v58, 72
    %v60 = vpop.permute.xlu0 %59
    %vm61 = vcmask 654912
    %62 = vst.msk [vmem:[#allocation0] sm:$0x1] %vm61, %v60
    %s63 = scalar_lea.vmem [#allocation1], 16
    %v64 = vld [vmem:[%s63] sm:$0x1]
    %65 = vrot.lane.b32.xlu0 %v64, 64
    %v66 = vpop.permute.xlu0 %65
    %vm67 = vcmask 589312
    %68 = vst.msk [vmem:[#allocation0] sm:$0x1] %vm67, %v66
    %s69 = scalar_lea.vmem [#allocation1], 11
    %v70 = vld [vmem:[%s69] sm:$0x1]
    %71 = vrot.lane.b32.xlu0 %v70, 56
    %v72 = vpop.permute.xlu0 %71
    %vm73 = vcmask 523712
    %74 = vst.msk [vmem:[#allocation0] sm:$0x1] %vm73, %v72
    %s75 = scalar_lea.vmem [#allocation1], 10
    %v76 = vld [vmem:[%s75] sm:$0x1]
    %77 = vrot.lane.b32.xlu0 %v76, 48
    %v78 = vpop.permute.xlu0 %77
    %vm79 = vcmask 458112
    %80 = vst.msk [vmem:[#allocation0] sm:$0x1] %vm79, %v78
    %s81 = scalar_lea.vmem [#allocation1], 9
    %v82 = vld [vmem:[%s81] sm:$0x1]
    %83 = vrot.lane.b32.xlu0 %v82, 40
    %v84 = vpop.permute.xlu0 %83
    %vm85 = vcmask 392512
    %86 = vst.msk [vmem:[#allocation0] sm:$0x1] %vm85, %v84
    %s87 = scalar_lea.vmem [#allocation1], 8
    %v88 = vld [vmem:[%s87] sm:$0x1]
    %89 = vrot.lane.b32.xlu0 %v88, 32
    %v90 = vpop.permute.xlu0 %89
    %vm91 = vcmask 326912
    %92 = vst.msk [vmem:[#allocation0] sm:$0x1] %vm91, %v90
    %s93 = scalar_lea.vmem [#allocation1], 3
    %v94 = vld [vmem:[%s93] sm:$0x1]
    %95 = vrot.lane.b32.xlu0 %v94, 24
    %v96 = vpop.permute.xlu0 %95
    %vm97 = vcmask 261312
    %98 = vst.msk [vmem:[#allocation0] sm:$0x1] %vm97, %v96
    %s99 = scalar_lea.vmem [#allocation1], 2
    %v100 = vld [vmem:[%s99] sm:$0x1]
    %101 = vrot.lane.b32.xlu0 %v100, 16
    %v102 = vpop.permute.xlu0 %101
    %vm103 = vcmask 195712
    %104 = vst.msk [vmem:[#allocation0] sm:$0x1] %vm103, %v102
    %s105 = scalar_lea.vmem [#allocation1], 1
    %v106 = vld [vmem:[%s105] sm:$0x1]
    %107 = vrot.lane.b32.xlu0 %v106, 8
    %v108 = vpop.permute.xlu0 %107
    %vm109 = vcmask 130112
    %110 = vst.msk [vmem:[#allocation0] sm:$0x1] %vm109, %v108
    %s112 = ssub.s32 2, 1
    %v113 = vld [vmem:[#allocation0] sm:%s112]
    %s115 = ssub.s32 2, 1
    %116 = vst [vmem:[%s1] sm:%s115] %v113

// kernel: _nn_c_device.1
$region0: #{_nn_c_device.1}
  #allocation0 [shape = 'u32[]', space=smem, size = 0x4, offset = 0x4, fixed_abs, tag = 'smem constant byte address 0x4 - core index']
  #allocation1 [shape = 'u32[72,128]{1,0:T(1,128)}', space=vmem, size = 0x9000, scoped, tag = 'internal scratch']
  %s0 = inlined_call_operand.vmem [shape: f32[4,16,128], index: 0, kind: input, shape index: {}]
  %s1 = inlined_call_operand.vmem [shape: f32[4,32], index: 1, kind: input, shape index: {}]
  %s2 = inlined_call_operand.vmem [shape: f32[32], index: 2, kind: input, shape index: {}]
  %s3 = inlined_call_operand.vmem [shape: f32[32,4], index: 3, kind: input, shape index: {}]
  %s4 = inlined_call_operand.vmem [shape: f32[4], index: 4, kind: input, shape index: {}]
  %s5 = inlined_call_operand.vmem [shape: f32[4,2], index: 5, kind: input, shape index: {}]
  %s6 = inlined_call_operand.vmem [shape: f32[2], index: 6, kind: input, shape index: {}]
  %s7 = inlined_call_operand.vmem [shape: f32[2,16,128], index: 7, kind: output, shape index: {0}]
  %s8 = inlined_call_operand.vmem [shape: s32[16,128], index: 8, kind: output, shape index: {1}]
  %9 = xla_tuple %s7, %s8
  %s10 = sld [smem:[#allocation0]]
  $region70: #{_nn_c_device.1} parent=0
    _
  %s12 = ssub.s32 1, %s10
  %s13 = scalar_select 0, %s12, %s10
  $region1: #{_nn_c_device.1} parent=0
    #allocation2 [shape = 'u8[2048]{0}', space=smem, size = 0x800, scoped, tag = 'input window, operand 1, single buffered']
    #allocation3 [shape = 's32[1]{0}', space=sflag, size = 0x4, scoped, tag = 'scoped memory for _nn_c_device.1']
    #allocation4 [shape = 'u8[512]{0}', space=smem, size = 0x200, scoped, tag = 'input window, operand 2, single buffered']
    #allocation5 [shape = 's32[1]{0}', space=sflag, size = 0x4, scoped, tag = 'scoped memory for _nn_c_device.1']
    #allocation6 [shape = 'u8[16384]{0}', space=smem, size = 0x4000, scoped, tag = 'input window, operand 3, single buffered']
    #allocation7 [shape = 'u8[512]{0}', space=smem, size = 0x200, scoped, tag = 'input window, operand 4, single buffered']
    #allocation8 [shape = 's32[1]{0}', space=sflag, size = 0x4, scoped, tag = 'scoped memory for _nn_c_device.1']
    #allocation9 [shape = 'u8[2048]{0}', space=smem, size = 0x800, scoped, tag = 'input window, operand 5, single buffered']
    #allocation10 [shape = 'u8[512]{0}', space=smem, size = 0x200, scoped, tag = 'input window, operand 6, single buffered']
    #allocation11 [shape = 's32[1]{0}', space=sflag, size = 0x4, scoped, tag = 'scoped memory for _nn_c_device.1']
    %14 = vsyncpa [#allocation3], 0
    %15 = vsyncpa [#allocation5], 0
    %16 = vsyncpa [#allocation8], 0
    %17 = vsyncpa [#allocation11], 0
    // Predicated region
    $region2: #{_nn_c_device.1} parent=1 // pred_check
      _
    $region3: #{_nn_c_device.1} parent=1 // pred_check_branch
      %19 = sbr.rel (0) target = $region5
    $region4: #{_nn_c_device.1} parent=1 // pred_region
      _
    $region5: #{_nn_c_device.1} parent=1 // pred_fallthru
      _
    // Predicated region
    $region6: #{_nn_c_device.1} parent=1 // pred_check
      _
    $region7: #{_nn_c_device.1} parent=1 // pred_check_branch
      %21 = sbr.rel (0) target = $region9
    $region8: #{_nn_c_device.1} parent=1 // pred_region
      %23 = vsyncadd [#allocation3], 0
      %s25 = sshll.u32 %s1, 4
      %s26 = int_to_ptr.vmem [resolvable:$true] %s25
      %28 = dma.vmem_to_smem %s26, 64, [#allocation2], [#allocation3]
    $region9: #{_nn_c_device.1} parent=1 // pred_fallthru
      _
    // Predicated region
    $region10: #{_nn_c_device.1} parent=1 // pred_check
      _
    $region11: #{_nn_c_device.1} parent=1 // pred_check_branch
      %30 = sbr.rel (0) target = $region13
    $region12: #{_nn_c_device.1} parent=1 // pred_region
      %32 = vsyncadd [#allocation5], 0
      %s34 = sshll.u32 %s2, 4
      %s35 = int_to_ptr.vmem [resolvable:$true] %s34
      %37 = dma.vmem_to_smem %s35, 16, [#allocation4], [#allocation5]
    $region13: #{_nn_c_device.1} parent=1 // pred_fallthru
      _
    // Predicated region
    $region14: #{_nn_c_device.1} parent=1 // pred_check
      _
    $region15: #{_nn_c_device.1} parent=1 // pred_check_branch
      %39 = sbr.rel (0) target = $region17
    $region16: #{_nn_c_device.1} parent=1 // pred_region
      %41 = vsyncadd [#allocation5], 0
      %s42 = sshll.u32 %s3, 4
      %s43 = int_to_ptr.vmem [resolvable:$true] %s42
      %48 = dma.vmem_to_smem %s43, 512, [#allocation6], [#allocation5], 128, 128, 8
    $region17: #{_nn_c_device.1} parent=1 // pred_fallthru
      _
    // Predicated region
    $region18: #{_nn_c_device.1} parent=1 // pred_check
      _
    $region19: #{_nn_c_device.1} parent=1 // pred_check_branch
      %50 = sbr.rel (0) target = $region21
    $region20: #{_nn_c_device.1} parent=1 // pred_region
      %52 = vsyncadd [#allocation8], 0
      %s54 = sshll.u32 %s4, 4
      %s55 = int_to_ptr.vmem [resolvable:$true] %s54
      %57 = dma.vmem_to_smem %s55, 16, [#allocation7], [#allocation8]
    $region21: #{_nn_c_device.1} parent=1 // pred_fallthru
      _
    // Predicated region
    $region22: #{_nn_c_device.1} parent=1 // pred_check
      _
    $region23: #{_nn_c_device.1} parent=1 // pred_check_branch
      %59 = sbr.rel (0) target = $region25
    $region24: #{_nn_c_device.1} parent=1 // pred_region
      %61 = vsyncadd [#allocation8], 0
      %s63 = sshll.u32 %s5, 4
      %s64 = int_to_ptr.vmem [resolvable:$true] %s63
      %66 = dma.vmem_to_smem %s64, 64, [#allocation9], [#allocation8]
    $region25: #{_nn_c_device.1} parent=1 // pred_fallthru
      _
    // Predicated region
    $region26: #{_nn_c_device.1} parent=1 // pred_check
      _
    $region27: #{_nn_c_device.1} parent=1 // pred_check_branch
      %68 = sbr.rel (0) target = $region29
    $region28: #{_nn_c_device.1} parent=1 // pred_region
      %70 = vsyncadd [#allocation11], 0
      %s72 = sshll.u32 %s6, 4
      %s73 = int_to_ptr.vmem [resolvable:$true] %s72
      %75 = dma.vmem_to_smem %s73, 16, [#allocation10], [#allocation11]
    $region29: #{_nn_c_device.1} parent=1 // pred_fallthru
      _
    // Predicated region
    $region30: #{_nn_c_device.1} parent=1 // pred_check
      _
    $region31: #{_nn_c_device.1} parent=1 // pred_check_branch
      %77 = sbr.rel (0) target = $region33
    $region32: #{_nn_c_device.1} parent=1 // pred_region
      %79 = dma.done [#allocation3], 64
    $region33: #{_nn_c_device.1} parent=1 // pred_fallthru
      _
    // Predicated region
    $region34: #{_nn_c_device.1} parent=1 // pred_check
      _
    $region35: #{_nn_c_device.1} parent=1 // pred_check_branch
      %81 = sbr.rel (0) target = $region37
    $region36: #{_nn_c_device.1} parent=1 // pred_region
      %83 = dma.done [#allocation5], 16
    $region37: #{_nn_c_device.1} parent=1 // pred_fallthru
      _
    // Predicated region
    $region38: #{_nn_c_device.1} parent=1 // pred_check
      _
    $region39: #{_nn_c_device.1} parent=1 // pred_check_branch
      %85 = sbr.rel (0) target = $region41
    $region40: #{_nn_c_device.1} parent=1 // pred_region
      %87 = dma.done [#allocation5], 512
    $region41: #{_nn_c_device.1} parent=1 // pred_fallthru
      _
    // Predicated region
    $region42: #{_nn_c_device.1} parent=1 // pred_check
      _
    $region43: #{_nn_c_device.1} parent=1 // pred_check_branch
      %89 = sbr.rel (0) target = $region45
    $region44: #{_nn_c_device.1} parent=1 // pred_region
      %91 = dma.done [#allocation8], 16
    $region45: #{_nn_c_device.1} parent=1 // pred_fallthru
      _
    // Predicated region
    $region46: #{_nn_c_device.1} parent=1 // pred_check
      _
    $region47: #{_nn_c_device.1} parent=1 // pred_check_branch
      %93 = sbr.rel (0) target = $region49
    $region48: #{_nn_c_device.1} parent=1 // pred_region
      %95 = dma.done [#allocation8], 64
    $region49: #{_nn_c_device.1} parent=1 // pred_fallthru
      _
    // Predicated region
    $region50: #{_nn_c_device.1} parent=1 // pred_check
      _
    $region51: #{_nn_c_device.1} parent=1 // pred_check_branch
      %97 = sbr.rel (0) target = $region53
    $region52: #{_nn_c_device.1} parent=1 // pred_region
      %99 = dma.done [#allocation11], 16
    $region53: #{_nn_c_device.1} parent=1 // pred_fallthru
      _
    %100 = sfence
    %v101 = vld [vmem:[%s0] sm:$0xff]
    %v102 = vld [vmem:[%s0 + $0x8] sm:$0xff]
    %s103 = sadd.s32 0, 16
    %s104 = scalar_lea.vmem %s0, %s103
    %v105 = vld [vmem:[%s104] sm:$0xff]
    %v106 = vld [vmem:[%s104 + $0x8] sm:$0xff]
    %s107 = sadd.s32 0, 32
    %s108 = scalar_lea.vmem %s0, %s107
    %v109 = vld [vmem:[%s108] sm:$0xff]
    %v110 = vld [vmem:[%s108 + $0x8] sm:$0xff]
    %s111 = sadd.s32 0, 48
    %s112 = scalar_lea.vmem %s0, %s111
    %v113 = vld [vmem:[%s112] sm:$0xff]
    %v114 = vld [vmem:[%s112 + $0x8] sm:$0xff]
    %v115 = vmul.f32 %v101, %v101
    %v116 = vmul.f32 %v102, %v102
    %v117 = vmul.f32 %v105, %v105
    %v118 = vmul.f32 %v106, %v106
    %v119 = vadd.f32 %v115, %v117
    %v120 = vadd.f32 %v116, %v118
    %v121 = vrsqrt.pop %v119
    %v122 = vmul.f32 %v121, %v119
    %v123 = vmul.f32 %v122, %v121
    %v124 = vmul.f32 0.5, %v123
    %v125 = vsub.f32 1.5, %v124
    %v126 = vmul.f32 %v121, %v125
    %v127 = vmul.f32 %v119, %v126
    %vm128 = vcmp.eq.f32.partialorder %v119, inf
    %v129 = vsel %vm128, %v119, %v127
    %vm130 = vcmp.eq.f32.partialorder %v119, 0.0
    %v131 = vand.u32 %v119, 2147483648
    %v132 = vsel %vm130, %v131, %v129
    %v133 = vrsqrt.pop %v120
    %v134 = vmul.f32 %v133, %v120
    %v135 = vmul.f32 %v134, %v133
    %v136 = vmul.f32 0.5, %v135
    %v137 = vsub.f32 1.5, %v136
    %v138 = vmul.f32 %v133, %v137
    %v139 = vmul.f32 %v120, %v138
    %vm140 = vcmp.eq.f32.partialorder %v120, inf
    %v141 = vsel %vm140, %v120, %v139
    %vm142 = vcmp.eq.f32.partialorder %v120, 0.0
    %v143 = vand.u32 %v120, 2147483648
    %v144 = vsel %vm142, %v143, %v141
    %v145 = vmul.f32 %v109, %v109
    %v146 = vmul.f32 %v110, %v110
    %v147 = vmul.f32 %v113, %v113
    %v148 = vmul.f32 %v114, %v114
    %v149 = vadd.f32 %v145, %v147
    %v150 = vadd.f32 %v146, %v148
    %v151 = vrsqrt.pop %v149
    %v152 = vmul.f32 %v151, %v149
    %v153 = vmul.f32 %v152, %v151
    %v154 = vmul.f32 0.5, %v153
    %v155 = vsub.f32 1.5, %v154
    %v156 = vmul.f32 %v151, %v155
    %v157 = vmul.f32 %v149, %v156
    %vm158 = vcmp.eq.f32.partialorder %v149, inf
    %v159 = vsel %vm158, %v149, %v157
    %vm160 = vcmp.eq.f32.partialorder %v149, 0.0
    %v161 = vand.u32 %v149, 2147483648
    %v162 = vsel %vm160, %v161, %v159
    %v163 = vrsqrt.pop %v150
    %v164 = vmul.f32 %v163, %v150
    %v165 = vmul.f32 %v164, %v163
    %v166 = vmul.f32 0.5, %v165
    %v167 = vsub.f32 1.5, %v166
    %v168 = vmul.f32 %v163, %v167
    %v169 = vmul.f32 %v150, %v168
    %vm170 = vcmp.eq.f32.partialorder %v150, inf
    %v171 = vsel %vm170, %v150, %v169
    %vm172 = vcmp.eq.f32.partialorder %v150, 0.0
    %v173 = vand.u32 %v150, 2147483648
    %v174 = vsel %vm172, %v173, %v171
    %v175 = vadd.f32 %v162, 1e-05
    %v176 = vadd.f32 %v174, 1e-05
    %v177 = vmul.f32 %v109, %v101
    %v178 = vmul.f32 %v110, %v102
    %v179 = vmul.f32 %v113, %v105
    %v180 = vmul.f32 %v114, %v106
    %v181 = vadd.f32 %v177, %v179
    %v182 = vadd.f32 %v178, %v180
    %vm183 = vcmp.le.f32.partialorder %v119, 4.0
    %vm184 = vcmp.le.f32.partialorder %v120, 4.0
    %v185 = vadd.f32 %v132, 1e-05
    %v186 = vadd.f32 %v144, 1e-05
    %v187 = vmul.f32 %v185, %v175
    %v188 = vmul.f32 %v186, %v176
    %v189 = vmul.f32 %v187, 0.25886965
    %v190 = vmul.f32 %v188, 0.25886965
    %vm191 = vcmp.ge.f32.partialorder %v181, %v189
    %vm192 = vcmp.ge.f32.partialorder %v182, %v190
    %vm193 = vmand %vm183, %vm191
    %vm194 = vmand %vm184, %vm192
    %v195 = vsel %vm193, 1, 0
    %v196 = vsel %vm194, 1, 0
    %197 = vst [vmem:[%s8] sm:$0xff] %v195
    %198 = vst [vmem:[%s8 + $0x8] sm:$0xff] %v196
    %s199 = sld [smem:[#allocation2]]
    %v200 = vstv %s199
    %v201 = vmul.f32 %v200, %v101
    %v202 = vmul.f32 %v200, %v102
    %s203 = sld [smem:[#allocation2 + $0x80]]
    %v204 = vstv %s203
    %v205 = vmul.f32 %v204, %v105
    %v206 = vmul.f32 %v204, %v106
    %v207 = vadd.f32 %v201, %v205
    %v208 = vadd.f32 %v202, %v206
    %s209 = sld [smem:[#allocation2 + $0x100]]
    %v210 = vstv %s209
    %v211 = vmul.f32 %v210, %v109
    %v212 = vmul.f32 %v210, %v110
    %v213 = vadd.f32 %v207, %v211
    %v214 = vadd.f32 %v208, %v212
    %s215 = sld [smem:[#allocation2 + $0x180]]
    %v216 = vstv %s215
    %v217 = vmul.f32 %v216, %v113
    %v218 = vmul.f32 %v216, %v114
    %v219 = vadd.f32 %v213, %v217
    %v220 = vadd.f32 %v214, %v218
    %s221 = sld [smem:[#allocation4]]
    %v222 = vstv %s221
    %v223 = vadd.f32 %v219, %v222
    %v224 = vadd.f32 %v220, %v222
    %vm225 = vcmp.gt.f32.partialorder %v223, 0.0
    %vm226 = vcmp.gt.f32.partialorder %v224, 0.0
    %v227 = vmul.f32 %v223, 0.1
    %v228 = vmul.f32 %v224, 0.1
    %v229 = vsel %vm225, %v223, %v227
    %v230 = vsel %vm226, %v224, %v228
    %s231 = sld [smem:[#allocation6]]
    %v232 = vstv %s231
    %v233 = vmul.f32 %v232, %v229
    %v234 = vmul.f32 %v232, %v230
    %s235 = sld [smem:[#allocation6 + $0x1]]
    %v236 = vstv %s235
    %v237 = vmul.f32 %v236, %v229
    %v238 = vmul.f32 %v236, %v230
    %s239 = sld [smem:[#allocation6 + $0x2]]
    %v240 = vstv %s239
    %v241 = vmul.f32 %v240, %v229
    %v242 = vmul.f32 %v240, %v230
    %s243 = sld [smem:[#allocation6 + $0x3]]
    %v244 = vstv %s243
    %v245 = vmul.f32 %v244, %v229
    %v246 = vmul.f32 %v244, %v230
    %s247 = sld [smem:[#allocation2 + $0x1]]
    %v248 = vstv %s247
    %v249 = vmul.f32 %v248, %v101
    %v250 = vmul.f32 %v248, %v102
    %s251 = sld [smem:[#allocation2 + $0x81]]
    %v252 = vstv %s251
    %v253 = vmul.f32 %v252, %v105
    %v254 = vmul.f32 %v252, %v106
    %v255 = vadd.f32 %v249, %v253
    %v256 = vadd.f32 %v250, %v254
    %s257 = sld [smem:[#allocation2 + $0x101]]
    %v258 = vstv %s257
    %v259 = vmul.f32 %v258, %v109
    %v260 = vmul.f32 %v258, %v110
    %v261 = vadd.f32 %v255, %v259
    %v262 = vadd.f32 %v256, %v260
    %s263 = sld [smem:[#allocation2 + $0x181]]
    %v264 = vstv %s263
    %v265 = vmul.f32 %v264, %v113
    %v266 = vmul.f32 %v264, %v114
    %v267 = vadd.f32 %v261, %v265
    %v268 = vadd.f32 %v262, %v266
    %s269 = sld [smem:[#allocation4 + $0x1]]
    %v270 = vstv %s269
    %v271 = vadd.f32 %v267, %v270
    %v272 = vadd.f32 %v268, %v270
    %vm273 = vcmp.gt.f32.partialorder %v271, 0.0
    %vm274 = vcmp.gt.f32.partialorder %v272, 0.0
    %v275 = vmul.f32 %v271, 0.1
    %v276 = vmul.f32 %v272, 0.1
    %v277 = vsel %vm273, %v271, %v275
    %v278 = vsel %vm274, %v272, %v276
    %s279 = sld [smem:[#allocation6 + $0x80]]
    %v280 = vstv %s279
    %v281 = vmul.f32 %v280, %v277
    %v282 = vmul.f32 %v280, %v278
    %v283 = vadd.f32 %v233, %v281
    %v284 = vadd.f32 %v234, %v282
    %s285 = sld [smem:[#allocation6 + $0x81]]
    %v286 = vstv %s285
    %v287 = vmul.f32 %v286, %v277
    %v288 = vmul.f32 %v286, %v278
    %v289 = vadd.f32 %v237, %v287
    %v290 = vadd.f32 %v238, %v288
    %s291 = sld [smem:[#allocation6 + $0x82]]
    %v292 = vstv %s291
    %v293 = vmul.f32 %v292, %v277
    %v294 = vmul.f32 %v292, %v278
    %v295 = vadd.f32 %v241, %v293
    %v296 = vadd.f32 %v242, %v294
    %s297 = sld [smem:[#allocation6 + $0x83]]
    %v298 = vstv %s297
    %v299 = vmul.f32 %v298, %v277
    %v300 = vmul.f32 %v298, %v278
    %v301 = vadd.f32 %v245, %v299
    %v302 = vadd.f32 %v246, %v300
    %s303 = sld [smem:[#allocation2 + $0x2]]
    %v304 = vstv %s303
    %v305 = vmul.f32 %v304, %v101
    %v306 = vmul.f32 %v304, %v102
    %s307 = sld [smem:[#allocation2 + $0x82]]
    %v308 = vstv %s307
    %v309 = vmul.f32 %v308, %v105
    %v310 = vmul.f32 %v308, %v106
    %v311 = vadd.f32 %v305, %v309
    %v312 = vadd.f32 %v306, %v310
    %s313 = sld [smem:[#allocation2 + $0x102]]
    %v314 = vstv %s313
    %v315 = vmul.f32 %v314, %v109
    %v316 = vmul.f32 %v314, %v110
    %v317 = vadd.f32 %v311, %v315
    %v318 = vadd.f32 %v312, %v316
    %s319 = sld [smem:[#allocation2 + $0x182]]
    %v320 = vstv %s319
    %v321 = vmul.f32 %v320, %v113
    %v322 = vmul.f32 %v320, %v114
    %v323 = vadd.f32 %v317, %v321
    %v324 = vadd.f32 %v318, %v322
    %s325 = sld [smem:[#allocation4 + $0x2]]
    %v326 = vstv %s325
    %v327 = vadd.f32 %v323, %v326
    %v328 = vadd.f32 %v324, %v326
    %vm329 = vcmp.gt.f32.partialorder %v327, 0.0
    %vm330 = vcmp.gt.f32.partialorder %v328, 0.0
    %v331 = vmul.f32 %v327, 0.1
    %v332 = vmul.f32 %v328, 0.1
    %v333 = vsel %vm329, %v327, %v331
    %v334 = vsel %vm330, %v328, %v332
    %s335 = sld [smem:[#allocation6 + $0x100]]
    %v336 = vstv %s335
    %v337 = vmul.f32 %v336, %v333
    %v338 = vmul.f32 %v336, %v334
    %v339 = vadd.f32 %v283, %v337
    %v340 = vadd.f32 %v284, %v338
    %s341 = sld [smem:[#allocation6 + $0x101]]
    %v342 = vstv %s341
    %v343 = vmul.f32 %v342, %v333
    %v344 = vmul.f32 %v342, %v334
    %v345 = vadd.f32 %v289, %v343
    %v346 = vadd.f32 %v290, %v344
    %s347 = sld [smem:[#allocation6 + $0x102]]
    %v348 = vstv %s347
    %v349 = vmul.f32 %v348, %v333
    %v350 = vmul.f32 %v348, %v334
    %v351 = vadd.f32 %v295, %v349
    %v352 = vadd.f32 %v296, %v350
    %s353 = sld [smem:[#allocation6 + $0x103]]
    %v354 = vstv %s353
    %v355 = vmul.f32 %v354, %v333
    %v356 = vmul.f32 %v354, %v334
    %v357 = vadd.f32 %v301, %v355
    %v358 = vadd.f32 %v302, %v356
    %s359 = sld [smem:[#allocation2 + $0x3]]
    %v360 = vstv %s359
    %v361 = vmul.f32 %v360, %v101
    %v362 = vmul.f32 %v360, %v102
    %s363 = sld [smem:[#allocation2 + $0x83]]
    %v364 = vstv %s363
    %v365 = vmul.f32 %v364, %v105
    %v366 = vmul.f32 %v364, %v106
    %v367 = vadd.f32 %v361, %v365
    %v368 = vadd.f32 %v362, %v366
    %s369 = sld [smem:[#allocation2 + $0x103]]
    %v370 = vstv %s369
    %v371 = vmul.f32 %v370, %v109
    %v372 = vmul.f32 %v370, %v110
    %v373 = vadd.f32 %v367, %v371
    %v374 = vadd.f32 %v368, %v372
    %s375 = sld [smem:[#allocation2 + $0x183]]
    %v376 = vstv %s375
    %v377 = vmul.f32 %v376, %v113
    %v378 = vmul.f32 %v376, %v114
    %v379 = vadd.f32 %v373, %v377
    %v380 = vadd.f32 %v374, %v378
    %s381 = sld [smem:[#allocation4 + $0x3]]
    %v382 = vstv %s381
    %v383 = vadd.f32 %v379, %v382
    %v384 = vadd.f32 %v380, %v382
    %vm385 = vcmp.gt.f32.partialorder %v383, 0.0
    %vm386 = vcmp.gt.f32.partialorder %v384, 0.0
    %v387 = vmul.f32 %v383, 0.1
    %v388 = vmul.f32 %v384, 0.1
    %v389 = vsel %vm385, %v383, %v387
    %v390 = vsel %vm386, %v384, %v388
    %s391 = sld [smem:[#allocation6 + $0x180]]
    %v392 = vstv %s391
    %v393 = vmul.f32 %v392, %v389
    %v394 = vmul.f32 %v392, %v390
    %v395 = vadd.f32 %v339, %v393
    %v396 = vadd.f32 %v340, %v394
    %s397 = sld [smem:[#allocation6 + $0x181]]
    %v398 = vstv %s397
    %v399 = vmul.f32 %v398, %v389
    %v400 = vmul.f32 %v398, %v390
    %v401 = vadd.f32 %v345, %v399
    %v402 = vadd.f32 %v346, %v400
    %s403 = sld [smem:[#allocation6 + $0x182]]
    %v404 = vstv %s403
    %v405 = vmul.f32 %v404, %v389
    %v406 = vmul.f32 %v404, %v390
    %v407 = vadd.f32 %v351, %v405
    %v408 = vadd.f32 %v352, %v406
    %s409 = sld [smem:[#allocation6 + $0x183]]
    %v410 = vstv %s409
    %v411 = vmul.f32 %v410, %v389
    %v412 = vmul.f32 %v410, %v390
    %v413 = vadd.f32 %v357, %v411
    %v414 = vadd.f32 %v358, %v412
    %s415 = sld [smem:[#allocation2 + $0x4]]
    %v416 = vstv %s415
    %v417 = vmul.f32 %v416, %v101
    %v418 = vmul.f32 %v416, %v102
    %s419 = sld [smem:[#allocation2 + $0x84]]
    %v420 = vstv %s419
    %v421 = vmul.f32 %v420, %v105
    %v422 = vmul.f32 %v420, %v106
    %v423 = vadd.f32 %v417, %v421
    %v424 = vadd.f32 %v418, %v422
    %s425 = sld [smem:[#allocation2 + $0x104]]
    %v426 = vstv %s425
    %v427 = vmul.f32 %v426, %v109
    %v428 = vmul.f32 %v426, %v110
    %v429 = vadd.f32 %v423, %v427
    %v430 = vadd.f32 %v424, %v428
    %s431 = sld [smem:[#allocation2 + $0x184]]
    %v432 = vstv %s431
    %v433 = vmul.f32 %v432, %v113
    %v434 = vmul.f32 %v432, %v114
    %v435 = vadd.f32 %v429, %v433
    %v436 = vadd.f32 %v430, %v434
    %s437 = sld [smem:[#allocation4 + $0x4]]
    %v438 = vstv %s437
    %v439 = vadd.f32 %v435, %v438
    %v440 = vadd.f32 %v436, %v438
    %vm441 = vcmp.gt.f32.partialorder %v439, 0.0
    %vm442 = vcmp.gt.f32.partialorder %v440, 0.0
    %v443 = vmul.f32 %v439, 0.1
    %v444 = vmul.f32 %v440, 0.1
    %v445 = vsel %vm441, %v439, %v443
    %v446 = vsel %vm442, %v440, %v444
    %s447 = sld [smem:[#allocation6 + $0x200]]
    %v448 = vstv %s447
    %v449 = vmul.f32 %v448, %v445
    %v450 = vmul.f32 %v448, %v446
    %v451 = vadd.f32 %v395, %v449
    %v452 = vadd.f32 %v396, %v450
    %s453 = sld [smem:[#allocation6 + $0x201]]
    %v454 = vstv %s453
    %v455 = vmul.f32 %v454, %v445
    %v456 = vmul.f32 %v454, %v446
    %v457 = vadd.f32 %v401, %v455
    %v458 = vadd.f32 %v402, %v456
    %s459 = sld [smem:[#allocation6 + $0x202]]
    %v460 = vstv %s459
    %v461 = vmul.f32 %v460, %v445
    %v462 = vmul.f32 %v460, %v446
    %v463 = vadd.f32 %v407, %v461
    %v464 = vadd.f32 %v408, %v462
    %s465 = sld [smem:[#allocation6 + $0x203]]
    %v466 = vstv %s465
    %v467 = vmul.f32 %v466, %v445
    %v468 = vmul.f32 %v466, %v446
    %v469 = vadd.f32 %v413, %v467
    %v470 = vadd.f32 %v414, %v468
    %s471 = sld [smem:[#allocation2 + $0x5]]
    %v472 = vstv %s471
    %v473 = vmul.f32 %v472, %v101
    %v474 = vmul.f32 %v472, %v102
    %s475 = sld [smem:[#allocation2 + $0x85]]
    %v476 = vstv %s475
    %v477 = vmul.f32 %v476, %v105
    %v478 = vmul.f32 %v476, %v106
    %v479 = vadd.f32 %v473, %v477
    %v480 = vadd.f32 %v474, %v478
    %s481 = sld [smem:[#allocation2 + $0x105]]
    %v482 = vstv %s481
    %v483 = vmul.f32 %v482, %v109
    %v484 = vmul.f32 %v482, %v110
    %v485 = vadd.f32 %v479, %v483
    %v486 = vadd.f32 %v480, %v484
    %s487 = sld [smem:[#allocation2 + $0x185]]
    %v488 = vstv %s487
    %v489 = vmul.f32 %v488, %v113
    %v490 = vmul.f32 %v488, %v114
    %v491 = vadd.f32 %v485, %v489
    %v492 = vadd.f32 %v486, %v490
    %s493 = sld [smem:[#allocation4 + $0x5]]
    %v494 = vstv %s493
    %v495 = vadd.f32 %v491, %v494
    %v496 = vadd.f32 %v492, %v494
    %vm497 = vcmp.gt.f32.partialorder %v495, 0.0
    %vm498 = vcmp.gt.f32.partialorder %v496, 0.0
    %v499 = vmul.f32 %v495, 0.1
    %v500 = vmul.f32 %v496, 0.1
    %v501 = vsel %vm497, %v495, %v499
    %v502 = vsel %vm498, %v496, %v500
    %s503 = sld [smem:[#allocation6 + $0x280]]
    %v504 = vstv %s503
    %v505 = vmul.f32 %v504, %v501
    %v506 = vmul.f32 %v504, %v502
    %v507 = vadd.f32 %v451, %v505
    %v508 = vadd.f32 %v452, %v506
    %s509 = sld [smem:[#allocation6 + $0x281]]
    %v510 = vstv %s509
    %v511 = vmul.f32 %v510, %v501
    %v512 = vmul.f32 %v510, %v502
    %v513 = vadd.f32 %v457, %v511
    %v514 = vadd.f32 %v458, %v512
    %s515 = sld [smem:[#allocation6 + $0x282]]
    %v516 = vstv %s515
    %v517 = vmul.f32 %v516, %v501
    %v518 = vmul.f32 %v516, %v502
    %v519 = vadd.f32 %v463, %v517
    %v520 = vadd.f32 %v464, %v518
    %s521 = sld [smem:[#allocation6 + $0x283]]
    %v522 = vstv %s521
    %v523 = vmul.f32 %v522, %v501
    %v524 = vmul.f32 %v522, %v502
    %v525 = vadd.f32 %v469, %v523
    %v526 = vadd.f32 %v470, %v524
    %s527 = sld [smem:[#allocation2 + $0x6]]
    %v528 = vstv %s527
    %v529 = vmul.f32 %v528, %v101
    %v530 = vmul.f32 %v528, %v102
    %s531 = sld [smem:[#allocation2 + $0x86]]
    %v532 = vstv %s531
    %v533 = vmul.f32 %v532, %v105
    %v534 = vmul.f32 %v532, %v106
    %v535 = vadd.f32 %v529, %v533
    %v536 = vadd.f32 %v530, %v534
    %s537 = sld [smem:[#allocation2 + $0x106]]
    %v538 = vstv %s537
    %v539 = vmul.f32 %v538, %v109
    %v540 = vmul.f32 %v538, %v110
    %v541 = vadd.f32 %v535, %v539
    %v542 = vadd.f32 %v536, %v540
    %s543 = sld [smem:[#allocation2 + $0x186]]
    %v544 = vstv %s543
    %v545 = vmul.f32 %v544, %v113
    %v546 = vmul.f32 %v544, %v114
    %v547 = vadd.f32 %v541, %v545
    %v548 = vadd.f32 %v542, %v546
    %s549 = sld [smem:[#allocation4 + $0x6]]
    %v550 = vstv %s549
    %v551 = vadd.f32 %v547, %v550
    %v552 = vadd.f32 %v548, %v550
    %vm553 = vcmp.gt.f32.partialorder %v551, 0.0
    %vm554 = vcmp.gt.f32.partialorder %v552, 0.0
    %v555 = vmul.f32 %v551, 0.1
    %v556 = vmul.f32 %v552, 0.1
    %v557 = vsel %vm553, %v551, %v555
    %v558 = vsel %vm554, %v552, %v556
    %s559 = sld [smem:[#allocation6 + $0x300]]
    %v560 = vstv %s559
    %v561 = vmul.f32 %v560, %v557
    %v562 = vmul.f32 %v560, %v558
    %v563 = vadd.f32 %v507, %v561
    %v564 = vadd.f32 %v508, %v562
    %s565 = sld [smem:[#allocation6 + $0x301]]
    %v566 = vstv %s565
    %v567 = vmul.f32 %v566, %v557
    %v568 = vmul.f32 %v566, %v558
    %v569 = vadd.f32 %v513, %v567
    %v570 = vadd.f32 %v514, %v568
    %s571 = sld [smem:[#allocation6 + $0x302]]
    %v572 = vstv %s571
    %v573 = vmul.f32 %v572, %v557
    %v574 = vmul.f32 %v572, %v558
    %v575 = vadd.f32 %v519, %v573
    %v576 = vadd.f32 %v520, %v574
    %s577 = sld [smem:[#allocation6 + $0x303]]
    %v578 = vstv %s577
    %v579 = vmul.f32 %v578, %v557
    %v580 = vmul.f32 %v578, %v558
    %v581 = vadd.f32 %v525, %v579
    %v582 = vadd.f32 %v526, %v580
    %s583 = sld [smem:[#allocation2 + $0x7]]
    %v584 = vstv %s583
    %v585 = vmul.f32 %v584, %v101
    %v586 = vmul.f32 %v584, %v102
    %s587 = sld [smem:[#allocation2 + $0x87]]
    %v588 = vstv %s587
    %v589 = vmul.f32 %v588, %v105
    %v590 = vmul.f32 %v588, %v106
    %v591 = vadd.f32 %v585, %v589
    %v592 = vadd.f32 %v586, %v590
    %s593 = sld [smem:[#allocation2 + $0x107]]
    %v594 = vstv %s593
    %v595 = vmul.f32 %v594, %v109
    %v596 = vmul.f32 %v594, %v110
    %v597 = vadd.f32 %v591, %v595
    %v598 = vadd.f32 %v592, %v596
    %s599 = sld [smem:[#allocation2 + $0x187]]
    %v600 = vstv %s599
    %v601 = vmul.f32 %v600, %v113
    %v602 = vmul.f32 %v600, %v114
    %v603 = vadd.f32 %v597, %v601
    %v604 = vadd.f32 %v598, %v602
    %s605 = sld [smem:[#allocation4 + $0x7]]
    %v606 = vstv %s605
    %v607 = vadd.f32 %v603, %v606
    %v608 = vadd.f32 %v604, %v606
    %vm609 = vcmp.gt.f32.partialorder %v607, 0.0
    %vm610 = vcmp.gt.f32.partialorder %v608, 0.0
    %v611 = vmul.f32 %v607, 0.1
    %v612 = vmul.f32 %v608, 0.1
    %v613 = vsel %vm609, %v607, %v611
    %v614 = vsel %vm610, %v608, %v612
    %s615 = sld [smem:[#allocation6 + $0x380]]
    %v616 = vstv %s615
    %v617 = vmul.f32 %v616, %v613
    %v618 = vmul.f32 %v616, %v614
    %v619 = vadd.f32 %v563, %v617
    %v620 = vadd.f32 %v564, %v618
    %s621 = sld [smem:[#allocation6 + $0x381]]
    %v622 = vstv %s621
    %v623 = vmul.f32 %v622, %v613
    %v624 = vmul.f32 %v622, %v614
    %v625 = vadd.f32 %v569, %v623
    %v626 = vadd.f32 %v570, %v624
    %s627 = sld [smem:[#allocation6 + $0x382]]
    %v628 = vstv %s627
    %v629 = vmul.f32 %v628, %v613
    %v630 = vmul.f32 %v628, %v614
    %v631 = vadd.f32 %v575, %v629
    %v632 = vadd.f32 %v576, %v630
    %s633 = sld [smem:[#allocation6 + $0x383]]
    %v634 = vstv %s633
    %v635 = vmul.f32 %v634, %v613
    %v636 = vmul.f32 %v634, %v614
    %v637 = vadd.f32 %v581, %v635
    %v638 = vadd.f32 %v582, %v636
    %s639 = sld [smem:[#allocation2 + $0x8]]
    %v640 = vstv %s639
    %v641 = vmul.f32 %v640, %v101
    %v642 = vmul.f32 %v640, %v102
    %s643 = sld [smem:[#allocation2 + $0x88]]
    %v644 = vstv %s643
    %v645 = vmul.f32 %v644, %v105
    %v646 = vmul.f32 %v644, %v106
    %v647 = vadd.f32 %v641, %v645
    %v648 = vadd.f32 %v642, %v646
    %s649 = sld [smem:[#allocation2 + $0x108]]
    %v650 = vstv %s649
    %v651 = vmul.f32 %v650, %v109
    %v652 = vmul.f32 %v650, %v110
    %v653 = vadd.f32 %v647, %v651
    %v654 = vadd.f32 %v648, %v652
    %s655 = sld [smem:[#allocation2 + $0x188]]
    %v656 = vstv %s655
    %v657 = vmul.f32 %v656, %v113
    %v658 = vmul.f32 %v656, %v114
    %v659 = vadd.f32 %v653, %v657
    %v660 = vadd.f32 %v654, %v658
    %s661 = sld [smem:[#allocation4 + $0x8]]
    %v662 = vstv %s661
    %v663 = vadd.f32 %v659, %v662
    %v664 = vadd.f32 %v660, %v662
    %vm665 = vcmp.gt.f32.partialorder %v663, 0.0
    %vm666 = vcmp.gt.f32.partialorder %v664, 0.0
    %v667 = vmul.f32 %v663, 0.1
    %v668 = vmul.f32 %v664, 0.1
    %v669 = vsel %vm665, %v663, %v667
    %v670 = vsel %vm666, %v664, %v668
    %s671 = sld [smem:[#allocation6 + $0x400]]
    %v672 = vstv %s671
    %v673 = vmul.f32 %v672, %v669
    %v674 = vmul.f32 %v672, %v670
    %v675 = vadd.f32 %v619, %v673
    %v676 = vadd.f32 %v620, %v674
    %s677 = sld [smem:[#allocation6 + $0x401]]
    %v678 = vstv %s677
    %v679 = vmul.f32 %v678, %v669
    %v680 = vmul.f32 %v678, %v670
    %v681 = vadd.f32 %v625, %v679
    %v682 = vadd.f32 %v626, %v680
    %s683 = sld [smem:[#allocation6 + $0x402]]
    %v684 = vstv %s683
    %v685 = vmul.f32 %v684, %v669
    %v686 = vmul.f32 %v684, %v670
    %v687 = vadd.f32 %v631, %v685
    %v688 = vadd.f32 %v632, %v686
    %s689 = sld [smem:[#allocation6 + $0x403]]
    %v690 = vstv %s689
    %v691 = vmul.f32 %v690, %v669
    %v692 = vmul.f32 %v690, %v670
    %v693 = vadd.f32 %v637, %v691
    %v694 = vadd.f32 %v638, %v692
    %s695 = sld [smem:[#allocation2 + $0x9]]
    %v696 = vstv %s695
    %v697 = vmul.f32 %v696, %v101
    %v698 = vmul.f32 %v696, %v102
    %s699 = sld [smem:[#allocation2 + $0x89]]
    %v700 = vstv %s699
    %v701 = vmul.f32 %v700, %v105
    %v702 = vmul.f32 %v700, %v106
    %v703 = vadd.f32 %v697, %v701
    %v704 = vadd.f32 %v698, %v702
    %s705 = sld [smem:[#allocation2 + $0x109]]
    %v706 = vstv %s705
    %v707 = vmul.f32 %v706, %v109
    %v708 = vmul.f32 %v706, %v110
    %v709 = vadd.f32 %v703, %v707
    %v710 = vadd.f32 %v704, %v708
    %s711 = sld [smem:[#allocation2 + $0x189]]
    %v712 = vstv %s711
    %v713 = vmul.f32 %v712, %v113
    %v714 = vmul.f32 %v712, %v114
    %v715 = vadd.f32 %v709, %v713
    %v716 = vadd.f32 %v710, %v714
    %s717 = sld [smem:[#allocation4 + $0x9]]
    %v718 = vstv %s717
    %v719 = vadd.f32 %v715, %v718
    %v720 = vadd.f32 %v716, %v718
    %vm721 = vcmp.gt.f32.partialorder %v719, 0.0
    %vm722 = vcmp.gt.f32.partialorder %v720, 0.0
    %v723 = vmul.f32 %v719, 0.1
    %v724 = vmul.f32 %v720, 0.1
    %v725 = vsel %vm721, %v719, %v723
    %v726 = vsel %vm722, %v720, %v724
    %s727 = sld [smem:[#allocation6 + $0x480]]
    %v728 = vstv %s727
    %v729 = vmul.f32 %v728, %v725
    %v730 = vmul.f32 %v728, %v726
    %v731 = vadd.f32 %v675, %v729
    %v732 = vadd.f32 %v676, %v730
    %s733 = sld [smem:[#allocation6 + $0x481]]
    %v734 = vstv %s733
    %v735 = vmul.f32 %v734, %v725
    %v736 = vmul.f32 %v734, %v726
    %v737 = vadd.f32 %v681, %v735
    %v738 = vadd.f32 %v682, %v736
    %s739 = sld [smem:[#allocation6 + $0x482]]
    %v740 = vstv %s739
    %v741 = vmul.f32 %v740, %v725
    %v742 = vmul.f32 %v740, %v726
    %v743 = vadd.f32 %v687, %v741
    %v744 = vadd.f32 %v688, %v742
    %s745 = sld [smem:[#allocation6 + $0x483]]
    %v746 = vstv %s745
    %v747 = vmul.f32 %v746, %v725
    %v748 = vmul.f32 %v746, %v726
    %v749 = vadd.f32 %v693, %v747
    %v750 = vadd.f32 %v694, %v748
    %s751 = sld [smem:[#allocation2 + $0xa]]
    %v752 = vstv %s751
    %v753 = vmul.f32 %v752, %v101
    %v754 = vmul.f32 %v752, %v102
    %s755 = sld [smem:[#allocation2 + $0x8a]]
    %v756 = vstv %s755
    %v757 = vmul.f32 %v756, %v105
    %v758 = vmul.f32 %v756, %v106
    %v759 = vadd.f32 %v753, %v757
    %v760 = vadd.f32 %v754, %v758
    %s761 = sld [smem:[#allocation2 + $0x10a]]
    %v762 = vstv %s761
    %v763 = vmul.f32 %v762, %v109
    %v764 = vmul.f32 %v762, %v110
    %v765 = vadd.f32 %v759, %v763
    %v766 = vadd.f32 %v760, %v764
    %s767 = sld [smem:[#allocation2 + $0x18a]]
    %v768 = vstv %s767
    %v769 = vmul.f32 %v768, %v113
    %v770 = vmul.f32 %v768, %v114
    %v771 = vadd.f32 %v765, %v769
    %v772 = vadd.f32 %v766, %v770
    %s773 = sld [smem:[#allocation4 + $0xa]]
    %v774 = vstv %s773
    %v775 = vadd.f32 %v771, %v774
    %v776 = vadd.f32 %v772, %v774
    %vm777 = vcmp.gt.f32.partialorder %v775, 0.0
    %vm778 = vcmp.gt.f32.partialorder %v776, 0.0
    %v779 = vmul.f32 %v775, 0.1
    %v780 = vmul.f32 %v776, 0.1
    %v781 = vsel %vm777, %v775, %v779
    %v782 = vsel %vm778, %v776, %v780
    %s783 = sld [smem:[#allocation6 + $0x500]]
    %v784 = vstv %s783
    %v785 = vmul.f32 %v784, %v781
    %v786 = vmul.f32 %v784, %v782
    %v787 = vadd.f32 %v731, %v785
    %v788 = vadd.f32 %v732, %v786
    %s789 = sld [smem:[#allocation6 + $0x501]]
    %v790 = vstv %s789
    %v791 = vmul.f32 %v790, %v781
    %v792 = vmul.f32 %v790, %v782
    %v793 = vadd.f32 %v737, %v791
    %v794 = vadd.f32 %v738, %v792
    %s795 = sld [smem:[#allocation6 + $0x502]]
    %v796 = vstv %s795
    %v797 = vmul.f32 %v796, %v781
    %v798 = vmul.f32 %v796, %v782
    %v799 = vadd.f32 %v743, %v797
    %v800 = vadd.f32 %v744, %v798
    %s801 = sld [smem:[#allocation6 + $0x503]]
    %v802 = vstv %s801
    %v803 = vmul.f32 %v802, %v781
    %v804 = vmul.f32 %v802, %v782
    %v805 = vadd.f32 %v749, %v803
    %v806 = vadd.f32 %v750, %v804
    %s807 = sld [smem:[#allocation2 + $0xb]]
    %v808 = vstv %s807
    %v809 = vmul.f32 %v808, %v101
    %v810 = vmul.f32 %v808, %v102
    %s811 = sld [smem:[#allocation2 + $0x8b]]
    %v812 = vstv %s811
    %v813 = vmul.f32 %v812, %v105
    %v814 = vmul.f32 %v812, %v106
    %v815 = vadd.f32 %v809, %v813
    %v816 = vadd.f32 %v810, %v814
    %s817 = sld [smem:[#allocation2 + $0x10b]]
    %v818 = vstv %s817
    %v819 = vmul.f32 %v818, %v109
    %v820 = vmul.f32 %v818, %v110
    %v821 = vadd.f32 %v815, %v819
    %v822 = vadd.f32 %v816, %v820
    %s823 = sld [smem:[#allocation2 + $0x18b]]
    %v824 = vstv %s823
    %v825 = vmul.f32 %v824, %v113
    %v826 = vmul.f32 %v824, %v114
    %v827 = vadd.f32 %v821, %v825
    %v828 = vadd.f32 %v822, %v826
    %s829 = sld [smem:[#allocation4 + $0xb]]
    %v830 = vstv %s829
    %v831 = vadd.f32 %v827, %v830
    %v832 = vadd.f32 %v828, %v830
    %vm833 = vcmp.gt.f32.partialorder %v831, 0.0
    %vm834 = vcmp.gt.f32.partialorder %v832, 0.0
    %v835 = vmul.f32 %v831, 0.1
    %v836 = vmul.f32 %v832, 0.1
    %v837 = vsel %vm833, %v831, %v835
    %v838 = vsel %vm834, %v832, %v836
    %s839 = sld [smem:[#allocation6 + $0x580]]
    %v840 = vstv %s839
    %v841 = vmul.f32 %v840, %v837
    %v842 = vmul.f32 %v840, %v838
    %v843 = vadd.f32 %v787, %v841
    %v844 = vadd.f32 %v788, %v842
    %s845 = sld [smem:[#allocation6 + $0x581]]
    %v846 = vstv %s845
    %v847 = vmul.f32 %v846, %v837
    %v848 = vmul.f32 %v846, %v838
    %v849 = vadd.f32 %v793, %v847
    %v850 = vadd.f32 %v794, %v848
    %s851 = sld [smem:[#allocation6 + $0x582]]
    %v852 = vstv %s851
    %v853 = vmul.f32 %v852, %v837
    %v854 = vmul.f32 %v852, %v838
    %v855 = vadd.f32 %v799, %v853
    %v856 = vadd.f32 %v800, %v854
    %s857 = sld [smem:[#allocation6 + $0x583]]
    %v858 = vstv %s857
    %v859 = vmul.f32 %v858, %v837
    %v860 = vmul.f32 %v858, %v838
    %v861 = vadd.f32 %v805, %v859
    %v862 = vadd.f32 %v806, %v860
    %s863 = sld [smem:[#allocation2 + $0xc]]
    %v864 = vstv %s863
    %v865 = vmul.f32 %v864, %v101
    %v866 = vmul.f32 %v864, %v102
    %s867 = sld [smem:[#allocation2 + $0x8c]]
    %v868 = vstv %s867
    %v869 = vmul.f32 %v868, %v105
    %v870 = vmul.f32 %v868, %v106
    %v871 = vadd.f32 %v865, %v869
    %v872 = vadd.f32 %v866, %v870
    %s873 = sld [smem:[#allocation2 + $0x10c]]
    %v874 = vstv %s873
    %v875 = vmul.f32 %v874, %v109
    %v876 = vmul.f32 %v874, %v110
    %v877 = vadd.f32 %v871, %v875
    %v878 = vadd.f32 %v872, %v876
    %s879 = sld [smem:[#allocation2 + $0x18c]]
    %v880 = vstv %s879
    %v881 = vmul.f32 %v880, %v113
    %v882 = vmul.f32 %v880, %v114
    %v883 = vadd.f32 %v877, %v881
    %v884 = vadd.f32 %v878, %v882
    %s885 = sld [smem:[#allocation4 + $0xc]]
    %v886 = vstv %s885
    %v887 = vadd.f32 %v883, %v886
    %v888 = vadd.f32 %v884, %v886
    %vm889 = vcmp.gt.f32.partialorder %v887, 0.0
    %vm890 = vcmp.gt.f32.partialorder %v888, 0.0
    %v891 = vmul.f32 %v887, 0.1
    %v892 = vmul.f32 %v888, 0.1
    %v893 = vsel %vm889, %v887, %v891
    %v894 = vsel %vm890, %v888, %v892
    %s895 = sld [smem:[#allocation6 + $0x600]]
    %v896 = vstv %s895
    %v897 = vmul.f32 %v896, %v893
    %v898 = vmul.f32 %v896, %v894
    %v899 = vadd.f32 %v843, %v897
    %v900 = vadd.f32 %v844, %v898
    %s901 = sld [smem:[#allocation6 + $0x601]]
    %v902 = vstv %s901
    %v903 = vmul.f32 %v902, %v893
    %v904 = vmul.f32 %v902, %v894
    %v905 = vadd.f32 %v849, %v903
    %v906 = vadd.f32 %v850, %v904
    %s907 = sld [smem:[#allocation6 + $0x602]]
    %v908 = vstv %s907
    %v909 = vmul.f32 %v908, %v893
    %v910 = vmul.f32 %v908, %v894
    %v911 = vadd.f32 %v855, %v909
    %v912 = vadd.f32 %v856, %v910
    %s913 = sld [smem:[#allocation6 + $0x603]]
    %v914 = vstv %s913
    %v915 = vmul.f32 %v914, %v893
    %v916 = vmul.f32 %v914, %v894
    %v917 = vadd.f32 %v861, %v915
    %v918 = vadd.f32 %v862, %v916
    %s919 = sld [smem:[#allocation2 + $0xd]]
    %v920 = vstv %s919
    %v921 = vmul.f32 %v920, %v101
    %v922 = vmul.f32 %v920, %v102
    %s923 = sld [smem:[#allocation2 + $0x8d]]
    %v924 = vstv %s923
    %v925 = vmul.f32 %v924, %v105
    %v926 = vmul.f32 %v924, %v106
    %v927 = vadd.f32 %v921, %v925
    %v928 = vadd.f32 %v922, %v926
    %s929 = sld [smem:[#allocation2 + $0x10d]]
    %v930 = vstv %s929
    %v931 = vmul.f32 %v930, %v109
    %v932 = vmul.f32 %v930, %v110
    %v933 = vadd.f32 %v927, %v931
    %v934 = vadd.f32 %v928, %v932
    %s935 = sld [smem:[#allocation2 + $0x18d]]
    %v936 = vstv %s935
    %v937 = vmul.f32 %v936, %v113
    %v938 = vmul.f32 %v936, %v114
    %v939 = vadd.f32 %v933, %v937
    %v940 = vadd.f32 %v934, %v938
    %s941 = sld [smem:[#allocation4 + $0xd]]
    %v942 = vstv %s941
    %v943 = vadd.f32 %v939, %v942
    %v944 = vadd.f32 %v940, %v942
    %vm945 = vcmp.gt.f32.partialorder %v943, 0.0
    %vm946 = vcmp.gt.f32.partialorder %v944, 0.0
    %v947 = vmul.f32 %v943, 0.1
    %v948 = vmul.f32 %v944, 0.1
    %v949 = vsel %vm945, %v943, %v947
    %v950 = vsel %vm946, %v944, %v948
    %s951 = sld [smem:[#allocation6 + $0x680]]
    %v952 = vstv %s951
    %v953 = vmul.f32 %v952, %v949
    %v954 = vmul.f32 %v952, %v950
    %v955 = vadd.f32 %v899, %v953
    %v956 = vadd.f32 %v900, %v954
    %s957 = sld [smem:[#allocation6 + $0x681]]
    %v958 = vstv %s957
    %v959 = vmul.f32 %v958, %v949
    %v960 = vmul.f32 %v958, %v950
    %v961 = vadd.f32 %v905, %v959
    %v962 = vadd.f32 %v906, %v960
    %s963 = sld [smem:[#allocation6 + $0x682]]
    %v964 = vstv %s963
    %v965 = vmul.f32 %v964, %v949
    %v966 = vmul.f32 %v964, %v950
    %v967 = vadd.f32 %v911, %v965
    %v968 = vadd.f32 %v912, %v966
    %s969 = sld [smem:[#allocation6 + $0x683]]
    %v970 = vstv %s969
    %v971 = vmul.f32 %v970, %v949
    %v972 = vmul.f32 %v970, %v950
    %v973 = vadd.f32 %v917, %v971
    %v974 = vadd.f32 %v918, %v972
    %s975 = sld [smem:[#allocation2 + $0xe]]
    %v976 = vstv %s975
    %v977 = vmul.f32 %v976, %v101
    %v978 = vmul.f32 %v976, %v102
    %s979 = sld [smem:[#allocation2 + $0x8e]]
    %v980 = vstv %s979
    %v981 = vmul.f32 %v980, %v105
    %v982 = vmul.f32 %v980, %v106
    %v983 = vadd.f32 %v977, %v981
    %v984 = vadd.f32 %v978, %v982
    %s985 = sld [smem:[#allocation2 + $0x10e]]
    %v986 = vstv %s985
    %v987 = vmul.f32 %v986, %v109
    %v988 = vmul.f32 %v986, %v110
    %v989 = vadd.f32 %v983, %v987
    %v990 = vadd.f32 %v984, %v988
    %s991 = sld [smem:[#allocation2 + $0x18e]]
    %v992 = vstv %s991
    %v993 = vmul.f32 %v992, %v113
    %v994 = vmul.f32 %v992, %v114
    %v995 = vadd.f32 %v989, %v993
    %v996 = vadd.f32 %v990, %v994
    %s997 = sld [smem:[#allocation4 + $0xe]]
    %v998 = vstv %s997
    %v999 = vadd.f32 %v995, %v998
    %v1000 = vadd.f32 %v996, %v998
    %vm1001 = vcmp.gt.f32.partialorder %v999, 0.0
    %vm1002 = vcmp.gt.f32.partialorder %v1000, 0.0
    %v1003 = vmul.f32 %v999, 0.1
    %v1004 = vmul.f32 %v1000, 0.1
    %v1005 = vsel %vm1001, %v999, %v1003
    %v1006 = vsel %vm1002, %v1000, %v1004
    %s1007 = sld [smem:[#allocation6 + $0x700]]
    %v1008 = vstv %s1007
    %v1009 = vmul.f32 %v1008, %v1005
    %v1010 = vmul.f32 %v1008, %v1006
    %v1011 = vadd.f32 %v955, %v1009
    %v1012 = vadd.f32 %v956, %v1010
    %s1013 = sld [smem:[#allocation6 + $0x701]]
    %v1014 = vstv %s1013
    %v1015 = vmul.f32 %v1014, %v1005
    %v1016 = vmul.f32 %v1014, %v1006
    %v1017 = vadd.f32 %v961, %v1015
    %v1018 = vadd.f32 %v962, %v1016
    %s1019 = sld [smem:[#allocation6 + $0x702]]
    %v1020 = vstv %s1019
    %v1021 = vmul.f32 %v1020, %v1005
    %v1022 = vmul.f32 %v1020, %v1006
    %v1023 = vadd.f32 %v967, %v1021
    %v1024 = vadd.f32 %v968, %v1022
    %s1025 = sld [smem:[#allocation6 + $0x703]]
    %v1026 = vstv %s1025
    %v1027 = vmul.f32 %v1026, %v1005
    %v1028 = vmul.f32 %v1026, %v1006
    %v1029 = vadd.f32 %v973, %v1027
    %v1030 = vadd.f32 %v974, %v1028
    %s1031 = sld [smem:[#allocation2 + $0xf]]
    %v1032 = vstv %s1031
    %v1033 = vmul.f32 %v1032, %v101
    %v1034 = vmul.f32 %v1032, %v102
    %s1035 = sld [smem:[#allocation2 + $0x8f]]
    %v1036 = vstv %s1035
    %v1037 = vmul.f32 %v1036, %v105
    %v1038 = vmul.f32 %v1036, %v106
    %v1039 = vadd.f32 %v1033, %v1037
    %v1040 = vadd.f32 %v1034, %v1038
    %s1041 = sld [smem:[#allocation2 + $0x10f]]
    %v1042 = vstv %s1041
    %v1043 = vmul.f32 %v1042, %v109
    %v1044 = vmul.f32 %v1042, %v110
    %v1045 = vadd.f32 %v1039, %v1043
    %v1046 = vadd.f32 %v1040, %v1044
    %s1047 = sld [smem:[#allocation2 + $0x18f]]
    %v1048 = vstv %s1047
    %v1049 = vmul.f32 %v1048, %v113
    %v1050 = vmul.f32 %v1048, %v114
    %v1051 = vadd.f32 %v1045, %v1049
    %v1052 = vadd.f32 %v1046, %v1050
    %s1053 = sld [smem:[#allocation4 + $0xf]]
    %v1054 = vstv %s1053
    %v1055 = vadd.f32 %v1051, %v1054
    %v1056 = vadd.f32 %v1052, %v1054
    %vm1057 = vcmp.gt.f32.partialorder %v1055, 0.0
    %vm1058 = vcmp.gt.f32.partialorder %v1056, 0.0
    %v1059 = vmul.f32 %v1055, 0.1
    %v1060 = vmul.f32 %v1056, 0.1
    %v1061 = vsel %vm1057, %v1055, %v1059
    %v1062 = vsel %vm1058, %v1056, %v1060
    %s1063 = sld [smem:[#allocation6 + $0x780]]
    %v1064 = vstv %s1063
    %v1065 = vmul.f32 %v1064, %v1061
    %v1066 = vmul.f32 %v1064, %v1062
    %v1067 = vadd.f32 %v1011, %v1065
    %v1068 = vadd.f32 %v1012, %v1066
    %s1069 = sld [smem:[#allocation6 + $0x781]]
    %v1070 = vstv %s1069
    %v1071 = vmul.f32 %v1070, %v1061
    %v1072 = vmul.f32 %v1070, %v1062
    %v1073 = vadd.f32 %v1017, %v1071
    %v1074 = vadd.f32 %v1018, %v1072
    %s1075 = sld [smem:[#allocation6 + $0x782]]
    %v1076 = vstv %s1075
    %v1077 = vmul.f32 %v1076, %v1061
    %v1078 = vmul.f32 %v1076, %v1062
    %v1079 = vadd.f32 %v1023, %v1077
    %v1080 = vadd.f32 %v1024, %v1078
    %s1081 = sld [smem:[#allocation6 + $0x783]]
    %v1082 = vstv %s1081
    %v1083 = vmul.f32 %v1082, %v1061
    %v1084 = vmul.f32 %v1082, %v1062
    %v1085 = vadd.f32 %v1029, %v1083
    %v1086 = vadd.f32 %v1030, %v1084
    %s1087 = sld [smem:[#allocation2 + $0x10]]
    %v1088 = vstv %s1087
    %v1089 = vmul.f32 %v1088, %v101
    %v1090 = vmul.f32 %v1088, %v102
    %s1091 = sld [smem:[#allocation2 + $0x90]]
    %v1092 = vstv %s1091
    %v1093 = vmul.f32 %v1092, %v105
    %v1094 = vmul.f32 %v1092, %v106
    %v1095 = vadd.f32 %v1089, %v1093
    %v1096 = vadd.f32 %v1090, %v1094
    %s1097 = sld [smem:[#allocation2 + $0x110]]
    %v1098 = vstv %s1097
    %v1099 = vmul.f32 %v1098, %v109
    %v1100 = vmul.f32 %v1098, %v110
    %v1101 = vadd.f32 %v1095, %v1099
    %v1102 = vadd.f32 %v1096, %v1100
    %s1103 = sld [smem:[#allocation2 + $0x190]]
    %v1104 = vstv %s1103
    %v1105 = vmul.f32 %v1104, %v113
    %v1106 = vmul.f32 %v1104, %v114
    %v1107 = vadd.f32 %v1101, %v1105
    %v1108 = vadd.f32 %v1102, %v1106
    %s1109 = sld [smem:[#allocation4 + $0x10]]
    %v1110 = vstv %s1109
    %v1111 = vadd.f32 %v1107, %v1110
    %v1112 = vadd.f32 %v1108, %v1110
    %vm1113 = vcmp.gt.f32.partialorder %v1111, 0.0
    %vm1114 = vcmp.gt.f32.partialorder %v1112, 0.0
    %v1115 = vmul.f32 %v1111, 0.1
    %v1116 = vmul.f32 %v1112, 0.1
    %v1117 = vsel %vm1113, %v1111, %v1115
    %v1118 = vsel %vm1114, %v1112, %v1116
    %s1119 = sld [smem:[#allocation6 + $0x800]]
    %v1120 = vstv %s1119
    %v1121 = vmul.f32 %v1120, %v1117
    %v1122 = vmul.f32 %v1120, %v1118
    %v1123 = vadd.f32 %v1067, %v1121
    %v1124 = vadd.f32 %v1068, %v1122
    %s1125 = sld [smem:[#allocation6 + $0x801]]
    %v1126 = vstv %s1125
    %v1127 = vmul.f32 %v1126, %v1117
    %v1128 = vmul.f32 %v1126, %v1118
    %v1129 = vadd.f32 %v1073, %v1127
    %v1130 = vadd.f32 %v1074, %v1128
    %s1131 = sld [smem:[#allocation6 + $0x802]]
    %v1132 = vstv %s1131
    %v1133 = vmul.f32 %v1132, %v1117
    %v1134 = vmul.f32 %v1132, %v1118
    %v1135 = vadd.f32 %v1079, %v1133
    %v1136 = vadd.f32 %v1080, %v1134
    %s1137 = sld [smem:[#allocation6 + $0x803]]
    %v1138 = vstv %s1137
    %v1139 = vmul.f32 %v1138, %v1117
    %v1140 = vmul.f32 %v1138, %v1118
    %v1141 = vadd.f32 %v1085, %v1139
    %v1142 = vadd.f32 %v1086, %v1140
    %s1143 = sld [smem:[#allocation2 + $0x11]]
    %v1144 = vstv %s1143
    %v1145 = vmul.f32 %v1144, %v101
    %v1146 = vmul.f32 %v1144, %v102
    %s1147 = sld [smem:[#allocation2 + $0x91]]
    %v1148 = vstv %s1147
    %v1149 = vmul.f32 %v1148, %v105
    %v1150 = vmul.f32 %v1148, %v106
    %v1151 = vadd.f32 %v1145, %v1149
    %v1152 = vadd.f32 %v1146, %v1150
    %s1153 = sld [smem:[#allocation2 + $0x111]]
    %v1154 = vstv %s1153
    %v1155 = vmul.f32 %v1154, %v109
    %v1156 = vmul.f32 %v1154, %v110
    %v1157 = vadd.f32 %v1151, %v1155
    %v1158 = vadd.f32 %v1152, %v1156
    %s1159 = sld [smem:[#allocation2 + $0x191]]
    %v1160 = vstv %s1159
    %v1161 = vmul.f32 %v1160, %v113
    %v1162 = vmul.f32 %v1160, %v114
    %v1163 = vadd.f32 %v1157, %v1161
    %v1164 = vadd.f32 %v1158, %v1162
    %s1165 = sld [smem:[#allocation4 + $0x11]]
    %v1166 = vstv %s1165
    %v1167 = vadd.f32 %v1163, %v1166
    %v1168 = vadd.f32 %v1164, %v1166
    %vm1169 = vcmp.gt.f32.partialorder %v1167, 0.0
    %vm1170 = vcmp.gt.f32.partialorder %v1168, 0.0
    %v1171 = vmul.f32 %v1167, 0.1
    %v1172 = vmul.f32 %v1168, 0.1
    %v1173 = vsel %vm1169, %v1167, %v1171
    %v1174 = vsel %vm1170, %v1168, %v1172
    %s1175 = sld [smem:[#allocation6 + $0x880]]
    %v1176 = vstv %s1175
    %v1177 = vmul.f32 %v1176, %v1173
    %v1178 = vmul.f32 %v1176, %v1174
    %v1179 = vadd.f32 %v1123, %v1177
    %v1180 = vadd.f32 %v1124, %v1178
    %s1181 = sld [smem:[#allocation6 + $0x881]]
    %v1182 = vstv %s1181
    %v1183 = vmul.f32 %v1182, %v1173
    %v1184 = vmul.f32 %v1182, %v1174
    %v1185 = vadd.f32 %v1129, %v1183
    %v1186 = vadd.f32 %v1130, %v1184
    %s1187 = sld [smem:[#allocation6 + $0x882]]
    %v1188 = vstv %s1187
    %v1189 = vmul.f32 %v1188, %v1173
    %v1190 = vmul.f32 %v1188, %v1174
    %v1191 = vadd.f32 %v1135, %v1189
    %v1192 = vadd.f32 %v1136, %v1190
    %s1193 = sld [smem:[#allocation6 + $0x883]]
    %v1194 = vstv %s1193
    %v1195 = vmul.f32 %v1194, %v1173
    %v1196 = vmul.f32 %v1194, %v1174
    %v1197 = vadd.f32 %v1141, %v1195
    %v1198 = vadd.f32 %v1142, %v1196
    %s1199 = sld [smem:[#allocation2 + $0x12]]
    %v1200 = vstv %s1199
    %v1201 = vmul.f32 %v1200, %v101
    %v1202 = vmul.f32 %v1200, %v102
    %s1203 = sld [smem:[#allocation2 + $0x92]]
    %v1204 = vstv %s1203
    %v1205 = vmul.f32 %v1204, %v105
    %v1206 = vmul.f32 %v1204, %v106
    %v1207 = vadd.f32 %v1201, %v1205
    %v1208 = vadd.f32 %v1202, %v1206
    %s1209 = sld [smem:[#allocation2 + $0x112]]
    %v1210 = vstv %s1209
    %v1211 = vmul.f32 %v1210, %v109
    %v1212 = vmul.f32 %v1210, %v110
    %v1213 = vadd.f32 %v1207, %v1211
    %v1214 = vadd.f32 %v1208, %v1212
    %s1215 = sld [smem:[#allocation2 + $0x192]]
    %v1216 = vstv %s1215
    %v1217 = vmul.f32 %v1216, %v113
    %v1218 = vmul.f32 %v1216, %v114
    %v1219 = vadd.f32 %v1213, %v1217
    %v1220 = vadd.f32 %v1214, %v1218
    %s1221 = sld [smem:[#allocation4 + $0x12]]
    %v1222 = vstv %s1221
    %v1223 = vadd.f32 %v1219, %v1222
    %v1224 = vadd.f32 %v1220, %v1222
    %vm1225 = vcmp.gt.f32.partialorder %v1223, 0.0
    %vm1226 = vcmp.gt.f32.partialorder %v1224, 0.0
    %v1227 = vmul.f32 %v1223, 0.1
    %v1228 = vmul.f32 %v1224, 0.1
    %v1229 = vsel %vm1225, %v1223, %v1227
    %v1230 = vsel %vm1226, %v1224, %v1228
    %s1231 = sld [smem:[#allocation6 + $0x900]]
    %v1232 = vstv %s1231
    %v1233 = vmul.f32 %v1232, %v1229
    %v1234 = vmul.f32 %v1232, %v1230
    %v1235 = vadd.f32 %v1179, %v1233
    %v1236 = vadd.f32 %v1180, %v1234
    %s1237 = sld [smem:[#allocation6 + $0x901]]
    %v1238 = vstv %s1237
    %v1239 = vmul.f32 %v1238, %v1229
    %v1240 = vmul.f32 %v1238, %v1230
    %v1241 = vadd.f32 %v1185, %v1239
    %v1242 = vadd.f32 %v1186, %v1240
    %s1243 = sld [smem:[#allocation6 + $0x902]]
    %v1244 = vstv %s1243
    %v1245 = vmul.f32 %v1244, %v1229
    %v1246 = vmul.f32 %v1244, %v1230
    %v1247 = vadd.f32 %v1191, %v1245
    %v1248 = vadd.f32 %v1192, %v1246
    %s1249 = sld [smem:[#allocation6 + $0x903]]
    %v1250 = vstv %s1249
    %v1251 = vmul.f32 %v1250, %v1229
    %v1252 = vmul.f32 %v1250, %v1230
    %v1253 = vadd.f32 %v1197, %v1251
    %v1254 = vadd.f32 %v1198, %v1252
    %s1255 = sld [smem:[#allocation2 + $0x13]]
    %v1256 = vstv %s1255
    %v1257 = vmul.f32 %v1256, %v101
    %v1258 = vmul.f32 %v1256, %v102
    %s1259 = sld [smem:[#allocation2 + $0x93]]
    %v1260 = vstv %s1259
    %v1261 = vmul.f32 %v1260, %v105
    %v1262 = vmul.f32 %v1260, %v106
    %v1263 = vadd.f32 %v1257, %v1261
    %v1264 = vadd.f32 %v1258, %v1262
    %s1265 = sld [smem:[#allocation2 + $0x113]]
    %v1266 = vstv %s1265
    %v1267 = vmul.f32 %v1266, %v109
    %v1268 = vmul.f32 %v1266, %v110
    %v1269 = vadd.f32 %v1263, %v1267
    %v1270 = vadd.f32 %v1264, %v1268
    %s1271 = sld [smem:[#allocation2 + $0x193]]
    %v1272 = vstv %s1271
    %v1273 = vmul.f32 %v1272, %v113
    %v1274 = vmul.f32 %v1272, %v114
    %v1275 = vadd.f32 %v1269, %v1273
    %v1276 = vadd.f32 %v1270, %v1274
    %s1277 = sld [smem:[#allocation4 + $0x13]]
    %v1278 = vstv %s1277
    %v1279 = vadd.f32 %v1275, %v1278
    %v1280 = vadd.f32 %v1276, %v1278
    %vm1281 = vcmp.gt.f32.partialorder %v1279, 0.0
    %vm1282 = vcmp.gt.f32.partialorder %v1280, 0.0
    %v1283 = vmul.f32 %v1279, 0.1
    %v1284 = vmul.f32 %v1280, 0.1
    %v1285 = vsel %vm1281, %v1279, %v1283
    %v1286 = vsel %vm1282, %v1280, %v1284
    %s1287 = sld [smem:[#allocation6 + $0x980]]
    %v1288 = vstv %s1287
    %v1289 = vmul.f32 %v1288, %v1285
    %v1290 = vmul.f32 %v1288, %v1286
    %v1291 = vadd.f32 %v1235, %v1289
    %v1292 = vadd.f32 %v1236, %v1290
    %s1293 = sld [smem:[#allocation6 + $0x981]]
    %v1294 = vstv %s1293
    %v1295 = vmul.f32 %v1294, %v1285
    %v1296 = vmul.f32 %v1294, %v1286
    %v1297 = vadd.f32 %v1241, %v1295
    %v1298 = vadd.f32 %v1242, %v1296
    %s1299 = sld [smem:[#allocation6 + $0x982]]
    %v1300 = vstv %s1299
    %v1301 = vmul.f32 %v1300, %v1285
    %v1302 = vmul.f32 %v1300, %v1286
    %v1303 = vadd.f32 %v1247, %v1301
    %v1304 = vadd.f32 %v1248, %v1302
    %s1305 = sld [smem:[#allocation6 + $0x983]]
    %v1306 = vstv %s1305
    %v1307 = vmul.f32 %v1306, %v1285
    %v1308 = vmul.f32 %v1306, %v1286
    %v1309 = vadd.f32 %v1253, %v1307
    %v1310 = vadd.f32 %v1254, %v1308
    %s1311 = sld [smem:[#allocation2 + $0x14]]
    %v1312 = vstv %s1311
    %v1313 = vmul.f32 %v1312, %v101
    %v1314 = vmul.f32 %v1312, %v102
    %s1315 = sld [smem:[#allocation2 + $0x94]]
    %v1316 = vstv %s1315
    %v1317 = vmul.f32 %v1316, %v105
    %v1318 = vmul.f32 %v1316, %v106
    %v1319 = vadd.f32 %v1313, %v1317
    %v1320 = vadd.f32 %v1314, %v1318
    %s1321 = sld [smem:[#allocation2 + $0x114]]
    %v1322 = vstv %s1321
    %v1323 = vmul.f32 %v1322, %v109
    %v1324 = vmul.f32 %v1322, %v110
    %v1325 = vadd.f32 %v1319, %v1323
    %v1326 = vadd.f32 %v1320, %v1324
    %s1327 = sld [smem:[#allocation2 + $0x194]]
    %v1328 = vstv %s1327
    %v1329 = vmul.f32 %v1328, %v113
    %v1330 = vmul.f32 %v1328, %v114
    %v1331 = vadd.f32 %v1325, %v1329
    %v1332 = vadd.f32 %v1326, %v1330
    %s1333 = sld [smem:[#allocation4 + $0x14]]
    %v1334 = vstv %s1333
    %v1335 = vadd.f32 %v1331, %v1334
    %v1336 = vadd.f32 %v1332, %v1334
    %vm1337 = vcmp.gt.f32.partialorder %v1335, 0.0
    %vm1338 = vcmp.gt.f32.partialorder %v1336, 0.0
    %v1339 = vmul.f32 %v1335, 0.1
    %v1340 = vmul.f32 %v1336, 0.1
    %v1341 = vsel %vm1337, %v1335, %v1339
    %v1342 = vsel %vm1338, %v1336, %v1340
    %s1343 = sld [smem:[#allocation6 + $0xa00]]
    %v1344 = vstv %s1343
    %v1345 = vmul.f32 %v1344, %v1341
    %v1346 = vmul.f32 %v1344, %v1342
    %v1347 = vadd.f32 %v1291, %v1345
    %v1348 = vadd.f32 %v1292, %v1346
    %s1349 = sld [smem:[#allocation6 + $0xa01]]
    %v1350 = vstv %s1349
    %v1351 = vmul.f32 %v1350, %v1341
    %v1352 = vmul.f32 %v1350, %v1342
    %v1353 = vadd.f32 %v1297, %v1351
    %v1354 = vadd.f32 %v1298, %v1352
    %s1355 = sld [smem:[#allocation6 + $0xa02]]
    %v1356 = vstv %s1355
    %v1357 = vmul.f32 %v1356, %v1341
    %v1358 = vmul.f32 %v1356, %v1342
    %v1359 = vadd.f32 %v1303, %v1357
    %v1360 = vadd.f32 %v1304, %v1358
    %s1361 = sld [smem:[#allocation6 + $0xa03]]
    %v1362 = vstv %s1361
    %v1363 = vmul.f32 %v1362, %v1341
    %v1364 = vmul.f32 %v1362, %v1342
    %v1365 = vadd.f32 %v1309, %v1363
    %v1366 = vadd.f32 %v1310, %v1364
    %s1367 = sld [smem:[#allocation2 + $0x15]]
    %v1368 = vstv %s1367
    %v1369 = vmul.f32 %v1368, %v101
    %v1370 = vmul.f32 %v1368, %v102
    %s1371 = sld [smem:[#allocation2 + $0x95]]
    %v1372 = vstv %s1371
    %v1373 = vmul.f32 %v1372, %v105
    %v1374 = vmul.f32 %v1372, %v106
    %v1375 = vadd.f32 %v1369, %v1373
    %v1376 = vadd.f32 %v1370, %v1374
    %s1377 = sld [smem:[#allocation2 + $0x115]]
    %v1378 = vstv %s1377
    %v1379 = vmul.f32 %v1378, %v109
    %v1380 = vmul.f32 %v1378, %v110
    %v1381 = vadd.f32 %v1375, %v1379
    %v1382 = vadd.f32 %v1376, %v1380
    %s1383 = sld [smem:[#allocation2 + $0x195]]
    %v1384 = vstv %s1383
    %v1385 = vmul.f32 %v1384, %v113
    %v1386 = vmul.f32 %v1384, %v114
    %v1387 = vadd.f32 %v1381, %v1385
    %v1388 = vadd.f32 %v1382, %v1386
    %s1389 = sld [smem:[#allocation4 + $0x15]]
    %v1390 = vstv %s1389
    %v1391 = vadd.f32 %v1387, %v1390
    %v1392 = vadd.f32 %v1388, %v1390
    %vm1393 = vcmp.gt.f32.partialorder %v1391, 0.0
    %vm1394 = vcmp.gt.f32.partialorder %v1392, 0.0
    %v1395 = vmul.f32 %v1391, 0.1
    %v1396 = vmul.f32 %v1392, 0.1
    %v1397 = vsel %vm1393, %v1391, %v1395
    %v1398 = vsel %vm1394, %v1392, %v1396
    %s1399 = sld [smem:[#allocation6 + $0xa80]]
    %v1400 = vstv %s1399
    %v1401 = vmul.f32 %v1400, %v1397
    %v1402 = vmul.f32 %v1400, %v1398
    %v1403 = vadd.f32 %v1347, %v1401
    %v1404 = vadd.f32 %v1348, %v1402
    %s1405 = sld [smem:[#allocation6 + $0xa81]]
    %v1406 = vstv %s1405
    %v1407 = vmul.f32 %v1406, %v1397
    %v1408 = vmul.f32 %v1406, %v1398
    %v1409 = vadd.f32 %v1353, %v1407
    %v1410 = vadd.f32 %v1354, %v1408
    %s1411 = sld [smem:[#allocation6 + $0xa82]]
    %v1412 = vstv %s1411
    %v1413 = vmul.f32 %v1412, %v1397
    %v1414 = vmul.f32 %v1412, %v1398
    %v1415 = vadd.f32 %v1359, %v1413
    %v1416 = vadd.f32 %v1360, %v1414
    %s1417 = sld [smem:[#allocation6 + $0xa83]]
    %v1418 = vstv %s1417
    %v1419 = vmul.f32 %v1418, %v1397
    %v1420 = vmul.f32 %v1418, %v1398
    %v1421 = vadd.f32 %v1365, %v1419
    %v1422 = vadd.f32 %v1366, %v1420
    %s1423 = sld [smem:[#allocation2 + $0x16]]
    %v1424 = vstv %s1423
    %v1425 = vmul.f32 %v1424, %v101
    %v1426 = vmul.f32 %v1424, %v102
    %s1427 = sld [smem:[#allocation2 + $0x96]]
    %v1428 = vstv %s1427
    %v1429 = vmul.f32 %v1428, %v105
    %v1430 = vmul.f32 %v1428, %v106
    %v1431 = vadd.f32 %v1425, %v1429
    %v1432 = vadd.f32 %v1426, %v1430
    %s1433 = sld [smem:[#allocation2 + $0x116]]
    %v1434 = vstv %s1433
    %v1435 = vmul.f32 %v1434, %v109
    %v1436 = vmul.f32 %v1434, %v110
    %v1437 = vadd.f32 %v1431, %v1435
    %v1438 = vadd.f32 %v1432, %v1436
    %s1439 = sld [smem:[#allocation2 + $0x196]]
    %v1440 = vstv %s1439
    %v1441 = vmul.f32 %v1440, %v113
    %v1442 = vmul.f32 %v1440, %v114
    %v1443 = vadd.f32 %v1437, %v1441
    %v1444 = vadd.f32 %v1438, %v1442
    %s1445 = sld [smem:[#allocation4 + $0x16]]
    %v1446 = vstv %s1445
    %v1447 = vadd.f32 %v1443, %v1446
    %v1448 = vadd.f32 %v1444, %v1446
    %vm1449 = vcmp.gt.f32.partialorder %v1447, 0.0
    %vm1450 = vcmp.gt.f32.partialorder %v1448, 0.0
    %v1451 = vmul.f32 %v1447, 0.1
    %v1452 = vmul.f32 %v1448, 0.1
    %v1453 = vsel %vm1449, %v1447, %v1451
    %v1454 = vsel %vm1450, %v1448, %v1452
    %s1455 = sld [smem:[#allocation6 + $0xb00]]
    %v1456 = vstv %s1455
    %v1457 = vmul.f32 %v1456, %v1453
    %v1458 = vmul.f32 %v1456, %v1454
    %v1459 = vadd.f32 %v1403, %v1457
    %v1460 = vadd.f32 %v1404, %v1458
    %s1461 = sld [smem:[#allocation6 + $0xb01]]
    %v1462 = vstv %s1461
    %v1463 = vmul.f32 %v1462, %v1453
    %v1464 = vmul.f32 %v1462, %v1454
    %v1465 = vadd.f32 %v1409, %v1463
    %v1466 = vadd.f32 %v1410, %v1464
    %s1467 = sld [smem:[#allocation6 + $0xb02]]
    %v1468 = vstv %s1467
    %v1469 = vmul.f32 %v1468, %v1453
    %v1470 = vmul.f32 %v1468, %v1454
    %v1471 = vadd.f32 %v1415, %v1469
    %v1472 = vadd.f32 %v1416, %v1470
    %s1473 = sld [smem:[#allocation6 + $0xb03]]
    %v1474 = vstv %s1473
    %v1475 = vmul.f32 %v1474, %v1453
    %v1476 = vmul.f32 %v1474, %v1454
    %v1477 = vadd.f32 %v1421, %v1475
    %v1478 = vadd.f32 %v1422, %v1476
    %s1479 = sld [smem:[#allocation2 + $0x17]]
    %v1480 = vstv %s1479
    %v1481 = vmul.f32 %v1480, %v101
    %v1482 = vmul.f32 %v1480, %v102
    %s1483 = sld [smem:[#allocation2 + $0x97]]
    %v1484 = vstv %s1483
    %v1485 = vmul.f32 %v1484, %v105
    %v1486 = vmul.f32 %v1484, %v106
    %v1487 = vadd.f32 %v1481, %v1485
    %v1488 = vadd.f32 %v1482, %v1486
    %s1489 = sld [smem:[#allocation2 + $0x117]]
    %v1490 = vstv %s1489
    %v1491 = vmul.f32 %v1490, %v109
    %v1492 = vmul.f32 %v1490, %v110
    %v1493 = vadd.f32 %v1487, %v1491
    %v1494 = vadd.f32 %v1488, %v1492
    %s1495 = sld [smem:[#allocation2 + $0x197]]
    %v1496 = vstv %s1495
    %v1497 = vmul.f32 %v1496, %v113
    %v1498 = vmul.f32 %v1496, %v114
    %v1499 = vadd.f32 %v1493, %v1497
    %v1500 = vadd.f32 %v1494, %v1498
    %s1501 = sld [smem:[#allocation4 + $0x17]]
    %v1502 = vstv %s1501
    %v1503 = vadd.f32 %v1499, %v1502
    %v1504 = vadd.f32 %v1500, %v1502
    %vm1505 = vcmp.gt.f32.partialorder %v1503, 0.0
    %vm1506 = vcmp.gt.f32.partialorder %v1504, 0.0
    %v1507 = vmul.f32 %v1503, 0.1
    %v1508 = vmul.f32 %v1504, 0.1
    %v1509 = vsel %vm1505, %v1503, %v1507
    %v1510 = vsel %vm1506, %v1504, %v1508
    %s1511 = sld [smem:[#allocation6 + $0xb80]]
    %v1512 = vstv %s1511
    %v1513 = vmul.f32 %v1512, %v1509
    %v1514 = vmul.f32 %v1512, %v1510
    %v1515 = vadd.f32 %v1459, %v1513
    %v1516 = vadd.f32 %v1460, %v1514
    %s1517 = sld [smem:[#allocation6 + $0xb81]]
    %v1518 = vstv %s1517
    %v1519 = vmul.f32 %v1518, %v1509
    %v1520 = vmul.f32 %v1518, %v1510
    %v1521 = vadd.f32 %v1465, %v1519
    %v1522 = vadd.f32 %v1466, %v1520
    %s1523 = sld [smem:[#allocation6 + $0xb82]]
    %v1524 = vstv %s1523
    %v1525 = vmul.f32 %v1524, %v1509
    %v1526 = vmul.f32 %v1524, %v1510
    %v1527 = vadd.f32 %v1471, %v1525
    %v1528 = vadd.f32 %v1472, %v1526
    %s1529 = sld [smem:[#allocation6 + $0xb83]]
    %v1530 = vstv %s1529
    %v1531 = vmul.f32 %v1530, %v1509
    %v1532 = vmul.f32 %v1530, %v1510
    %v1533 = vadd.f32 %v1477, %v1531
    %v1534 = vadd.f32 %v1478, %v1532
    %s1535 = sld [smem:[#allocation2 + $0x18]]
    %v1536 = vstv %s1535
    %v1537 = vmul.f32 %v1536, %v101
    %v1538 = vmul.f32 %v1536, %v102
    %s1539 = sld [smem:[#allocation2 + $0x98]]
    %v1540 = vstv %s1539
    %v1541 = vmul.f32 %v1540, %v105
    %v1542 = vmul.f32 %v1540, %v106
    %v1543 = vadd.f32 %v1537, %v1541
    %v1544 = vadd.f32 %v1538, %v1542
    %s1545 = sld [smem:[#allocation2 + $0x118]]
    %v1546 = vstv %s1545
    %v1547 = vmul.f32 %v1546, %v109
    %v1548 = vmul.f32 %v1546, %v110
    %v1549 = vadd.f32 %v1543, %v1547
    %v1550 = vadd.f32 %v1544, %v1548
    %s1551 = sld [smem:[#allocation2 + $0x198]]
    %v1552 = vstv %s1551
    %v1553 = vmul.f32 %v1552, %v113
    %v1554 = vmul.f32 %v1552, %v114
    %v1555 = vadd.f32 %v1549, %v1553
    %v1556 = vadd.f32 %v1550, %v1554
    %s1557 = sld [smem:[#allocation4 + $0x18]]
    %v1558 = vstv %s1557
    %v1559 = vadd.f32 %v1555, %v1558
    %v1560 = vadd.f32 %v1556, %v1558
    %vm1561 = vcmp.gt.f32.partialorder %v1559, 0.0
    %vm1562 = vcmp.gt.f32.partialorder %v1560, 0.0
    %v1563 = vmul.f32 %v1559, 0.1
    %v1564 = vmul.f32 %v1560, 0.1
    %v1565 = vsel %vm1561, %v1559, %v1563
    %v1566 = vsel %vm1562, %v1560, %v1564
    %s1567 = sld [smem:[#allocation6 + $0xc00]]
    %v1568 = vstv %s1567
    %v1569 = vmul.f32 %v1568, %v1565
    %v1570 = vmul.f32 %v1568, %v1566
    %v1571 = vadd.f32 %v1515, %v1569
    %v1572 = vadd.f32 %v1516, %v1570
    %s1573 = sld [smem:[#allocation6 + $0xc01]]
    %v1574 = vstv %s1573
    %v1575 = vmul.f32 %v1574, %v1565
    %v1576 = vmul.f32 %v1574, %v1566
    %v1577 = vadd.f32 %v1521, %v1575
    %v1578 = vadd.f32 %v1522, %v1576
    %s1579 = sld [smem:[#allocation6 + $0xc02]]
    %v1580 = vstv %s1579
    %v1581 = vmul.f32 %v1580, %v1565
    %v1582 = vmul.f32 %v1580, %v1566
    %v1583 = vadd.f32 %v1527, %v1581
    %v1584 = vadd.f32 %v1528, %v1582
    %s1585 = sld [smem:[#allocation6 + $0xc03]]
    %v1586 = vstv %s1585
    %v1587 = vmul.f32 %v1586, %v1565
    %v1588 = vmul.f32 %v1586, %v1566
    %v1589 = vadd.f32 %v1533, %v1587
    %v1590 = vadd.f32 %v1534, %v1588
    %s1591 = sld [smem:[#allocation2 + $0x19]]
    %v1592 = vstv %s1591
    %v1593 = vmul.f32 %v1592, %v101
    %v1594 = vmul.f32 %v1592, %v102
    %s1595 = sld [smem:[#allocation2 + $0x99]]
    %v1596 = vstv %s1595
    %v1597 = vmul.f32 %v1596, %v105
    %v1598 = vmul.f32 %v1596, %v106
    %v1599 = vadd.f32 %v1593, %v1597
    %v1600 = vadd.f32 %v1594, %v1598
    %s1601 = sld [smem:[#allocation2 + $0x119]]
    %v1602 = vstv %s1601
    %v1603 = vmul.f32 %v1602, %v109
    %v1604 = vmul.f32 %v1602, %v110
    %v1605 = vadd.f32 %v1599, %v1603
    %v1606 = vadd.f32 %v1600, %v1604
    %s1607 = sld [smem:[#allocation2 + $0x199]]
    %v1608 = vstv %s1607
    %v1609 = vmul.f32 %v1608, %v113
    %v1610 = vmul.f32 %v1608, %v114
    %v1611 = vadd.f32 %v1605, %v1609
    %v1612 = vadd.f32 %v1606, %v1610
    %s1613 = sld [smem:[#allocation4 + $0x19]]
    %v1614 = vstv %s1613
    %v1615 = vadd.f32 %v1611, %v1614
    %v1616 = vadd.f32 %v1612, %v1614
    %vm1617 = vcmp.gt.f32.partialorder %v1615, 0.0
    %vm1618 = vcmp.gt.f32.partialorder %v1616, 0.0
    %v1619 = vmul.f32 %v1615, 0.1
    %v1620 = vmul.f32 %v1616, 0.1
    %v1621 = vsel %vm1617, %v1615, %v1619
    %v1622 = vsel %vm1618, %v1616, %v1620
    %s1623 = sld [smem:[#allocation6 + $0xc80]]
    %v1624 = vstv %s1623
    %v1625 = vmul.f32 %v1624, %v1621
    %v1626 = vmul.f32 %v1624, %v1622
    %v1627 = vadd.f32 %v1571, %v1625
    %v1628 = vadd.f32 %v1572, %v1626
    %s1629 = sld [smem:[#allocation6 + $0xc81]]
    %v1630 = vstv %s1629
    %v1631 = vmul.f32 %v1630, %v1621
    %v1632 = vmul.f32 %v1630, %v1622
    %v1633 = vadd.f32 %v1577, %v1631
    %v1634 = vadd.f32 %v1578, %v1632
    %s1635 = sld [smem:[#allocation6 + $0xc82]]
    %v1636 = vstv %s1635
    %v1637 = vmul.f32 %v1636, %v1621
    %v1638 = vmul.f32 %v1636, %v1622
    %v1639 = vadd.f32 %v1583, %v1637
    %v1640 = vadd.f32 %v1584, %v1638
    %s1641 = sld [smem:[#allocation6 + $0xc83]]
    %v1642 = vstv %s1641
    %v1643 = vmul.f32 %v1642, %v1621
    %v1644 = vmul.f32 %v1642, %v1622
    %v1645 = vadd.f32 %v1589, %v1643
    %v1646 = vadd.f32 %v1590, %v1644
    %s1647 = sld [smem:[#allocation2 + $0x1a]]
    %v1648 = vstv %s1647
    %v1649 = vmul.f32 %v1648, %v101
    %v1650 = vmul.f32 %v1648, %v102
    %s1651 = sld [smem:[#allocation2 + $0x9a]]
    %v1652 = vstv %s1651
    %v1653 = vmul.f32 %v1652, %v105
    %v1654 = vmul.f32 %v1652, %v106
    %v1655 = vadd.f32 %v1649, %v1653
    %v1656 = vadd.f32 %v1650, %v1654
    %s1657 = sld [smem:[#allocation2 + $0x11a]]
    %v1658 = vstv %s1657
    %v1659 = vmul.f32 %v1658, %v109
    %v1660 = vmul.f32 %v1658, %v110
    %v1661 = vadd.f32 %v1655, %v1659
    %v1662 = vadd.f32 %v1656, %v1660
    %s1663 = sld [smem:[#allocation2 + $0x19a]]
    %v1664 = vstv %s1663
    %v1665 = vmul.f32 %v1664, %v113
    %v1666 = vmul.f32 %v1664, %v114
    %v1667 = vadd.f32 %v1661, %v1665
    %v1668 = vadd.f32 %v1662, %v1666
    %s1669 = sld [smem:[#allocation4 + $0x1a]]
    %v1670 = vstv %s1669
    %v1671 = vadd.f32 %v1667, %v1670
    %v1672 = vadd.f32 %v1668, %v1670
    %vm1673 = vcmp.gt.f32.partialorder %v1671, 0.0
    %vm1674 = vcmp.gt.f32.partialorder %v1672, 0.0
    %v1675 = vmul.f32 %v1671, 0.1
    %v1676 = vmul.f32 %v1672, 0.1
    %v1677 = vsel %vm1673, %v1671, %v1675
    %v1678 = vsel %vm1674, %v1672, %v1676
    %s1679 = sld [smem:[#allocation6 + $0xd00]]
    %v1680 = vstv %s1679
    %v1681 = vmul.f32 %v1680, %v1677
    %v1682 = vmul.f32 %v1680, %v1678
    %v1683 = vadd.f32 %v1627, %v1681
    %v1684 = vadd.f32 %v1628, %v1682
    %s1685 = sld [smem:[#allocation6 + $0xd01]]
    %v1686 = vstv %s1685
    %v1687 = vmul.f32 %v1686, %v1677
    %v1688 = vmul.f32 %v1686, %v1678
    %v1689 = vadd.f32 %v1633, %v1687
    %v1690 = vadd.f32 %v1634, %v1688
    %s1691 = sld [smem:[#allocation6 + $0xd02]]
    %v1692 = vstv %s1691
    %v1693 = vmul.f32 %v1692, %v1677
    %v1694 = vmul.f32 %v1692, %v1678
    %v1695 = vadd.f32 %v1639, %v1693
    %v1696 = vadd.f32 %v1640, %v1694
    %s1697 = sld [smem:[#allocation6 + $0xd03]]
    %v1698 = vstv %s1697
    %v1699 = vmul.f32 %v1698, %v1677
    %v1700 = vmul.f32 %v1698, %v1678
    %v1701 = vadd.f32 %v1645, %v1699
    %v1702 = vadd.f32 %v1646, %v1700
    %s1703 = sld [smem:[#allocation2 + $0x1b]]
    %v1704 = vstv %s1703
    %v1705 = vmul.f32 %v1704, %v101
    %v1706 = vmul.f32 %v1704, %v102
    %s1707 = sld [smem:[#allocation2 + $0x9b]]
    %v1708 = vstv %s1707
    %v1709 = vmul.f32 %v1708, %v105
    %v1710 = vmul.f32 %v1708, %v106
    %v1711 = vadd.f32 %v1705, %v1709
    %v1712 = vadd.f32 %v1706, %v1710
    %s1713 = sld [smem:[#allocation2 + $0x11b]]
    %v1714 = vstv %s1713
    %v1715 = vmul.f32 %v1714, %v109
    %v1716 = vmul.f32 %v1714, %v110
    %v1717 = vadd.f32 %v1711, %v1715
    %v1718 = vadd.f32 %v1712, %v1716
    %s1719 = sld [smem:[#allocation2 + $0x19b]]
    %v1720 = vstv %s1719
    %v1721 = vmul.f32 %v1720, %v113
    %v1722 = vmul.f32 %v1720, %v114
    %v1723 = vadd.f32 %v1717, %v1721
    %v1724 = vadd.f32 %v1718, %v1722
    %s1725 = sld [smem:[#allocation4 + $0x1b]]
    %v1726 = vstv %s1725
    %v1727 = vadd.f32 %v1723, %v1726
    %v1728 = vadd.f32 %v1724, %v1726
    %vm1729 = vcmp.gt.f32.partialorder %v1727, 0.0
    %vm1730 = vcmp.gt.f32.partialorder %v1728, 0.0
    %v1731 = vmul.f32 %v1727, 0.1
    %v1732 = vmul.f32 %v1728, 0.1
    %v1733 = vsel %vm1729, %v1727, %v1731
    %v1734 = vsel %vm1730, %v1728, %v1732
    %s1735 = sld [smem:[#allocation6 + $0xd80]]
    %v1736 = vstv %s1735
    %v1737 = vmul.f32 %v1736, %v1733
    %v1738 = vmul.f32 %v1736, %v1734
    %v1739 = vadd.f32 %v1683, %v1737
    %v1740 = vadd.f32 %v1684, %v1738
    %s1741 = sld [smem:[#allocation6 + $0xd81]]
    %v1742 = vstv %s1741
    %v1743 = vmul.f32 %v1742, %v1733
    %v1744 = vmul.f32 %v1742, %v1734
    %v1745 = vadd.f32 %v1689, %v1743
    %v1746 = vadd.f32 %v1690, %v1744
    %s1747 = sld [smem:[#allocation6 + $0xd82]]
    %v1748 = vstv %s1747
    %v1749 = vmul.f32 %v1748, %v1733
    %v1750 = vmul.f32 %v1748, %v1734
    %v1751 = vadd.f32 %v1695, %v1749
    %v1752 = vadd.f32 %v1696, %v1750
    %s1753 = sld [smem:[#allocation6 + $0xd83]]
    %v1754 = vstv %s1753
    %v1755 = vmul.f32 %v1754, %v1733
    %v1756 = vmul.f32 %v1754, %v1734
    %v1757 = vadd.f32 %v1701, %v1755
    %v1758 = vadd.f32 %v1702, %v1756
    %s1759 = sld [smem:[#allocation2 + $0x1c]]
    %v1760 = vstv %s1759
    %v1761 = vmul.f32 %v1760, %v101
    %v1762 = vmul.f32 %v1760, %v102
    %s1763 = sld [smem:[#allocation2 + $0x9c]]
    %v1764 = vstv %s1763
    %v1765 = vmul.f32 %v1764, %v105
    %v1766 = vmul.f32 %v1764, %v106
    %v1767 = vadd.f32 %v1761, %v1765
    %v1768 = vadd.f32 %v1762, %v1766
    %s1769 = sld [smem:[#allocation2 + $0x11c]]
    %v1770 = vstv %s1769
    %v1771 = vmul.f32 %v1770, %v109
    %v1772 = vmul.f32 %v1770, %v110
    %v1773 = vadd.f32 %v1767, %v1771
    %v1774 = vadd.f32 %v1768, %v1772
    %s1775 = sld [smem:[#allocation2 + $0x19c]]
    %v1776 = vstv %s1775
    %v1777 = vmul.f32 %v1776, %v113
    %v1778 = vmul.f32 %v1776, %v114
    %v1779 = vadd.f32 %v1773, %v1777
    %v1780 = vadd.f32 %v1774, %v1778
    %s1781 = sld [smem:[#allocation4 + $0x1c]]
    %v1782 = vstv %s1781
    %v1783 = vadd.f32 %v1779, %v1782
    %v1784 = vadd.f32 %v1780, %v1782
    %vm1785 = vcmp.gt.f32.partialorder %v1783, 0.0
    %vm1786 = vcmp.gt.f32.partialorder %v1784, 0.0
    %v1787 = vmul.f32 %v1783, 0.1
    %v1788 = vmul.f32 %v1784, 0.1
    %v1789 = vsel %vm1785, %v1783, %v1787
    %v1790 = vsel %vm1786, %v1784, %v1788
    %s1791 = sld [smem:[#allocation6 + $0xe00]]
    %v1792 = vstv %s1791
    %v1793 = vmul.f32 %v1792, %v1789
    %v1794 = vmul.f32 %v1792, %v1790
    %v1795 = vadd.f32 %v1739, %v1793
    %v1796 = vadd.f32 %v1740, %v1794
    %s1797 = sld [smem:[#allocation6 + $0xe01]]
    %v1798 = vstv %s1797
    %v1799 = vmul.f32 %v1798, %v1789
    %v1800 = vmul.f32 %v1798, %v1790
    %v1801 = vadd.f32 %v1745, %v1799
    %v1802 = vadd.f32 %v1746, %v1800
    %s1803 = sld [smem:[#allocation6 + $0xe02]]
    %v1804 = vstv %s1803
    %v1805 = vmul.f32 %v1804, %v1789
    %v1806 = vmul.f32 %v1804, %v1790
    %v1807 = vadd.f32 %v1751, %v1805
    %v1808 = vadd.f32 %v1752, %v1806
    %s1809 = sld [smem:[#allocation6 + $0xe03]]
    %v1810 = vstv %s1809
    %v1811 = vmul.f32 %v1810, %v1789
    %v1812 = vmul.f32 %v1810, %v1790
    %v1813 = vadd.f32 %v1757, %v1811
    %v1814 = vadd.f32 %v1758, %v1812
    %s1815 = sld [smem:[#allocation2 + $0x1d]]
    %v1816 = vstv %s1815
    %v1817 = vmul.f32 %v1816, %v101
    %v1818 = vmul.f32 %v1816, %v102
    %s1819 = sld [smem:[#allocation2 + $0x9d]]
    %v1820 = vstv %s1819
    %v1821 = vmul.f32 %v1820, %v105
    %v1822 = vmul.f32 %v1820, %v106
    %v1823 = vadd.f32 %v1817, %v1821
    %v1824 = vadd.f32 %v1818, %v1822
    %s1825 = sld [smem:[#allocation2 + $0x11d]]
    %v1826 = vstv %s1825
    %v1827 = vmul.f32 %v1826, %v109
    %v1828 = vmul.f32 %v1826, %v110
    %v1829 = vadd.f32 %v1823, %v1827
    %v1830 = vadd.f32 %v1824, %v1828
    %s1831 = sld [smem:[#allocation2 + $0x19d]]
    %v1832 = vstv %s1831
    %v1833 = vmul.f32 %v1832, %v113
    %v1834 = vmul.f32 %v1832, %v114
    %v1835 = vadd.f32 %v1829, %v1833
    %v1836 = vadd.f32 %v1830, %v1834
    %s1837 = sld [smem:[#allocation4 + $0x1d]]
    %v1838 = vstv %s1837
    %v1839 = vadd.f32 %v1835, %v1838
    %v1840 = vadd.f32 %v1836, %v1838
    %vm1841 = vcmp.gt.f32.partialorder %v1839, 0.0
    %vm1842 = vcmp.gt.f32.partialorder %v1840, 0.0
    %v1843 = vmul.f32 %v1839, 0.1
    %v1844 = vmul.f32 %v1840, 0.1
    %v1845 = vsel %vm1841, %v1839, %v1843
    %v1846 = vsel %vm1842, %v1840, %v1844
    %s1847 = sld [smem:[#allocation6 + $0xe80]]
    %v1848 = vstv %s1847
    %v1849 = vmul.f32 %v1848, %v1845
    %v1850 = vmul.f32 %v1848, %v1846
    %v1851 = vadd.f32 %v1795, %v1849
    %v1852 = vadd.f32 %v1796, %v1850
    %s1853 = sld [smem:[#allocation6 + $0xe81]]
    %v1854 = vstv %s1853
    %v1855 = vmul.f32 %v1854, %v1845
    %v1856 = vmul.f32 %v1854, %v1846
    %v1857 = vadd.f32 %v1801, %v1855
    %v1858 = vadd.f32 %v1802, %v1856
    %s1859 = sld [smem:[#allocation6 + $0xe82]]
    %v1860 = vstv %s1859
    %v1861 = vmul.f32 %v1860, %v1845
    %v1862 = vmul.f32 %v1860, %v1846
    %v1863 = vadd.f32 %v1807, %v1861
    %v1864 = vadd.f32 %v1808, %v1862
    %s1865 = sld [smem:[#allocation6 + $0xe83]]
    %v1866 = vstv %s1865
    %v1867 = vmul.f32 %v1866, %v1845
    %v1868 = vmul.f32 %v1866, %v1846
    %v1869 = vadd.f32 %v1813, %v1867
    %v1870 = vadd.f32 %v1814, %v1868
    %s1871 = sld [smem:[#allocation2 + $0x1e]]
    %v1872 = vstv %s1871
    %v1873 = vmul.f32 %v1872, %v101
    %v1874 = vmul.f32 %v1872, %v102
    %s1875 = sld [smem:[#allocation2 + $0x9e]]
    %v1876 = vstv %s1875
    %v1877 = vmul.f32 %v1876, %v105
    %v1878 = vmul.f32 %v1876, %v106
    %v1879 = vadd.f32 %v1873, %v1877
    %v1880 = vadd.f32 %v1874, %v1878
    %s1881 = sld [smem:[#allocation2 + $0x11e]]
    %v1882 = vstv %s1881
    %v1883 = vmul.f32 %v1882, %v109
    %v1884 = vmul.f32 %v1882, %v110
    %v1885 = vadd.f32 %v1879, %v1883
    %v1886 = vadd.f32 %v1880, %v1884
    %s1887 = sld [smem:[#allocation2 + $0x19e]]
    %v1888 = vstv %s1887
    %v1889 = vmul.f32 %v1888, %v113
    %v1890 = vmul.f32 %v1888, %v114
    %v1891 = vadd.f32 %v1885, %v1889
    %v1892 = vadd.f32 %v1886, %v1890
    %s1893 = sld [smem:[#allocation4 + $0x1e]]
    %v1894 = vstv %s1893
    %v1895 = vadd.f32 %v1891, %v1894
    %v1896 = vadd.f32 %v1892, %v1894
    %vm1897 = vcmp.gt.f32.partialorder %v1895, 0.0
    %vm1898 = vcmp.gt.f32.partialorder %v1896, 0.0
    %v1899 = vmul.f32 %v1895, 0.1
    %v1900 = vmul.f32 %v1896, 0.1
    %v1901 = vsel %vm1897, %v1895, %v1899
    %v1902 = vsel %vm1898, %v1896, %v1900
    %s1903 = sld [smem:[#allocation6 + $0xf00]]
    %v1904 = vstv %s1903
    %v1905 = vmul.f32 %v1904, %v1901
    %v1906 = vmul.f32 %v1904, %v1902
    %v1907 = vadd.f32 %v1851, %v1905
    %v1908 = vadd.f32 %v1852, %v1906
    %s1909 = sld [smem:[#allocation6 + $0xf01]]
    %v1910 = vstv %s1909
    %v1911 = vmul.f32 %v1910, %v1901
    %v1912 = vmul.f32 %v1910, %v1902
    %v1913 = vadd.f32 %v1857, %v1911
    %v1914 = vadd.f32 %v1858, %v1912
    %s1915 = sld [smem:[#allocation6 + $0xf02]]
    %v1916 = vstv %s1915
    %v1917 = vmul.f32 %v1916, %v1901
    %v1918 = vmul.f32 %v1916, %v1902
    %v1919 = vadd.f32 %v1863, %v1917
    %v1920 = vadd.f32 %v1864, %v1918
    %s1921 = sld [smem:[#allocation6 + $0xf03]]
    %v1922 = vstv %s1921
    %v1923 = vmul.f32 %v1922, %v1901
    %v1924 = vmul.f32 %v1922, %v1902
    %v1925 = vadd.f32 %v1869, %v1923
    %v1926 = vadd.f32 %v1870, %v1924
    %s1927 = sld [smem:[#allocation2 + $0x1f]]
    %v1928 = vstv %s1927
    %v1929 = vmul.f32 %v1928, %v101
    %v1930 = vmul.f32 %v1928, %v102
    %s1931 = sld [smem:[#allocation2 + $0x9f]]
    %v1932 = vstv %s1931
    %v1933 = vmul.f32 %v1932, %v105
    %v1934 = vmul.f32 %v1932, %v106
    %v1935 = vadd.f32 %v1929, %v1933
    %v1936 = vadd.f32 %v1930, %v1934
    %s1937 = sld [smem:[#allocation2 + $0x11f]]
    %v1938 = vstv %s1937
    %v1939 = vmul.f32 %v1938, %v109
    %v1940 = vmul.f32 %v1938, %v110
    %v1941 = vadd.f32 %v1935, %v1939
    %v1942 = vadd.f32 %v1936, %v1940
    %s1943 = sld [smem:[#allocation2 + $0x19f]]
    %v1944 = vstv %s1943
    %v1945 = vmul.f32 %v1944, %v113
    %v1946 = vmul.f32 %v1944, %v114
    %v1947 = vadd.f32 %v1941, %v1945
    %v1948 = vadd.f32 %v1942, %v1946
    %s1949 = sld [smem:[#allocation4 + $0x1f]]
    %v1950 = vstv %s1949
    %v1951 = vadd.f32 %v1947, %v1950
    %v1952 = vadd.f32 %v1948, %v1950
    %vm1953 = vcmp.gt.f32.partialorder %v1951, 0.0
    %vm1954 = vcmp.gt.f32.partialorder %v1952, 0.0
    %v1955 = vmul.f32 %v1951, 0.1
    %v1956 = vmul.f32 %v1952, 0.1
    %v1957 = vsel %vm1953, %v1951, %v1955
    %v1958 = vsel %vm1954, %v1952, %v1956
    %s1959 = sld [smem:[#allocation6 + $0xf80]]
    %v1960 = vstv %s1959
    %v1961 = vmul.f32 %v1960, %v1957
    %v1962 = vmul.f32 %v1960, %v1958
    %v1963 = vadd.f32 %v1907, %v1961
    %v1964 = vadd.f32 %v1908, %v1962
    %s1965 = sld [smem:[#allocation6 + $0xf81]]
    %v1966 = vstv %s1965
    %v1967 = vmul.f32 %v1966, %v1957
    %v1968 = vmul.f32 %v1966, %v1958
    %v1969 = vadd.f32 %v1913, %v1967
    %v1970 = vadd.f32 %v1914, %v1968
    %s1971 = sld [smem:[#allocation6 + $0xf82]]
    %v1972 = vstv %s1971
    %v1973 = vmul.f32 %v1972, %v1957
    %v1974 = vmul.f32 %v1972, %v1958
    %v1975 = vadd.f32 %v1919, %v1973
    %v1976 = vadd.f32 %v1920, %v1974
    %s1977 = sld [smem:[#allocation6 + $0xf83]]
    %v1978 = vstv %s1977
    %v1979 = vmul.f32 %v1978, %v1957
    %v1980 = vmul.f32 %v1978, %v1958
    %v1981 = vadd.f32 %v1925, %v1979
    %v1982 = vadd.f32 %v1926, %v1980
    %s1983 = sld [smem:[#allocation7]]
    %v1984 = vstv %s1983
    %v1985 = vadd.f32 %v1963, %v1984
    %v1986 = vadd.f32 %v1964, %v1984
    %vm1987 = vcmp.gt.f32.partialorder %v1985, 0.0
    %vm1988 = vcmp.gt.f32.partialorder %v1986, 0.0
    %v1989 = vmul.f32 %v1985, 0.1
    %v1990 = vmul.f32 %v1986, 0.1
    %v1991 = vsel %vm1987, %v1985, %v1989
    %v1992 = vsel %vm1988, %v1986, %v1990
    %v1993 = vadd.f32 %v1991, %v101
    %v1994 = vadd.f32 %v1992, %v102
    %s1995 = sld [smem:[#allocation7 + $0x1]]
    %v1996 = vstv %s1995
    %v1997 = vadd.f32 %v1969, %v1996
    %v1998 = vadd.f32 %v1970, %v1996
    %vm1999 = vcmp.gt.f32.partialorder %v1997, 0.0
    %vm2000 = vcmp.gt.f32.partialorder %v1998, 0.0
    %v2001 = vmul.f32 %v1997, 0.1
    %v2002 = vmul.f32 %v1998, 0.1
    %v2003 = vsel %vm1999, %v1997, %v2001
    %v2004 = vsel %vm2000, %v1998, %v2002
    %v2005 = vadd.f32 %v2003, %v105
    %v2006 = vadd.f32 %v2004, %v106
    %s2007 = sld [smem:[#allocation7 + $0x2]]
    %v2008 = vstv %s2007
    %v2009 = vadd.f32 %v1975, %v2008
    %v2010 = vadd.f32 %v1976, %v2008
    %vm2011 = vcmp.gt.f32.partialorder %v2009, 0.0
    %vm2012 = vcmp.gt.f32.partialorder %v2010, 0.0
    %v2013 = vmul.f32 %v2009, 0.1
    %v2014 = vmul.f32 %v2010, 0.1
    %v2015 = vsel %vm2011, %v2009, %v2013
    %v2016 = vsel %vm2012, %v2010, %v2014
    %v2017 = vadd.f32 %v2015, %v109
    %v2018 = vadd.f32 %v2016, %v110
    %s2019 = sld [smem:[#allocation7 + $0x3]]
    %v2020 = vstv %s2019
    %v2021 = vadd.f32 %v1981, %v2020
    %v2022 = vadd.f32 %v1982, %v2020
    %vm2023 = vcmp.gt.f32.partialorder %v2021, 0.0
    %vm2024 = vcmp.gt.f32.partialorder %v2022, 0.0
    %v2025 = vmul.f32 %v2021, 0.1
    %v2026 = vmul.f32 %v2022, 0.1
    %v2027 = vsel %vm2023, %v2021, %v2025
    %v2028 = vsel %vm2024, %v2022, %v2026
    %v2029 = vadd.f32 %v2027, %v113
    %v2030 = vadd.f32 %v2028, %v114
    %s2031 = sld [smem:[#allocation9]]
    %v2032 = vstv %s2031
    %v2033 = vmul.f32 %v2032, %v1993
    %v2034 = vmul.f32 %v2032, %v1994
    %s2035 = sld [smem:[#allocation9 + $0x80]]
    %v2036 = vstv %s2035
    %v2037 = vmul.f32 %v2036, %v2005
    %v2038 = vmul.f32 %v2036, %v2006
    %v2039 = vadd.f32 %v2033, %v2037
    %v2040 = vadd.f32 %v2034, %v2038
    %s2041 = sld [smem:[#allocation9 + $0x100]]
    %v2042 = vstv %s2041
    %v2043 = vmul.f32 %v2042, %v2017
    %v2044 = vmul.f32 %v2042, %v2018
    %v2045 = vadd.f32 %v2039, %v2043
    %v2046 = vadd.f32 %v2040, %v2044
    %s2047 = sld [smem:[#allocation9 + $0x180]]
    %v2048 = vstv %s2047
    %v2049 = vmul.f32 %v2048, %v2029
    %v2050 = vmul.f32 %v2048, %v2030
    %v2051 = vadd.f32 %v2045, %v2049
    %v2052 = vadd.f32 %v2046, %v2050
    %s2053 = sld [smem:[#allocation10]]
    %v2054 = vstv %s2053
    %v2055 = vadd.f32 %v2051, %v2054
    %v2056 = vadd.f32 %v2052, %v2054
    %v2057 = vxor.u32 %v2055, 2147483648
    %v2058 = vxor.u32 %v2056, 2147483648
    %v2059 = vmul.f32 %v2057, 1.442695
    %v2060 = vpow.pop %v2059
    %v2061 = vmul.f32 %v2058, 1.442695
    %v2062 = vpow.pop %v2061
    %v2063 = vadd.f32 %v2060, 1.0
    %v2064 = vadd.f32 %v2062, 1.0
    %v2065 = vrcp.pop %v2063
    %v2066 = vmul.f32 %v2063, %v2065
    %v2067 = vsub.f32 1.0, %v2066
    %v2068 = vmul.f32 %v2065, %v2067
    %v2069 = vadd.f32 %v2065, %v2068
    %vm2070 = vweird.f32 %v2063
    %vm2071 = vweird.f32 %v2065
    %vm2072 = vmor %vm2070, %vm2071
    %v2073 = vsel %vm2072, %v2065, %v2069
    %v2074 = vand.u32 2147483647, %v2063
    %vm2075 = vcmp.eq.f32.partialorder %v2074, 8.507059e+37
    %v2076 = vand.u32 %v2063, 2147483648
    %v2077 = vor.u32 1.1754944e-38, %v2076
    %v2078 = vsel %vm2075, %v2077, %v2073
    %v2079 = vmul.f32 1.0, %v2078
    %v2080 = vrcp.pop %v2064
    %v2081 = vmul.f32 %v2064, %v2080
    %v2082 = vsub.f32 1.0, %v2081
    %v2083 = vmul.f32 %v2080, %v2082
    %v2084 = vadd.f32 %v2080, %v2083
    %vm2085 = vweird.f32 %v2064
    %vm2086 = vweird.f32 %v2080
    %vm2087 = vmor %vm2085, %vm2086
    %v2088 = vsel %vm2087, %v2080, %v2084
    %v2089 = vand.u32 2147483647, %v2064
    %vm2090 = vcmp.eq.f32.partialorder %v2089, 8.507059e+37
    %v2091 = vand.u32 %v2064, 2147483648
    %v2092 = vor.u32 1.1754944e-38, %v2091
    %v2093 = vsel %vm2090, %v2092, %v2088
    %v2094 = vmul.f32 1.0, %v2093
    %2095 = vst [vmem:[%s7] sm:$0xff] %v2079
    %2096 = vst [vmem:[%s7 + $0x8] sm:$0xff] %v2094
    %s2097 = sld [smem:[#allocation9 + $0x1]]
    %v2098 = vstv %s2097
    %v2099 = vmul.f32 %v2098, %v1993
    %v2100 = vmul.f32 %v2098, %v1994
    %s2101 = sld [smem:[#allocation9 + $0x81]]
    %v2102 = vstv %s2101
    %v2103 = vmul.f32 %v2102, %v2005
    %v2104 = vmul.f32 %v2102, %v2006
    %v2105 = vadd.f32 %v2099, %v2103
    %v2106 = vadd.f32 %v2100, %v2104
    %s2107 = sld [smem:[#allocation9 + $0x101]]
    %v2108 = vstv %s2107
    %v2109 = vmul.f32 %v2108, %v2017
    %v2110 = vmul.f32 %v2108, %v2018
    %v2111 = vadd.f32 %v2105, %v2109
    %v2112 = vadd.f32 %v2106, %v2110
    %s2113 = sld [smem:[#allocation9 + $0x181]]
    %v2114 = vstv %s2113
    %v2115 = vmul.f32 %v2114, %v2029
    %v2116 = vmul.f32 %v2114, %v2030
    %v2117 = vadd.f32 %v2111, %v2115
    %v2118 = vadd.f32 %v2112, %v2116
    %s2119 = sld [smem:[#allocation10 + $0x1]]
    %v2120 = vstv %s2119
    %v2121 = vadd.f32 %v2117, %v2120
    %v2122 = vadd.f32 %v2118, %v2120
    %v2123 = vxor.u32 %v2121, 2147483648
    %v2124 = vxor.u32 %v2122, 2147483648
    %v2125 = vmul.f32 %v2123, 1.442695
    %v2126 = vpow.pop %v2125
    %v2127 = vmul.f32 %v2124, 1.442695
    %v2128 = vpow.pop %v2127
    %v2129 = vadd.f32 %v2126, 1.0
    %v2130 = vadd.f32 %v2128, 1.0
    %v2131 = vrcp.pop %v2129
    %v2132 = vmul.f32 %v2129, %v2131
    %v2133 = vsub.f32 1.0, %v2132
    %v2134 = vmul.f32 %v2131, %v2133
    %v2135 = vadd.f32 %v2131, %v2134
    %vm2136 = vweird.f32 %v2129
    %vm2137 = vweird.f32 %v2131
    %vm2138 = vmor %vm2136, %vm2137
    %v2139 = vsel %vm2138, %v2131, %v2135
    %v2140 = vand.u32 2147483647, %v2129
    %vm2141 = vcmp.eq.f32.partialorder %v2140, 8.507059e+37
    %v2142 = vand.u32 %v2129, 2147483648
    %v2143 = vor.u32 1.1754944e-38, %v2142
    %v2144 = vsel %vm2141, %v2143, %v2139
    %v2145 = vmul.f32 1.0, %v2144
    %v2146 = vrcp.pop %v2130
    %v2147 = vmul.f32 %v2130, %v2146
    %v2148 = vsub.f32 1.0, %v2147
    %v2149 = vmul.f32 %v2146, %v2148
    %v2150 = vadd.f32 %v2146, %v2149
    %vm2151 = vweird.f32 %v2130
    %vm2152 = vweird.f32 %v2146
    %vm2153 = vmor %vm2151, %vm2152
    %v2154 = vsel %vm2153, %v2146, %v2150
    %v2155 = vand.u32 2147483647, %v2130
    %vm2156 = vcmp.eq.f32.partialorder %v2155, 8.507059e+37
    %v2157 = vand.u32 %v2130, 2147483648
    %v2158 = vor.u32 1.1754944e-38, %v2157
    %v2159 = vsel %vm2156, %v2158, %v2154
    %v2160 = vmul.f32 1.0, %v2159
    %s2161 = scalar_lea.vmem %s7, %s103
    %2162 = vst [vmem:[%s2161] sm:$0xff] %v2145
    %2163 = vst [vmem:[%s2161 + $0x8] sm:$0xff] %v2160
    // Predicated region
    $region54: #{_nn_c_device.1} parent=1 // pred_check
      _
    $region55: #{_nn_c_device.1} parent=1 // pred_check_branch
      %2165 = sbr.rel (0) target = $region57
    $region56: #{_nn_c_device.1} parent=1 // pred_region
      _
    $region57: #{_nn_c_device.1} parent=1 // pred_fallthru
      _
    // Predicated region
    $region58: #{_nn_c_device.1} parent=1 // pred_check
      _
    $region59: #{_nn_c_device.1} parent=1 // pred_check_branch
      %2167 = sbr.rel (0) target = $region61
    $region60: #{_nn_c_device.1} parent=1 // pred_region
      _
    $region61: #{_nn_c_device.1} parent=1 // pred_fallthru
      _
    // Predicated region
    $region62: #{_nn_c_device.1} parent=1 // pred_check
      _
    $region63: #{_nn_c_device.1} parent=1 // pred_check_branch
      %2169 = sbr.rel (0) target = $region65
    $region64: #{_nn_c_device.1} parent=1 // pred_region
      _
    $region65: #{_nn_c_device.1} parent=1 // pred_fallthru
      _
    // Predicated region
    $region66: #{_nn_c_device.1} parent=1 // pred_check
      _
    $region67: #{_nn_c_device.1} parent=1 // pred_check_branch
      %2171 = sbr.rel (0) target = $region69
    $region68: #{_nn_c_device.1} parent=1 // pred_region
      _
    $region69: #{_nn_c_device.1} parent=1 // pred_fallthru
      _
    %2172 = vsyncpa [#allocation3], 1
    %2173 = vsyncpa [#allocation5], 1
    %2174 = vsyncpa [#allocation8], 1
    %2175 = vsyncpa [#allocation11], 1

</llo_original>
